<compile_context>
chip_gen: v6e
topology: v6e:2x2x1
jax: 0.10.0
libtpu: 0.0.40
codegen_flags: <defaults>
</compile_context>

<pallas_src>
import functools

import jax
import jax.numpy as jnp
from jax import lax
from jax.experimental import pallas as pl
from jax.experimental.pallas import tpu as pltpu

BN_EPS = 1e-5          # nn.BatchNorm2d default eps used by the module
MIX_EPS = 1e-4         # TripletAttention_Conv_w.epsilon
K_GATE = 7             # AttentionGate2 kernel size (fixed by the module)


def _sigmoid(v):
    # exact (division); pl.reciprocal(..., approx=True) could push this to the EUP
    return 1.0 / (1.0 + jnp.exp(-v))


def _silu(v):
    return v * _sigmoid(v)


def _conv1x1_bias(w_ref, b_ref, x):
    """(C2, Cin) x (Cin, HW) + bias -> (C2, HW); BN already folded into w/b.

    Small Cin: unrolled VPU broadcast-FMAs (avoids <1%-utilization MXU pushes).
    Large Cin: a single MXU matmul with a real contraction dimension.
    """
    c2, cin = w_ref.shape
    if cin <= 16:
        acc = jnp.zeros((c2, x.shape[1]), jnp.float32)
        for ci in range(cin):
            acc = acc + w_ref[:, ci:ci + 1] * x[ci:ci + 1, :]
    else:
        acc = jnp.dot(w_ref[...], x, preferred_element_type=jnp.float32)
    return acc + b_ref[...]


def _gate_conv7(pad_ref, par_ref, s1, s2, k):
    """BasicConv(2, 1, k, pad=k//2, relu=False -> SiLU) + sigmoid on a tiny map.

    pad_ref: VMEM (2, s1+k-1, s2+k-1) zero-padded [max, mean] planes.
    par_ref: SMEM (2*k*k + 1,) BN-folded taps + folded bias.
    Returns a (s1, s2) gate in (0, 1).  Pure VPU shifted FMAs, no MXU.
    """
    acc = jnp.zeros((s1, s2), jnp.float32)
    for ci in range(2):
        for a in range(k):
            for b in range(k):
                acc = acc + par_ref[ci * k * k + a * k + b] * \
                    pad_ref[ci, a:a + s1, b:b + s2]
    acc = acc + par_ref[2 * k * k]
    return _sigmoid(_silu(acc))


def _triplet_kernel(x4_ref, x2_ref, w_hw1_ref, b_hw1_ref, w_sh_ref, b_sh_ref,
                    cw_par_ref, hc_par_ref, hw2_par_ref, mix_ref,
                    o_ref, pad_cw_ref, pad_hc_ref, sflat_ref, *, K):
    P = K // 2
    _, C, H, W = x4_ref.shape

    x4 = x4_ref[0]        # (C, H, W)  -- spatial view (H sublanes, W lanes)
    x2 = x2_ref[0]        # (C, H*W)   -- lane-dense view for all heavy math

    # ---- branch "hw": AttentionGate = channel ZPool + two 1x1 convs ---------
    zmax_c = jnp.max(x2, axis=0, keepdims=True)                 # (1, HW)
    zmean_c = jnp.mean(x2, axis=0, keepdims=True)               # (1, HW)
    s_hw = hw2_par_ref[0] * zmax_c + hw2_par_ref[1] * zmean_c + hw2_par_ref[2]
    s_hw = _sigmoid(_silu(s_hw))                                # (1, HW)
    y_hw = _silu(_conv1x1_bias(w_hw1_ref, b_hw1_ref, x2)) * s_hw  # (C2, HW)

    # ---- branch "cw": ZPool over H, KxK gate on (C, W) spatial --------------
    pad_cw_ref[...] = jnp.zeros_like(pad_cw_ref)
    pad_cw_ref[0, P:P + C, P:P + W] = jnp.max(x4, axis=1)
    pad_cw_ref[1, P:P + C, P:P + W] = jnp.mean(x4, axis=1)
    s_cw = _gate_conv7(pad_cw_ref, cw_par_ref, C, W, K)         # (C, W)
    for h in range(H):                                          # expand over H into
        sflat_ref[:, h * W:(h + 1) * W] = s_cw                  # the lane-dense layout
    y_cw = _silu(_conv1x1_bias(w_sh_ref, b_sh_ref, x2 * sflat_ref[...]))

    # ---- branch "hc": ZPool over W, KxK gate on (H, C) spatial (kept as (C,H))
    pad_hc_ref[...] = jnp.zeros_like(pad_hc_ref)
    pad_hc_ref[0, P:P + C, P:P + H] = jnp.max(x4, axis=2)
    pad_hc_ref[1, P:P + C, P:P + H] = jnp.mean(x4, axis=2)
    s_hc = _gate_conv7(pad_hc_ref, hc_par_ref, C, H, K)         # (C, H)
    for h in range(H):
        sflat_ref[:, h * W:(h + 1) * W] = jnp.broadcast_to(s_hc[:, h:h + 1], (C, W))
    y_hc = _silu(_conv1x1_bias(w_sh_ref, b_sh_ref, x2 * sflat_ref[...]))

    # ---- learned branch mix (w / (sum(w) + eps)) ----------------------------
    out = mix_ref[0] * y_hw + mix_ref[1] * y_cw + mix_ref[2] * y_hc
    o_ref[0] = out.astype(o_ref.dtype)


def _fold_bn(w, g, b, m, v, eps=BN_EPS):
    s = g / jnp.sqrt(v + eps)
    wf = w * s.reshape((-1,) + (1,) * (w.ndim - 1))
    bf = b - m * s
    return wf.astype(jnp.float32), bf.astype(jnp.float32)


def triplet_attention_conv_w(x, p):
    """Forward of TripletAttention_Conv_w (inference-mode BatchNorm)."""
    N, C, H, W = x.shape
    C2 = p["conv_w"].shape[0]
    K = p["cw_w"].shape[-1]
    HW = H * W

    cw_wf, cw_bf = _fold_bn(p["cw_w"], p["cw_g"], p["cw_b"], p["cw_m"], p["cw_v"])
    hc_wf, hc_bf = _fold_bn(p["hc_w"], p["hc_g"], p["hc_b"], p["hc_m"], p["hc_v"])
    sh_wf, sh_bf = _fold_bn(p["conv_w"], p["conv_g"], p["conv_b"], p["conv_m"], p["conv_v"])
    h1_wf, h1_bf = _fold_bn(p["hw1_w"], p["hw1_g"], p["hw1_b"], p["hw1_m"], p["hw1_v"])
    h2_wf, h2_bf = _fold_bn(p["hw2_w"], p["hw2_g"], p["hw2_b"], p["hw2_m"], p["hw2_v"])

    cw_pars = jnp.concatenate([cw_wf[0].reshape(-1), cw_bf.reshape(-1)])
    # hc gate runs on (H, C) spatial in torch; the kernel computes in (C, H),
    # so swap the two spatial tap axes of its weights.
    hc_pars = jnp.concatenate([jnp.transpose(hc_wf[0], (0, 2, 1)).reshape(-1),
                               hc_bf.reshape(-1)])
    hw2_pars = jnp.concatenate([h2_wf.reshape(-1), h2_bf.reshape(-1)])  # [w_max, w_mean, b]
    mix = (p["w3"] / (jnp.sum(p["w3"]) + MIX_EPS)).astype(jnp.float32)

    w_hw1 = h1_wf.reshape(C2, C)
    b_hw1 = h1_bf.reshape(C2, 1)
    w_sh = sh_wf.reshape(C2, C)
    b_sh = sh_bf.reshape(C2, 1)

    x4 = x.astype(jnp.float32)        # NCHW kept as-is: no transposes in HBM
    x2 = x4.reshape(N, C, HW)         # free reshape: lane-dense view of same bytes

    kernel = functools.partial(_triplet_kernel, K=K)

    out_flat = pl.pallas_call(
        kernel,
        out_shape=jax.ShapeDtypeStruct((N, C2, HW), jnp.float32),
        grid=(N,),
        in_specs=[
            pl.BlockSpec((1, C, H, W), lambda n: (n, 0, 0, 0)),
            pl.BlockSpec((1, C, HW), lambda n: (n, 0, 0)),
            pl.BlockSpec((C2, C), lambda n: (0, 0)),
            pl.BlockSpec((C2, 1), lambda n: (0, 0)),
            pl.BlockSpec((C2, C), lambda n: (0, 0)),
            pl.BlockSpec((C2, 1), lambda n: (0, 0)),
            pl.BlockSpec(memory_space=pltpu.MemorySpace.SMEM),   # cw gate taps+bias
            pl.BlockSpec(memory_space=pltpu.MemorySpace.SMEM),   # hc gate taps+bias
            pl.BlockSpec(memory_space=pltpu.MemorySpace.SMEM),   # hw 1x1(2->1) taps+bias
            pl.BlockSpec(memory_space=pltpu.MemorySpace.SMEM),   # branch mix weights
        ],
        out_specs=pl.BlockSpec((1, C2, HW), lambda n: (n, 0, 0)),
        scratch_shapes=[
            pltpu.VMEM((2, C + K - 1, W + K - 1), jnp.float32),  # padded cw ZPool map
            pltpu.VMEM((2, C + K - 1, H + K - 1), jnp.float32),  # padded hc ZPool map
            pltpu.VMEM((C, HW), jnp.float32),                    # lane-dense gate buf
        ],
        compiler_params=pltpu.CompilerParams(dimension_semantics=("parallel",)),
    )(x4, x2, w_hw1, b_hw1, w_sh, b_sh, cw_pars, hc_pars, hw2_pars, mix)

    return out_flat.reshape(N, C2, H, W)


# ----------------------------- pure-JAX reference -----------------------------
def _bn_ref(y, g, b, m, v, eps=BN_EPS):
    sh = (1, -1, 1, 1)
    return (y - m.reshape(sh)) / jnp.sqrt(v.reshape(sh) + eps) * g.reshape(sh) + b.reshape(sh)


def _conv2d_ref(x, w, pad):
    return lax.conv_general_dilated(
        x, w, window_strides=(1, 1), padding=[(pad, pad), (pad, pad)],
        dimension_numbers=("NCHW", "OIHW", "NCHW"),
        precision=lax.Precision.HIGHEST)


def _zpool_ref(x):
    return jnp.concatenate([jnp.max(x, axis=1, keepdims=True),
                            jnp.mean(x, axis=1, keepdims=True)], axis=1)


def reference(x, p):
    def conv_silu(t, pre):     # ultralytics Conv: conv -> BN -> SiLU
        k = p[pre + "_w"].shape[-1]
        y = _bn_ref(_conv2d_ref(t, p[pre + "_w"], (k - 1) // 2),
                    p[pre + "_g"], p[pre + "_b"], p[pre + "_m"], p[pre + "_v"])
        return _silu(y)

    def gate(t, pre):          # AttentionGate2: ZPool -> BasicConv(relu=False->SiLU) -> sigmoid
        return _sigmoid(conv_silu(_zpool_ref(t), pre))

    xp1 = jnp.transpose(x, (0, 2, 1, 3))
    xo11 = conv_silu(jnp.transpose(xp1 * gate(xp1, "cw"), (0, 2, 1, 3)), "conv")

    xp2 = jnp.transpose(x, (0, 3, 2, 1))
    xo21 = conv_silu(jnp.transpose(xp2 * gate(xp2, "hc"), (0, 3, 2, 1)), "conv")

    s_hw = _sigmoid(conv_silu(_zpool_ref(x), "hw2"))
    x_hw = conv_silu(x, "hw1") * s_hw

    wgt = p["w3"] / (jnp.sum(p["w3"]) + MIX_EPS)
    return wgt[0] * x_hw + wgt[1] * xo11 + wgt[2] * xo21


# ------------------------------ parameter setup -------------------------------
def init_params(key, c1, c2, k_gate=K_GATE):
    def conv_bn(key, co, ci, k, w_scale):
        kw, kg, kb, km, kv = jax.random.split(key, 5)
        return dict(
            w=w_scale * jax.random.normal(kw, (co, ci, k, k), jnp.float32),
            g=1.0 + 0.1 * jax.random.normal(kg, (co,), jnp.float32),
            b=0.1 * jax.random.normal(kb, (co,), jnp.float32),
            m=0.1 * jax.random.normal(km, (co,), jnp.float32),
            v=0.5 + jax.random.uniform(kv, (co,), jnp.float32),
        )

    k_cw, k_hc, k_conv, k_hw1, k_hw2, k_w = jax.random.split(key, 6)
    groups = {
        "cw": conv_bn(k_cw, 1, 2, k_gate, 0.25),     # AttentionGate2 #1 BasicConv(2,1,7)
        "hc": conv_bn(k_hc, 1, 2, k_gate, 0.25),     # AttentionGate2 #2 BasicConv(2,1,7)
        "conv": conv_bn(k_conv, c2, c1, 1, 0.5),     # shared Conv(c1,c2,1)
        "hw1": conv_bn(k_hw1, c2, c1, 1, 0.5),       # AttentionGate.conv1 Conv(c1,c2,1)
        "hw2": conv_bn(k_hw2, 1, 2, 1, 0.5),         # AttentionGate.conv2 Conv(2,1,1)
    }
    p = {}
    for name, g in groups.items():
        for f, val in g.items():
            p[f"{name}_{f}"] = val
    p["w3"] = 0.5 + jax.random.uniform(k_w, (3,), jnp.float32)   # learnable branch mix
    return p


if __name__ == "__main__":
    N, C1, C2, H, W = 2, 4, 8, 16, 16
    key = jax.random.PRNGKey(0)
    kp, kx = jax.random.split(key)
    params = init_params(kp, C1, C2)
    x = jax.random.normal(kx, (N, C1, H, W), dtype=jnp.float32)

    out = jax.block_until_ready(jax.jit(triplet_attention_conv_w)(x, params))
    ref = jax.block_until_ready(jax.jit(reference)(x, params))

    assert out.shape == (N, C2, H, W), out.shape
    assert jnp.allclose(out, ref, atol=1e-3, rtol=1e-3), \
        f"max abs err {float(jnp.max(jnp.abs(out - ref)))}"
    print("KERNEL_OK")
</pallas_src>

<mosaic_0001>
module attributes {stable_mosaic.version = 11 : i64} {
  func.func @_triplet_kernel(%arg0: i32, %arg1: memref<1x4x16x16xf32, #tpu.memory_space<vmem>>, %arg2: memref<1x4x256xf32, #tpu.memory_space<vmem>>, %arg3: memref<8x4xf32, #tpu.memory_space<vmem>>, %arg4: memref<8x1xf32, #tpu.memory_space<vmem>>, %arg5: memref<8x4xf32, #tpu.memory_space<vmem>>, %arg6: memref<8x1xf32, #tpu.memory_space<vmem>>, %arg7: memref<99xf32, #tpu.memory_space<smem>>, %arg8: memref<99xf32, #tpu.memory_space<smem>>, %arg9: memref<3xf32, #tpu.memory_space<smem>>, %arg10: memref<3xf32, #tpu.memory_space<smem>>, %arg11: memref<1x8x256xf32, #tpu.memory_space<vmem>>, %arg12: memref<2x10x22xf32, #tpu.memory_space<vmem>>, %arg13: memref<2x10x22xf32, #tpu.memory_space<vmem>>, %arg14: memref<4x256xf32, #tpu.memory_space<vmem>>) attributes {dimension_semantics = [#tpu.dimension_semantics<parallel>], iteration_bounds = array<i64: 2>, scalar_prefetch = 0 : i64, scratch_operands = 3 : i64, tpu.core_type = #tpu.core_type<tc>, window_params = [{transform_indices = @transform_0, window_bounds = array<i64: 1, 4, 16, 16>}, {transform_indices = @transform_1, window_bounds = array<i64: 1, 4, 256>}, {pipeline_mode = #tpu.pipeline_mode<synchronous>, transform_indices = @transform_2, window_bounds = array<i64: 8, 4>}, {pipeline_mode = #tpu.pipeline_mode<synchronous>, transform_indices = @transform_3, window_bounds = array<i64: 8, 1>}, {pipeline_mode = #tpu.pipeline_mode<synchronous>, transform_indices = @transform_4, window_bounds = array<i64: 8, 4>}, {pipeline_mode = #tpu.pipeline_mode<synchronous>, transform_indices = @transform_5, window_bounds = array<i64: 8, 1>}, {transform_indices = @transform_6, window_bounds = array<i64: 99>}, {transform_indices = @transform_7, window_bounds = array<i64: 99>}, {transform_indices = @transform_8, window_bounds = array<i64: 3>}, {transform_indices = @transform_9, window_bounds = array<i64: 3>}, {transform_indices = @transform_10, window_bounds = array<i64: 1, 8, 256>}]} {
    %c0 = arith.constant 0 : index
    %c0_0 = arith.constant 0 : index
    %c0_1 = arith.constant 0 : index
    %c0_2 = arith.constant 0 : index
    %0 = vector.load %arg1[%c0, %c0_0, %c0_1, %c0_2] : memref<1x4x16x16xf32, #tpu.memory_space<vmem>>, vector<1x4x16x16xf32>
    %1 = vector.shape_cast %0 : vector<1x4x16x16xf32> to vector<4x16x16xf32>
    %c0_3 = arith.constant 0 : index
    %c0_4 = arith.constant 0 : index
    %c0_5 = arith.constant 0 : index
    %2 = vector.load %arg2[%c0_3, %c0_4, %c0_5] : memref<1x4x256xf32, #tpu.memory_space<vmem>>, vector<1x4x256xf32>
    %3 = vector.shape_cast %2 : vector<1x4x256xf32> to vector<4x256xf32>
    %cst = arith.constant dense<0xFF800000> : vector<256xf32>
    %4 = vector.multi_reduction <maximumf>, %3, %cst [0] : vector<4x256xf32> to vector<256xf32>
    %5 = vector.shape_cast %4 : vector<256xf32> to vector<1x256xf32>
    %cst_6 = arith.constant dense<0.000000e+00> : vector<256xf32>
    %6 = vector.multi_reduction <add>, %3, %cst_6 [0] : vector<4x256xf32> to vector<256xf32>
    %7 = vector.shape_cast %6 : vector<256xf32> to vector<1x256xf32>
    %cst_7 = arith.constant 4.000000e+00 : f32
    %8 = vector.broadcast %cst_7 : f32 to vector<1x256xf32>
    %9 = arith.divf %7, %8 : vector<1x256xf32>
    %c0_8 = arith.constant 0 : index
    %10 = memref.load %arg9[%c0_8] : memref<3xf32, #tpu.memory_space<smem>>
    %11 = vector.broadcast %10 : f32 to vector<1x256xf32>
    %12 = arith.mulf %11, %5 : vector<1x256xf32>
    %c1 = arith.constant 1 : index
    %13 = memref.load %arg9[%c1] : memref<3xf32, #tpu.memory_space<smem>>
    %14 = vector.broadcast %13 : f32 to vector<1x256xf32>
    %15 = arith.mulf %14, %9 : vector<1x256xf32>
    %16 = arith.addf %12, %15 : vector<1x256xf32>
    %c2 = arith.constant 2 : index
    %17 = memref.load %arg9[%c2] : memref<3xf32, #tpu.memory_space<smem>>
    %18 = vector.broadcast %17 : f32 to vector<1x256xf32>
    %19 = arith.addf %16, %18 : vector<1x256xf32>
    %cst_9 = arith.constant 0.000000e+00 : f32
    %20 = vector.broadcast %cst_9 : f32 to vector<1x256xf32>
    %21 = arith.subf %20, %19 : vector<1x256xf32>
    %22 = math.exp %21 : vector<1x256xf32>
    %cst_10 = arith.constant 1.000000e+00 : f32
    %23 = vector.broadcast %cst_10 : f32 to vector<1x256xf32>
    %24 = arith.addf %23, %22 : vector<1x256xf32>
    %cst_11 = arith.constant 1.000000e+00 : f32
    %25 = vector.broadcast %cst_11 : f32 to vector<1x256xf32>
    %26 = arith.divf %25, %24 : vector<1x256xf32>
    %27 = arith.mulf %19, %26 : vector<1x256xf32>
    %cst_12 = arith.constant 0.000000e+00 : f32
    %28 = vector.broadcast %cst_12 : f32 to vector<1x256xf32>
    %29 = arith.subf %28, %27 : vector<1x256xf32>
    %30 = math.exp %29 : vector<1x256xf32>
    %cst_13 = arith.constant 1.000000e+00 : f32
    %31 = vector.broadcast %cst_13 : f32 to vector<1x256xf32>
    %32 = arith.addf %31, %30 : vector<1x256xf32>
    %cst_14 = arith.constant 1.000000e+00 : f32
    %33 = vector.broadcast %cst_14 : f32 to vector<1x256xf32>
    %34 = arith.divf %33, %32 : vector<1x256xf32>
    %cst_15 = arith.constant 0.000000e+00 : f32
    %35 = vector.broadcast %cst_15 : f32 to vector<8x256xf32>
    %c0_16 = arith.constant 0 : index
    %c0_17 = arith.constant 0 : index
    %36 = vector.load %arg3[%c0_16, %c0_17] : memref<8x4xf32, #tpu.memory_space<vmem>>, vector<8x1xf32>
    %37 = vector.extract_strided_slice %3 {offsets = [0, 0], sizes = [1, 256], strides = [1, 1]} : vector<4x256xf32> to vector<1x256xf32>
    %38 = vector.broadcast %36 : vector<8x1xf32> to vector<8x256xf32>
    %39 = vector.broadcast %37 : vector<1x256xf32> to vector<8x256xf32>
    %40 = arith.mulf %38, %39 : vector<8x256xf32>
    %41 = arith.addf %35, %40 : vector<8x256xf32>
    %c0_18 = arith.constant 0 : index
    %c1_19 = arith.constant 1 : index
    %42 = vector.load %arg3[%c0_18, %c1_19] : memref<8x4xf32, #tpu.memory_space<vmem>>, vector<8x1xf32>
    %43 = vector.extract_strided_slice %3 {offsets = [1, 0], sizes = [1, 256], strides = [1, 1]} : vector<4x256xf32> to vector<1x256xf32>
    %44 = vector.broadcast %42 : vector<8x1xf32> to vector<8x256xf32>
    %45 = vector.broadcast %43 : vector<1x256xf32> to vector<8x256xf32>
    %46 = arith.mulf %44, %45 : vector<8x256xf32>
    %47 = arith.addf %41, %46 : vector<8x256xf32>
    %c0_20 = arith.constant 0 : index
    %c2_21 = arith.constant 2 : index
    %48 = vector.load %arg3[%c0_20, %c2_21] : memref<8x4xf32, #tpu.memory_space<vmem>>, vector<8x1xf32>
    %49 = vector.extract_strided_slice %3 {offsets = [2, 0], sizes = [1, 256], strides = [1, 1]} : vector<4x256xf32> to vector<1x256xf32>
    %50 = vector.broadcast %48 : vector<8x1xf32> to vector<8x256xf32>
    %51 = vector.broadcast %49 : vector<1x256xf32> to vector<8x256xf32>
    %52 = arith.mulf %50, %51 : vector<8x256xf32>
    %53 = arith.addf %47, %52 : vector<8x256xf32>
    %c0_22 = arith.constant 0 : index
    %c3 = arith.constant 3 : index
    %54 = vector.load %arg3[%c0_22, %c3] : memref<8x4xf32, #tpu.memory_space<vmem>>, vector<8x1xf32>
    %55 = vector.extract_strided_slice %3 {offsets = [3, 0], sizes = [1, 256], strides = [1, 1]} : vector<4x256xf32> to vector<1x256xf32>
    %56 = vector.broadcast %54 : vector<8x1xf32> to vector<8x256xf32>
    %57 = vector.broadcast %55 : vector<1x256xf32> to vector<8x256xf32>
    %58 = arith.mulf %56, %57 : vector<8x256xf32>
    %59 = arith.addf %53, %58 : vector<8x256xf32>
    %c0_23 = arith.constant 0 : index
    %c0_24 = arith.constant 0 : index
    %60 = vector.load %arg4[%c0_23, %c0_24] : memref<8x1xf32, #tpu.memory_space<vmem>>, vector<8x1xf32>
    %61 = vector.broadcast %60 : vector<8x1xf32> to vector<8x256xf32>
    %62 = arith.addf %59, %61 : vector<8x256xf32>
    %cst_25 = arith.constant 0.000000e+00 : f32
    %63 = vector.broadcast %cst_25 : f32 to vector<8x256xf32>
    %64 = arith.subf %63, %62 : vector<8x256xf32>
    %65 = math.exp %64 : vector<8x256xf32>
    %cst_26 = arith.constant 1.000000e+00 : f32
    %66 = vector.broadcast %cst_26 : f32 to vector<8x256xf32>
    %67 = arith.addf %66, %65 : vector<8x256xf32>
    %cst_27 = arith.constant 1.000000e+00 : f32
    %68 = vector.broadcast %cst_27 : f32 to vector<8x256xf32>
    %69 = arith.divf %68, %67 : vector<8x256xf32>
    %70 = arith.mulf %62, %69 : vector<8x256xf32>
    %71 = vector.broadcast %34 : vector<1x256xf32> to vector<8x256xf32>
    %72 = arith.mulf %70, %71 : vector<8x256xf32>
    %cst_28 = arith.constant 0.000000e+00 : f32
    %73 = vector.broadcast %cst_28 : f32 to vector<2x10x22xf32>
    %c0_29 = arith.constant 0 : index
    %c0_30 = arith.constant 0 : index
    %c0_31 = arith.constant 0 : index
    %74 = vector.load %arg12[%c0_29, %c0_30, %c0_31] : memref<2x10x22xf32, #tpu.memory_space<vmem>>, vector<2x10x22xf32>
    tpu.vector_store %arg12[%c0_29, %c0_30, %c0_31], %73 {strides = array<i32>} : memref<2x10x22xf32, #tpu.memory_space<vmem>>, vector<2x10x22xf32>,
    %cst_32 = arith.constant dense<0xFF800000> : vector<4x16xf32>
    %75 = vector.multi_reduction <maximumf>, %1, %cst_32 [1] : vector<4x16x16xf32> to vector<4x16xf32>
    %c0_33 = arith.constant 0 : index
    %c3_34 = arith.constant 3 : index
    %c3_35 = arith.constant 3 : index
    %76 = vector.load %arg12[%c0_33, %c3_34, %c3_35] : memref<2x10x22xf32, #tpu.memory_space<vmem>>, vector<1x4x16xf32>
    %77 = vector.shape_cast %76 : vector<1x4x16xf32> to vector<4x16xf32>
    %78 = vector.shape_cast %75 : vector<4x16xf32> to vector<1x4x16xf32>
    tpu.vector_store %arg12[%c0_33, %c3_34, %c3_35], %78 {strides = array<i32>} : memref<2x10x22xf32, #tpu.memory_space<vmem>>, vector<1x4x16xf32>,
    %cst_36 = arith.constant dense<0.000000e+00> : vector<4x16xf32>
    %79 = vector.multi_reduction <add>, %1, %cst_36 [1] : vector<4x16x16xf32> to vector<4x16xf32>
    %cst_37 = arith.constant 1.600000e+01 : f32
    %80 = vector.broadcast %cst_37 : f32 to vector<4x16xf32>
    %81 = arith.divf %79, %80 : vector<4x16xf32>
    %c1_38 = arith.constant 1 : index
    %c3_39 = arith.constant 3 : index
    %c3_40 = arith.constant 3 : index
    %82 = vector.load %arg12[%c1_38, %c3_39, %c3_40] : memref<2x10x22xf32, #tpu.memory_space<vmem>>, vector<1x4x16xf32>
    %83 = vector.shape_cast %82 : vector<1x4x16xf32> to vector<4x16xf32>
    %84 = vector.shape_cast %81 : vector<4x16xf32> to vector<1x4x16xf32>
    tpu.vector_store %arg12[%c1_38, %c3_39, %c3_40], %84 {strides = array<i32>} : memref<2x10x22xf32, #tpu.memory_space<vmem>>, vector<1x4x16xf32>,
    %cst_41 = arith.constant 0.000000e+00 : f32
    %85 = vector.broadcast %cst_41 : f32 to vector<4x16xf32>
    %c0_42 = arith.constant 0 : index
    %86 = memref.load %arg7[%c0_42] : memref<99xf32, #tpu.memory_space<smem>>
    %c0_43 = arith.constant 0 : index
    %c0_44 = arith.constant 0 : index
    %c0_45 = arith.constant 0 : index
    %87 = vector.load %arg12[%c0_43, %c0_44, %c0_45] : memref<2x10x22xf32, #tpu.memory_space<vmem>>, vector<1x4x16xf32>
    %88 = vector.shape_cast %87 : vector<1x4x16xf32> to vector<4x16xf32>
    %89 = vector.broadcast %86 : f32 to vector<4x16xf32>
    %90 = arith.mulf %89, %88 : vector<4x16xf32>
    %91 = arith.addf %85, %90 : vector<4x16xf32>
    %c1_46 = arith.constant 1 : index
    %92 = memref.load %arg7[%c1_46] : memref<99xf32, #tpu.memory_space<smem>>
    %c0_47 = arith.constant 0 : index
    %c0_48 = arith.constant 0 : index
    %c1_49 = arith.constant 1 : index
    %93 = vector.load %arg12[%c0_47, %c0_48, %c1_49] : memref<2x10x22xf32, #tpu.memory_space<vmem>>, vector<1x4x16xf32>
    %94 = vector.shape_cast %93 : vector<1x4x16xf32> to vector<4x16xf32>
    %95 = vector.broadcast %92 : f32 to vector<4x16xf32>
    %96 = arith.mulf %95, %94 : vector<4x16xf32>
    %97 = arith.addf %91, %96 : vector<4x16xf32>
    %c2_50 = arith.constant 2 : index
    %98 = memref.load %arg7[%c2_50] : memref<99xf32, #tpu.memory_space<smem>>
    %c0_51 = arith.constant 0 : index
    %c0_52 = arith.constant 0 : index
    %c2_53 = arith.constant 2 : index
    %99 = vector.load %arg12[%c0_51, %c0_52, %c2_53] : memref<2x10x22xf32, #tpu.memory_space<vmem>>, vector<1x4x16xf32>
    %100 = vector.shape_cast %99 : vector<1x4x16xf32> to vector<4x16xf32>
    %101 = vector.broadcast %98 : f32 to vector<4x16xf32>
    %102 = arith.mulf %101, %100 : vector<4x16xf32>
    %103 = arith.addf %97, %102 : vector<4x16xf32>
    %c3_54 = arith.constant 3 : index
    %104 = memref.load %arg7[%c3_54] : memref<99xf32, #tpu.memory_space<smem>>
    %c0_55 = arith.constant 0 : index
    %c0_56 = arith.constant 0 : index
    %c3_57 = arith.constant 3 : index
    %105 = vector.load %arg12[%c0_55, %c0_56, %c3_57] : memref<2x10x22xf32, #tpu.memory_space<vmem>>, vector<1x4x16xf32>
    %106 = vector.shape_cast %105 : vector<1x4x16xf32> to vector<4x16xf32>
    %107 = vector.broadcast %104 : f32 to vector<4x16xf32>
    %108 = arith.mulf %107, %106 : vector<4x16xf32>
    %109 = arith.addf %103, %108 : vector<4x16xf32>
    %c4 = arith.constant 4 : index
    %110 = memref.load %arg7[%c4] : memref<99xf32, #tpu.memory_space<smem>>
    %c0_58 = arith.constant 0 : index
    %c0_59 = arith.constant 0 : index
    %c4_60 = arith.constant 4 : index
    %111 = vector.load %arg12[%c0_58, %c0_59, %c4_60] : memref<2x10x22xf32, #tpu.memory_space<vmem>>, vector<1x4x16xf32>
    %112 = vector.shape_cast %111 : vector<1x4x16xf32> to vector<4x16xf32>
    %113 = vector.broadcast %110 : f32 to vector<4x16xf32>
    %114 = arith.mulf %113, %112 : vector<4x16xf32>
    %115 = arith.addf %109, %114 : vector<4x16xf32>
    %c5 = arith.constant 5 : index
    %116 = memref.load %arg7[%c5] : memref<99xf32, #tpu.memory_space<smem>>
    %c0_61 = arith.constant 0 : index
    %c0_62 = arith.constant 0 : index
    %c5_63 = arith.constant 5 : index
    %117 = vector.load %arg12[%c0_61, %c0_62, %c5_63] : memref<2x10x22xf32, #tpu.memory_space<vmem>>, vector<1x4x16xf32>
    %118 = vector.shape_cast %117 : vector<1x4x16xf32> to vector<4x16xf32>
    %119 = vector.broadcast %116 : f32 to vector<4x16xf32>
    %120 = arith.mulf %119, %118 : vector<4x16xf32>
    %121 = arith.addf %115, %120 : vector<4x16xf32>
    %c6 = arith.constant 6 : index
    %122 = memref.load %arg7[%c6] : memref<99xf32, #tpu.memory_space<smem>>
    %c0_64 = arith.constant 0 : index
    %c0_65 = arith.constant 0 : index
    %c6_66 = arith.constant 6 : index
    %123 = vector.load %arg12[%c0_64, %c0_65, %c6_66] : memref<2x10x22xf32, #tpu.memory_space<vmem>>, vector<1x4x16xf32>
    %124 = vector.shape_cast %123 : vector<1x4x16xf32> to vector<4x16xf32>
    %125 = vector.broadcast %122 : f32 to vector<4x16xf32>
    %126 = arith.mulf %125, %124 : vector<4x16xf32>
    %127 = arith.addf %121, %126 : vector<4x16xf32>
    %c7 = arith.constant 7 : index
    %128 = memref.load %arg7[%c7] : memref<99xf32, #tpu.memory_space<smem>>
    %c0_67 = arith.constant 0 : index
    %c1_68 = arith.constant 1 : index
    %c0_69 = arith.constant 0 : index
    %129 = vector.load %arg12[%c0_67, %c1_68, %c0_69] : memref<2x10x22xf32, #tpu.memory_space<vmem>>, vector<1x4x16xf32>
    %130 = vector.shape_cast %129 : vector<1x4x16xf32> to vector<4x16xf32>
    %131 = vector.broadcast %128 : f32 to vector<4x16xf32>
    %132 = arith.mulf %131, %130 : vector<4x16xf32>
    %133 = arith.addf %127, %132 : vector<4x16xf32>
    %c8 = arith.constant 8 : index
    %134 = memref.load %arg7[%c8] : memref<99xf32, #tpu.memory_space<smem>>
    %c0_70 = arith.constant 0 : index
    %c1_71 = arith.constant 1 : index
    %c1_72 = arith.constant 1 : index
    %135 = vector.load %arg12[%c0_70, %c1_71, %c1_72] : memref<2x10x22xf32, #tpu.memory_space<vmem>>, vector<1x4x16xf32>
    %136 = vector.shape_cast %135 : vector<1x4x16xf32> to vector<4x16xf32>
    %137 = vector.broadcast %134 : f32 to vector<4x16xf32>
    %138 = arith.mulf %137, %136 : vector<4x16xf32>
    %139 = arith.addf %133, %138 : vector<4x16xf32>
    %c9 = arith.constant 9 : index
    %140 = memref.load %arg7[%c9] : memref<99xf32, #tpu.memory_space<smem>>
    %c0_73 = arith.constant 0 : index
    %c1_74 = arith.constant 1 : index
    %c2_75 = arith.constant 2 : index
    %141 = vector.load %arg12[%c0_73, %c1_74, %c2_75] : memref<2x10x22xf32, #tpu.memory_space<vmem>>, vector<1x4x16xf32>
    %142 = vector.shape_cast %141 : vector<1x4x16xf32> to vector<4x16xf32>
    %143 = vector.broadcast %140 : f32 to vector<4x16xf32>
    %144 = arith.mulf %143, %142 : vector<4x16xf32>
    %145 = arith.addf %139, %144 : vector<4x16xf32>
    %c10 = arith.constant 10 : index
    %146 = memref.load %arg7[%c10] : memref<99xf32, #tpu.memory_space<smem>>
    %c0_76 = arith.constant 0 : index
    %c1_77 = arith.constant 1 : index
    %c3_78 = arith.constant 3 : index
    %147 = vector.load %arg12[%c0_76, %c1_77, %c3_78] : memref<2x10x22xf32, #tpu.memory_space<vmem>>, vector<1x4x16xf32>
    %148 = vector.shape_cast %147 : vector<1x4x16xf32> to vector<4x16xf32>
    %149 = vector.broadcast %146 : f32 to vector<4x16xf32>
    %150 = arith.mulf %149, %148 : vector<4x16xf32>
    %151 = arith.addf %145, %150 : vector<4x16xf32>
    %c11 = arith.constant 11 : index
    %152 = memref.load %arg7[%c11] : memref<99xf32, #tpu.memory_space<smem>>
    %c0_79 = arith.constant 0 : index
    %c1_80 = arith.constant 1 : index
    %c4_81 = arith.constant 4 : index
    %153 = vector.load %arg12[%c0_79, %c1_80, %c4_81] : memref<2x10x22xf32, #tpu.memory_space<vmem>>, vector<1x4x16xf32>
    %154 = vector.shape_cast %153 : vector<1x4x16xf32> to vector<4x16xf32>
    %155 = vector.broadcast %152 : f32 to vector<4x16xf32>
    %156 = arith.mulf %155, %154 : vector<4x16xf32>
    %157 = arith.addf %151, %156 : vector<4x16xf32>
    %c12 = arith.constant 12 : index
    %158 = memref.load %arg7[%c12] : memref<99xf32, #tpu.memory_space<smem>>
    %c0_82 = arith.constant 0 : index
    %c1_83 = arith.constant 1 : index
    %c5_84 = arith.constant 5 : index
    %159 = vector.load %arg12[%c0_82, %c1_83, %c5_84] : memref<2x10x22xf32, #tpu.memory_space<vmem>>, vector<1x4x16xf32>
    %160 = vector.shape_cast %159 : vector<1x4x16xf32> to vector<4x16xf32>
    %161 = vector.broadcast %158 : f32 to vector<4x16xf32>
    %162 = arith.mulf %161, %160 : vector<4x16xf32>
    %163 = arith.addf %157, %162 : vector<4x16xf32>
    %c13 = arith.constant 13 : index
    %164 = memref.load %arg7[%c13] : memref<99xf32, #tpu.memory_space<smem>>
    %c0_85 = arith.constant 0 : index
    %c1_86 = arith.constant 1 : index
    %c6_87 = arith.constant 6 : index
    %165 = vector.load %arg12[%c0_85, %c1_86, %c6_87] : memref<2x10x22xf32, #tpu.memory_space<vmem>>, vector<1x4x16xf32>
    %166 = vector.shape_cast %165 : vector<1x4x16xf32> to vector<4x16xf32>
    %167 = vector.broadcast %164 : f32 to vector<4x16xf32>
    %168 = arith.mulf %167, %166 : vector<4x16xf32>
    %169 = arith.addf %163, %168 : vector<4x16xf32>
    %c14 = arith.constant 14 : index
    %170 = memref.load %arg7[%c14] : memref<99xf32, #tpu.memory_space<smem>>
    %c0_88 = arith.constant 0 : index
    %c2_89 = arith.constant 2 : index
    %c0_90 = arith.constant 0 : index
    %171 = vector.load %arg12[%c0_88, %c2_89, %c0_90] : memref<2x10x22xf32, #tpu.memory_space<vmem>>, vector<1x4x16xf32>
    %172 = vector.shape_cast %171 : vector<1x4x16xf32> to vector<4x16xf32>
    %173 = vector.broadcast %170 : f32 to vector<4x16xf32>
    %174 = arith.mulf %173, %172 : vector<4x16xf32>
    %175 = arith.addf %169, %174 : vector<4x16xf32>
    %c15 = arith.constant 15 : index
    %176 = memref.load %arg7[%c15] : memref<99xf32, #tpu.memory_space<smem>>
    %c0_91 = arith.constant 0 : index
    %c2_92 = arith.constant 2 : index
    %c1_93 = arith.constant 1 : index
    %177 = vector.load %arg12[%c0_91, %c2_92, %c1_93] : memref<2x10x22xf32, #tpu.memory_space<vmem>>, vector<1x4x16xf32>
    %178 = vector.shape_cast %177 : vector<1x4x16xf32> to vector<4x16xf32>
    %179 = vector.broadcast %176 : f32 to vector<4x16xf32>
    %180 = arith.mulf %179, %178 : vector<4x16xf32>
    %181 = arith.addf %175, %180 : vector<4x16xf32>
    %c16 = arith.constant 16 : index
    %182 = memref.load %arg7[%c16] : memref<99xf32, #tpu.memory_space<smem>>
    %c0_94 = arith.constant 0 : index
    %c2_95 = arith.constant 2 : index
    %c2_96 = arith.constant 2 : index
    %183 = vector.load %arg12[%c0_94, %c2_95, %c2_96] : memref<2x10x22xf32, #tpu.memory_space<vmem>>, vector<1x4x16xf32>
    %184 = vector.shape_cast %183 : vector<1x4x16xf32> to vector<4x16xf32>
    %185 = vector.broadcast %182 : f32 to vector<4x16xf32>
    %186 = arith.mulf %185, %184 : vector<4x16xf32>
    %187 = arith.addf %181, %186 : vector<4x16xf32>
    %c17 = arith.constant 17 : index
    %188 = memref.load %arg7[%c17] : memref<99xf32, #tpu.memory_space<smem>>
    %c0_97 = arith.constant 0 : index
    %c2_98 = arith.constant 2 : index
    %c3_99 = arith.constant 3 : index
    %189 = vector.load %arg12[%c0_97, %c2_98, %c3_99] : memref<2x10x22xf32, #tpu.memory_space<vmem>>, vector<1x4x16xf32>
    %190 = vector.shape_cast %189 : vector<1x4x16xf32> to vector<4x16xf32>
    %191 = vector.broadcast %188 : f32 to vector<4x16xf32>
    %192 = arith.mulf %191, %190 : vector<4x16xf32>
    %193 = arith.addf %187, %192 : vector<4x16xf32>
    %c18 = arith.constant 18 : index
    %194 = memref.load %arg7[%c18] : memref<99xf32, #tpu.memory_space<smem>>
    %c0_100 = arith.constant 0 : index
    %c2_101 = arith.constant 2 : index
    %c4_102 = arith.constant 4 : index
    %195 = vector.load %arg12[%c0_100, %c2_101, %c4_102] : memref<2x10x22xf32, #tpu.memory_space<vmem>>, vector<1x4x16xf32>
    %196 = vector.shape_cast %195 : vector<1x4x16xf32> to vector<4x16xf32>
    %197 = vector.broadcast %194 : f32 to vector<4x16xf32>
    %198 = arith.mulf %197, %196 : vector<4x16xf32>
    %199 = arith.addf %193, %198 : vector<4x16xf32>
    %c19 = arith.constant 19 : index
    %200 = memref.load %arg7[%c19] : memref<99xf32, #tpu.memory_space<smem>>
    %c0_103 = arith.constant 0 : index
    %c2_104 = arith.constant 2 : index
    %c5_105 = arith.constant 5 : index
    %201 = vector.load %arg12[%c0_103, %c2_104, %c5_105] : memref<2x10x22xf32, #tpu.memory_space<vmem>>, vector<1x4x16xf32>
    %202 = vector.shape_cast %201 : vector<1x4x16xf32> to vector<4x16xf32>
    %203 = vector.broadcast %200 : f32 to vector<4x16xf32>
    %204 = arith.mulf %203, %202 : vector<4x16xf32>
    %205 = arith.addf %199, %204 : vector<4x16xf32>
    %c20 = arith.constant 20 : index
    %206 = memref.load %arg7[%c20] : memref<99xf32, #tpu.memory_space<smem>>
    %c0_106 = arith.constant 0 : index
    %c2_107 = arith.constant 2 : index
    %c6_108 = arith.constant 6 : index
    %207 = vector.load %arg12[%c0_106, %c2_107, %c6_108] : memref<2x10x22xf32, #tpu.memory_space<vmem>>, vector<1x4x16xf32>
    %208 = vector.shape_cast %207 : vector<1x4x16xf32> to vector<4x16xf32>
    %209 = vector.broadcast %206 : f32 to vector<4x16xf32>
    %210 = arith.mulf %209, %208 : vector<4x16xf32>
    %211 = arith.addf %205, %210 : vector<4x16xf32>
    %c21 = arith.constant 21 : index
    %212 = memref.load %arg7[%c21] : memref<99xf32, #tpu.memory_space<smem>>
    %c0_109 = arith.constant 0 : index
    %c3_110 = arith.constant 3 : index
    %c0_111 = arith.constant 0 : index
    %213 = vector.load %arg12[%c0_109, %c3_110, %c0_111] : memref<2x10x22xf32, #tpu.memory_space<vmem>>, vector<1x4x16xf32>
    %214 = vector.shape_cast %213 : vector<1x4x16xf32> to vector<4x16xf32>
    %215 = vector.broadcast %212 : f32 to vector<4x16xf32>
    %216 = arith.mulf %215, %214 : vector<4x16xf32>
    %217 = arith.addf %211, %216 : vector<4x16xf32>
    %c22 = arith.constant 22 : index
    %218 = memref.load %arg7[%c22] : memref<99xf32, #tpu.memory_space<smem>>
    %c0_112 = arith.constant 0 : index
    %c3_113 = arith.constant 3 : index
    %c1_114 = arith.constant 1 : index
    %219 = vector.load %arg12[%c0_112, %c3_113, %c1_114] : memref<2x10x22xf32, #tpu.memory_space<vmem>>, vector<1x4x16xf32>
    %220 = vector.shape_cast %219 : vector<1x4x16xf32> to vector<4x16xf32>
    %221 = vector.broadcast %218 : f32 to vector<4x16xf32>
    %222 = arith.mulf %221, %220 : vector<4x16xf32>
    %223 = arith.addf %217, %222 : vector<4x16xf32>
    %c23 = arith.constant 23 : index
    %224 = memref.load %arg7[%c23] : memref<99xf32, #tpu.memory_space<smem>>
    %c0_115 = arith.constant 0 : index
    %c3_116 = arith.constant 3 : index
    %c2_117 = arith.constant 2 : index
    %225 = vector.load %arg12[%c0_115, %c3_116, %c2_117] : memref<2x10x22xf32, #tpu.memory_space<vmem>>, vector<1x4x16xf32>
    %226 = vector.shape_cast %225 : vector<1x4x16xf32> to vector<4x16xf32>
    %227 = vector.broadcast %224 : f32 to vector<4x16xf32>
    %228 = arith.mulf %227, %226 : vector<4x16xf32>
    %229 = arith.addf %223, %228 : vector<4x16xf32>
    %c24 = arith.constant 24 : index
    %230 = memref.load %arg7[%c24] : memref<99xf32, #tpu.memory_space<smem>>
    %c0_118 = arith.constant 0 : index
    %c3_119 = arith.constant 3 : index
    %c3_120 = arith.constant 3 : index
    %231 = vector.load %arg12[%c0_118, %c3_119, %c3_120] : memref<2x10x22xf32, #tpu.memory_space<vmem>>, vector<1x4x16xf32>
    %232 = vector.shape_cast %231 : vector<1x4x16xf32> to vector<4x16xf32>
    %233 = vector.broadcast %230 : f32 to vector<4x16xf32>
    %234 = arith.mulf %233, %232 : vector<4x16xf32>
    %235 = arith.addf %229, %234 : vector<4x16xf32>
    %c25 = arith.constant 25 : index
    %236 = memref.load %arg7[%c25] : memref<99xf32, #tpu.memory_space<smem>>
    %c0_121 = arith.constant 0 : index
    %c3_122 = arith.constant 3 : index
    %c4_123 = arith.constant 4 : index
    %237 = vector.load %arg12[%c0_121, %c3_122, %c4_123] : memref<2x10x22xf32, #tpu.memory_space<vmem>>, vector<1x4x16xf32>
    %238 = vector.shape_cast %237 : vector<1x4x16xf32> to vector<4x16xf32>
    %239 = vector.broadcast %236 : f32 to vector<4x16xf32>
    %240 = arith.mulf %239, %238 : vector<4x16xf32>
    %241 = arith.addf %235, %240 : vector<4x16xf32>
    %c26 = arith.constant 26 : index
    %242 = memref.load %arg7[%c26] : memref<99xf32, #tpu.memory_space<smem>>
    %c0_124 = arith.constant 0 : index
    %c3_125 = arith.constant 3 : index
    %c5_126 = arith.constant 5 : index
    %243 = vector.load %arg12[%c0_124, %c3_125, %c5_126] : memref<2x10x22xf32, #tpu.memory_space<vmem>>, vector<1x4x16xf32>
    %244 = vector.shape_cast %243 : vector<1x4x16xf32> to vector<4x16xf32>
    %245 = vector.broadcast %242 : f32 to vector<4x16xf32>
    %246 = arith.mulf %245, %244 : vector<4x16xf32>
    %247 = arith.addf %241, %246 : vector<4x16xf32>
    %c27 = arith.constant 27 : index
    %248 = memref.load %arg7[%c27] : memref<99xf32, #tpu.memory_space<smem>>
    %c0_127 = arith.constant 0 : index
    %c3_128 = arith.constant 3 : index
    %c6_129 = arith.constant 6 : index
    %249 = vector.load %arg12[%c0_127, %c3_128, %c6_129] : memref<2x10x22xf32, #tpu.memory_space<vmem>>, vector<1x4x16xf32>
    %250 = vector.shape_cast %249 : vector<1x4x16xf32> to vector<4x16xf32>
    %251 = vector.broadcast %248 : f32 to vector<4x16xf32>
    %252 = arith.mulf %251, %250 : vector<4x16xf32>
    %253 = arith.addf %247, %252 : vector<4x16xf32>
    %c28 = arith.constant 28 : index
    %254 = memref.load %arg7[%c28] : memref<99xf32, #tpu.memory_space<smem>>
    %c0_130 = arith.constant 0 : index
    %c4_131 = arith.constant 4 : index
    %c0_132 = arith.constant 0 : index
    %255 = vector.load %arg12[%c0_130, %c4_131, %c0_132] : memref<2x10x22xf32, #tpu.memory_space<vmem>>, vector<1x4x16xf32>
    %256 = vector.shape_cast %255 : vector<1x4x16xf32> to vector<4x16xf32>
    %257 = vector.broadcast %254 : f32 to vector<4x16xf32>
    %258 = arith.mulf %257, %256 : vector<4x16xf32>
    %259 = arith.addf %253, %258 : vector<4x16xf32>
    %c29 = arith.constant 29 : index
    %260 = memref.load %arg7[%c29] : memref<99xf32, #tpu.memory_space<smem>>
    %c0_133 = arith.constant 0 : index
    %c4_134 = arith.constant 4 : index
    %c1_135 = arith.constant 1 : index
    %261 = vector.load %arg12[%c0_133, %c4_134, %c1_135] : memref<2x10x22xf32, #tpu.memory_space<vmem>>, vector<1x4x16xf32>
    %262 = vector.shape_cast %261 : vector<1x4x16xf32> to vector<4x16xf32>
    %263 = vector.broadcast %260 : f32 to vector<4x16xf32>
    %264 = arith.mulf %263, %262 : vector<4x16xf32>
    %265 = arith.addf %259, %264 : vector<4x16xf32>
    %c30 = arith.constant 30 : index
    %266 = memref.load %arg7[%c30] : memref<99xf32, #tpu.memory_space<smem>>
    %c0_136 = arith.constant 0 : index
    %c4_137 = arith.constant 4 : index
    %c2_138 = arith.constant 2 : index
    %267 = vector.load %arg12[%c0_136, %c4_137, %c2_138] : memref<2x10x22xf32, #tpu.memory_space<vmem>>, vector<1x4x16xf32>
    %268 = vector.shape_cast %267 : vector<1x4x16xf32> to vector<4x16xf32>
    %269 = vector.broadcast %266 : f32 to vector<4x16xf32>
    %270 = arith.mulf %269, %268 : vector<4x16xf32>
    %271 = arith.addf %265, %270 : vector<4x16xf32>
    %c31 = arith.constant 31 : index
    %272 = memref.load %arg7[%c31] : memref<99xf32, #tpu.memory_space<smem>>
    %c0_139 = arith.constant 0 : index
    %c4_140 = arith.constant 4 : index
    %c3_141 = arith.constant 3 : index
    %273 = vector.load %arg12[%c0_139, %c4_140, %c3_141] : memref<2x10x22xf32, #tpu.memory_space<vmem>>, vector<1x4x16xf32>
    %274 = vector.shape_cast %273 : vector<1x4x16xf32> to vector<4x16xf32>
    %275 = vector.broadcast %272 : f32 to vector<4x16xf32>
    %276 = arith.mulf %275, %274 : vector<4x16xf32>
    %277 = arith.addf %271, %276 : vector<4x16xf32>
    %c32 = arith.constant 32 : index
    %278 = memref.load %arg7[%c32] : memref<99xf32, #tpu.memory_space<smem>>
    %c0_142 = arith.constant 0 : index
    %c4_143 = arith.constant 4 : index
    %c4_144 = arith.constant 4 : index
    %279 = vector.load %arg12[%c0_142, %c4_143, %c4_144] : memref<2x10x22xf32, #tpu.memory_space<vmem>>, vector<1x4x16xf32>
    %280 = vector.shape_cast %279 : vector<1x4x16xf32> to vector<4x16xf32>
    %281 = vector.broadcast %278 : f32 to vector<4x16xf32>
    %282 = arith.mulf %281, %280 : vector<4x16xf32>
    %283 = arith.addf %277, %282 : vector<4x16xf32>
    %c33 = arith.constant 33 : index
    %284 = memref.load %arg7[%c33] : memref<99xf32, #tpu.memory_space<smem>>
    %c0_145 = arith.constant 0 : index
    %c4_146 = arith.constant 4 : index
    %c5_147 = arith.constant 5 : index
    %285 = vector.load %arg12[%c0_145, %c4_146, %c5_147] : memref<2x10x22xf32, #tpu.memory_space<vmem>>, vector<1x4x16xf32>
    %286 = vector.shape_cast %285 : vector<1x4x16xf32> to vector<4x16xf32>
    %287 = vector.broadcast %284 : f32 to vector<4x16xf32>
    %288 = arith.mulf %287, %286 : vector<4x16xf32>
    %289 = arith.addf %283, %288 : vector<4x16xf32>
    %c34 = arith.constant 34 : index
    %290 = memref.load %arg7[%c34] : memref<99xf32, #tpu.memory_space<smem>>
    %c0_148 = arith.constant 0 : index
    %c4_149 = arith.constant 4 : index
    %c6_150 = arith.constant 6 : index
    %291 = vector.load %arg12[%c0_148, %c4_149, %c6_150] : memref<2x10x22xf32, #tpu.memory_space<vmem>>, vector<1x4x16xf32>
    %292 = vector.shape_cast %291 : vector<1x4x16xf32> to vector<4x16xf32>
    %293 = vector.broadcast %290 : f32 to vector<4x16xf32>
    %294 = arith.mulf %293, %292 : vector<4x16xf32>
    %295 = arith.addf %289, %294 : vector<4x16xf32>
    %c35 = arith.constant 35 : index
    %296 = memref.load %arg7[%c35] : memref<99xf32, #tpu.memory_space<smem>>
    %c0_151 = arith.constant 0 : index
    %c5_152 = arith.constant 5 : index
    %c0_153 = arith.constant 0 : index
    %297 = vector.load %arg12[%c0_151, %c5_152, %c0_153] : memref<2x10x22xf32, #tpu.memory_space<vmem>>, vector<1x4x16xf32>
    %298 = vector.shape_cast %297 : vector<1x4x16xf32> to vector<4x16xf32>
    %299 = vector.broadcast %296 : f32 to vector<4x16xf32>
    %300 = arith.mulf %299, %298 : vector<4x16xf32>
    %301 = arith.addf %295, %300 : vector<4x16xf32>
    %c36 = arith.constant 36 : index
    %302 = memref.load %arg7[%c36] : memref<99xf32, #tpu.memory_space<smem>>
    %c0_154 = arith.constant 0 : index
    %c5_155 = arith.constant 5 : index
    %c1_156 = arith.constant 1 : index
    %303 = vector.load %arg12[%c0_154, %c5_155, %c1_156] : memref<2x10x22xf32, #tpu.memory_space<vmem>>, vector<1x4x16xf32>
    %304 = vector.shape_cast %303 : vector<1x4x16xf32> to vector<4x16xf32>
    %305 = vector.broadcast %302 : f32 to vector<4x16xf32>
    %306 = arith.mulf %305, %304 : vector<4x16xf32>
    %307 = arith.addf %301, %306 : vector<4x16xf32>
    %c37 = arith.constant 37 : index
    %308 = memref.load %arg7[%c37] : memref<99xf32, #tpu.memory_space<smem>>
    %c0_157 = arith.constant 0 : index
    %c5_158 = arith.constant 5 : index
    %c2_159 = arith.constant 2 : index
    %309 = vector.load %arg12[%c0_157, %c5_158, %c2_159] : memref<2x10x22xf32, #tpu.memory_space<vmem>>, vector<1x4x16xf32>
    %310 = vector.shape_cast %309 : vector<1x4x16xf32> to vector<4x16xf32>
    %311 = vector.broadcast %308 : f32 to vector<4x16xf32>
    %312 = arith.mulf %311, %310 : vector<4x16xf32>
    %313 = arith.addf %307, %312 : vector<4x16xf32>
    %c38 = arith.constant 38 : index
    %314 = memref.load %arg7[%c38] : memref<99xf32, #tpu.memory_space<smem>>
    %c0_160 = arith.constant 0 : index
    %c5_161 = arith.constant 5 : index
    %c3_162 = arith.constant 3 : index
    %315 = vector.load %arg12[%c0_160, %c5_161, %c3_162] : memref<2x10x22xf32, #tpu.memory_space<vmem>>, vector<1x4x16xf32>
    %316 = vector.shape_cast %315 : vector<1x4x16xf32> to vector<4x16xf32>
    %317 = vector.broadcast %314 : f32 to vector<4x16xf32>
    %318 = arith.mulf %317, %316 : vector<4x16xf32>
    %319 = arith.addf %313, %318 : vector<4x16xf32>
    %c39 = arith.constant 39 : index
    %320 = memref.load %arg7[%c39] : memref<99xf32, #tpu.memory_space<smem>>
    %c0_163 = arith.constant 0 : index
    %c5_164 = arith.constant 5 : index
    %c4_165 = arith.constant 4 : index
    %321 = vector.load %arg12[%c0_163, %c5_164, %c4_165] : memref<2x10x22xf32, #tpu.memory_space<vmem>>, vector<1x4x16xf32>
    %322 = vector.shape_cast %321 : vector<1x4x16xf32> to vector<4x16xf32>
    %323 = vector.broadcast %320 : f32 to vector<4x16xf32>
    %324 = arith.mulf %323, %322 : vector<4x16xf32>
    %325 = arith.addf %319, %324 : vector<4x16xf32>
    %c40 = arith.constant 40 : index
    %326 = memref.load %arg7[%c40] : memref<99xf32, #tpu.memory_space<smem>>
    %c0_166 = arith.constant 0 : index
    %c5_167 = arith.constant 5 : index
    %c5_168 = arith.constant 5 : index
    %327 = vector.load %arg12[%c0_166, %c5_167, %c5_168] : memref<2x10x22xf32, #tpu.memory_space<vmem>>, vector<1x4x16xf32>
    %328 = vector.shape_cast %327 : vector<1x4x16xf32> to vector<4x16xf32>
    %329 = vector.broadcast %326 : f32 to vector<4x16xf32>
    %330 = arith.mulf %329, %328 : vector<4x16xf32>
    %331 = arith.addf %325, %330 : vector<4x16xf32>
    %c41 = arith.constant 41 : index
    %332 = memref.load %arg7[%c41] : memref<99xf32, #tpu.memory_space<smem>>
    %c0_169 = arith.constant 0 : index
    %c5_170 = arith.constant 5 : index
    %c6_171 = arith.constant 6 : index
    %333 = vector.load %arg12[%c0_169, %c5_170, %c6_171] : memref<2x10x22xf32, #tpu.memory_space<vmem>>, vector<1x4x16xf32>
    %334 = vector.shape_cast %333 : vector<1x4x16xf32> to vector<4x16xf32>
    %335 = vector.broadcast %332 : f32 to vector<4x16xf32>
    %336 = arith.mulf %335, %334 : vector<4x16xf32>
    %337 = arith.addf %331, %336 : vector<4x16xf32>
    %c42 = arith.constant 42 : index
    %338 = memref.load %arg7[%c42] : memref<99xf32, #tpu.memory_space<smem>>
    %c0_172 = arith.constant 0 : index
    %c6_173 = arith.constant 6 : index
    %c0_174 = arith.constant 0 : index
    %339 = vector.load %arg12[%c0_172, %c6_173, %c0_174] : memref<2x10x22xf32, #tpu.memory_space<vmem>>, vector<1x4x16xf32>
    %340 = vector.shape_cast %339 : vector<1x4x16xf32> to vector<4x16xf32>
    %341 = vector.broadcast %338 : f32 to vector<4x16xf32>
    %342 = arith.mulf %341, %340 : vector<4x16xf32>
    %343 = arith.addf %337, %342 : vector<4x16xf32>
    %c43 = arith.constant 43 : index
    %344 = memref.load %arg7[%c43] : memref<99xf32, #tpu.memory_space<smem>>
    %c0_175 = arith.constant 0 : index
    %c6_176 = arith.constant 6 : index
    %c1_177 = arith.constant 1 : index
    %345 = vector.load %arg12[%c0_175, %c6_176, %c1_177] : memref<2x10x22xf32, #tpu.memory_space<vmem>>, vector<1x4x16xf32>
    %346 = vector.shape_cast %345 : vector<1x4x16xf32> to vector<4x16xf32>
    %347 = vector.broadcast %344 : f32 to vector<4x16xf32>
    %348 = arith.mulf %347, %346 : vector<4x16xf32>
    %349 = arith.addf %343, %348 : vector<4x16xf32>
    %c44 = arith.constant 44 : index
    %350 = memref.load %arg7[%c44] : memref<99xf32, #tpu.memory_space<smem>>
    %c0_178 = arith.constant 0 : index
    %c6_179 = arith.constant 6 : index
    %c2_180 = arith.constant 2 : index
    %351 = vector.load %arg12[%c0_178, %c6_179, %c2_180] : memref<2x10x22xf32, #tpu.memory_space<vmem>>, vector<1x4x16xf32>
    %352 = vector.shape_cast %351 : vector<1x4x16xf32> to vector<4x16xf32>
    %353 = vector.broadcast %350 : f32 to vector<4x16xf32>
    %354 = arith.mulf %353, %352 : vector<4x16xf32>
    %355 = arith.addf %349, %354 : vector<4x16xf32>
    %c45 = arith.constant 45 : index
    %356 = memref.load %arg7[%c45] : memref<99xf32, #tpu.memory_space<smem>>
    %c0_181 = arith.constant 0 : index
    %c6_182 = arith.constant 6 : index
    %c3_183 = arith.constant 3 : index
    %357 = vector.load %arg12[%c0_181, %c6_182, %c3_183] : memref<2x10x22xf32, #tpu.memory_space<vmem>>, vector<1x4x16xf32>
    %358 = vector.shape_cast %357 : vector<1x4x16xf32> to vector<4x16xf32>
    %359 = vector.broadcast %356 : f32 to vector<4x16xf32>
    %360 = arith.mulf %359, %358 : vector<4x16xf32>
    %361 = arith.addf %355, %360 : vector<4x16xf32>
    %c46 = arith.constant 46 : index
    %362 = memref.load %arg7[%c46] : memref<99xf32, #tpu.memory_space<smem>>
    %c0_184 = arith.constant 0 : index
    %c6_185 = arith.constant 6 : index
    %c4_186 = arith.constant 4 : index
    %363 = vector.load %arg12[%c0_184, %c6_185, %c4_186] : memref<2x10x22xf32, #tpu.memory_space<vmem>>, vector<1x4x16xf32>
    %364 = vector.shape_cast %363 : vector<1x4x16xf32> to vector<4x16xf32>
    %365 = vector.broadcast %362 : f32 to vector<4x16xf32>
    %366 = arith.mulf %365, %364 : vector<4x16xf32>
    %367 = arith.addf %361, %366 : vector<4x16xf32>
    %c47 = arith.constant 47 : index
    %368 = memref.load %arg7[%c47] : memref<99xf32, #tpu.memory_space<smem>>
    %c0_187 = arith.constant 0 : index
    %c6_188 = arith.constant 6 : index
    %c5_189 = arith.constant 5 : index
    %369 = vector.load %arg12[%c0_187, %c6_188, %c5_189] : memref<2x10x22xf32, #tpu.memory_space<vmem>>, vector<1x4x16xf32>
    %370 = vector.shape_cast %369 : vector<1x4x16xf32> to vector<4x16xf32>
    %371 = vector.broadcast %368 : f32 to vector<4x16xf32>
    %372 = arith.mulf %371, %370 : vector<4x16xf32>
    %373 = arith.addf %367, %372 : vector<4x16xf32>
    %c48 = arith.constant 48 : index
    %374 = memref.load %arg7[%c48] : memref<99xf32, #tpu.memory_space<smem>>
    %c0_190 = arith.constant 0 : index
    %c6_191 = arith.constant 6 : index
    %c6_192 = arith.constant 6 : index
    %375 = vector.load %arg12[%c0_190, %c6_191, %c6_192] : memref<2x10x22xf32, #tpu.memory_space<vmem>>, vector<1x4x16xf32>
    %376 = vector.shape_cast %375 : vector<1x4x16xf32> to vector<4x16xf32>
    %377 = vector.broadcast %374 : f32 to vector<4x16xf32>
    %378 = arith.mulf %377, %376 : vector<4x16xf32>
    %379 = arith.addf %373, %378 : vector<4x16xf32>
    %c49 = arith.constant 49 : index
    %380 = memref.load %arg7[%c49] : memref<99xf32, #tpu.memory_space<smem>>
    %c1_193 = arith.constant 1 : index
    %c0_194 = arith.constant 0 : index
    %c0_195 = arith.constant 0 : index
    %381 = vector.load %arg12[%c1_193, %c0_194, %c0_195] : memref<2x10x22xf32, #tpu.memory_space<vmem>>, vector<1x4x16xf32>
    %382 = vector.shape_cast %381 : vector<1x4x16xf32> to vector<4x16xf32>
    %383 = vector.broadcast %380 : f32 to vector<4x16xf32>
    %384 = arith.mulf %383, %382 : vector<4x16xf32>
    %385 = arith.addf %379, %384 : vector<4x16xf32>
    %c50 = arith.constant 50 : index
    %386 = memref.load %arg7[%c50] : memref<99xf32, #tpu.memory_space<smem>>
    %c1_196 = arith.constant 1 : index
    %c0_197 = arith.constant 0 : index
    %c1_198 = arith.constant 1 : index
    %387 = vector.load %arg12[%c1_196, %c0_197, %c1_198] : memref<2x10x22xf32, #tpu.memory_space<vmem>>, vector<1x4x16xf32>
    %388 = vector.shape_cast %387 : vector<1x4x16xf32> to vector<4x16xf32>
    %389 = vector.broadcast %386 : f32 to vector<4x16xf32>
    %390 = arith.mulf %389, %388 : vector<4x16xf32>
    %391 = arith.addf %385, %390 : vector<4x16xf32>
    %c51 = arith.constant 51 : index
    %392 = memref.load %arg7[%c51] : memref<99xf32, #tpu.memory_space<smem>>
    %c1_199 = arith.constant 1 : index
    %c0_200 = arith.constant 0 : index
    %c2_201 = arith.constant 2 : index
    %393 = vector.load %arg12[%c1_199, %c0_200, %c2_201] : memref<2x10x22xf32, #tpu.memory_space<vmem>>, vector<1x4x16xf32>
    %394 = vector.shape_cast %393 : vector<1x4x16xf32> to vector<4x16xf32>
    %395 = vector.broadcast %392 : f32 to vector<4x16xf32>
    %396 = arith.mulf %395, %394 : vector<4x16xf32>
    %397 = arith.addf %391, %396 : vector<4x16xf32>
    %c52 = arith.constant 52 : index
    %398 = memref.load %arg7[%c52] : memref<99xf32, #tpu.memory_space<smem>>
    %c1_202 = arith.constant 1 : index
    %c0_203 = arith.constant 0 : index
    %c3_204 = arith.constant 3 : index
    %399 = vector.load %arg12[%c1_202, %c0_203, %c3_204] : memref<2x10x22xf32, #tpu.memory_space<vmem>>, vector<1x4x16xf32>
    %400 = vector.shape_cast %399 : vector<1x4x16xf32> to vector<4x16xf32>
    %401 = vector.broadcast %398 : f32 to vector<4x16xf32>
    %402 = arith.mulf %401, %400 : vector<4x16xf32>
    %403 = arith.addf %397, %402 : vector<4x16xf32>
    %c53 = arith.constant 53 : index
    %404 = memref.load %arg7[%c53] : memref<99xf32, #tpu.memory_space<smem>>
    %c1_205 = arith.constant 1 : index
    %c0_206 = arith.constant 0 : index
    %c4_207 = arith.constant 4 : index
    %405 = vector.load %arg12[%c1_205, %c0_206, %c4_207] : memref<2x10x22xf32, #tpu.memory_space<vmem>>, vector<1x4x16xf32>
    %406 = vector.shape_cast %405 : vector<1x4x16xf32> to vector<4x16xf32>
    %407 = vector.broadcast %404 : f32 to vector<4x16xf32>
    %408 = arith.mulf %407, %406 : vector<4x16xf32>
    %409 = arith.addf %403, %408 : vector<4x16xf32>
    %c54 = arith.constant 54 : index
    %410 = memref.load %arg7[%c54] : memref<99xf32, #tpu.memory_space<smem>>
    %c1_208 = arith.constant 1 : index
    %c0_209 = arith.constant 0 : index
    %c5_210 = arith.constant 5 : index
    %411 = vector.load %arg12[%c1_208, %c0_209, %c5_210] : memref<2x10x22xf32, #tpu.memory_space<vmem>>, vector<1x4x16xf32>
    %412 = vector.shape_cast %411 : vector<1x4x16xf32> to vector<4x16xf32>
    %413 = vector.broadcast %410 : f32 to vector<4x16xf32>
    %414 = arith.mulf %413, %412 : vector<4x16xf32>
    %415 = arith.addf %409, %414 : vector<4x16xf32>
    %c55 = arith.constant 55 : index
    %416 = memref.load %arg7[%c55] : memref<99xf32, #tpu.memory_space<smem>>
    %c1_211 = arith.constant 1 : index
    %c0_212 = arith.constant 0 : index
    %c6_213 = arith.constant 6 : index
    %417 = vector.load %arg12[%c1_211, %c0_212, %c6_213] : memref<2x10x22xf32, #tpu.memory_space<vmem>>, vector<1x4x16xf32>
    %418 = vector.shape_cast %417 : vector<1x4x16xf32> to vector<4x16xf32>
    %419 = vector.broadcast %416 : f32 to vector<4x16xf32>
    %420 = arith.mulf %419, %418 : vector<4x16xf32>
    %421 = arith.addf %415, %420 : vector<4x16xf32>
    %c56 = arith.constant 56 : index
    %422 = memref.load %arg7[%c56] : memref<99xf32, #tpu.memory_space<smem>>
    %c1_214 = arith.constant 1 : index
    %c1_215 = arith.constant 1 : index
    %c0_216 = arith.constant 0 : index
    %423 = vector.load %arg12[%c1_214, %c1_215, %c0_216] : memref<2x10x22xf32, #tpu.memory_space<vmem>>, vector<1x4x16xf32>
    %424 = vector.shape_cast %423 : vector<1x4x16xf32> to vector<4x16xf32>
    %425 = vector.broadcast %422 : f32 to vector<4x16xf32>
    %426 = arith.mulf %425, %424 : vector<4x16xf32>
    %427 = arith.addf %421, %426 : vector<4x16xf32>
    %c57 = arith.constant 57 : index
    %428 = memref.load %arg7[%c57] : memref<99xf32, #tpu.memory_space<smem>>
    %c1_217 = arith.constant 1 : index
    %c1_218 = arith.constant 1 : index
    %c1_219 = arith.constant 1 : index
    %429 = vector.load %arg12[%c1_217, %c1_218, %c1_219] : memref<2x10x22xf32, #tpu.memory_space<vmem>>, vector<1x4x16xf32>
    %430 = vector.shape_cast %429 : vector<1x4x16xf32> to vector<4x16xf32>
    %431 = vector.broadcast %428 : f32 to vector<4x16xf32>
    %432 = arith.mulf %431, %430 : vector<4x16xf32>
    %433 = arith.addf %427, %432 : vector<4x16xf32>
    %c58 = arith.constant 58 : index
    %434 = memref.load %arg7[%c58] : memref<99xf32, #tpu.memory_space<smem>>
    %c1_220 = arith.constant 1 : index
    %c1_221 = arith.constant 1 : index
    %c2_222 = arith.constant 2 : index
    %435 = vector.load %arg12[%c1_220, %c1_221, %c2_222] : memref<2x10x22xf32, #tpu.memory_space<vmem>>, vector<1x4x16xf32>
    %436 = vector.shape_cast %435 : vector<1x4x16xf32> to vector<4x16xf32>
    %437 = vector.broadcast %434 : f32 to vector<4x16xf32>
    %438 = arith.mulf %437, %436 : vector<4x16xf32>
    %439 = arith.addf %433, %438 : vector<4x16xf32>
    %c59 = arith.constant 59 : index
    %440 = memref.load %arg7[%c59] : memref<99xf32, #tpu.memory_space<smem>>
    %c1_223 = arith.constant 1 : index
    %c1_224 = arith.constant 1 : index
    %c3_225 = arith.constant 3 : index
    %441 = vector.load %arg12[%c1_223, %c1_224, %c3_225] : memref<2x10x22xf32, #tpu.memory_space<vmem>>, vector<1x4x16xf32>
    %442 = vector.shape_cast %441 : vector<1x4x16xf32> to vector<4x16xf32>
    %443 = vector.broadcast %440 : f32 to vector<4x16xf32>
    %444 = arith.mulf %443, %442 : vector<4x16xf32>
    %445 = arith.addf %439, %444 : vector<4x16xf32>
    %c60 = arith.constant 60 : index
    %446 = memref.load %arg7[%c60] : memref<99xf32, #tpu.memory_space<smem>>
    %c1_226 = arith.constant 1 : index
    %c1_227 = arith.constant 1 : index
    %c4_228 = arith.constant 4 : index
    %447 = vector.load %arg12[%c1_226, %c1_227, %c4_228] : memref<2x10x22xf32, #tpu.memory_space<vmem>>, vector<1x4x16xf32>
    %448 = vector.shape_cast %447 : vector<1x4x16xf32> to vector<4x16xf32>
    %449 = vector.broadcast %446 : f32 to vector<4x16xf32>
    %450 = arith.mulf %449, %448 : vector<4x16xf32>
    %451 = arith.addf %445, %450 : vector<4x16xf32>
    %c61 = arith.constant 61 : index
    %452 = memref.load %arg7[%c61] : memref<99xf32, #tpu.memory_space<smem>>
    %c1_229 = arith.constant 1 : index
    %c1_230 = arith.constant 1 : index
    %c5_231 = arith.constant 5 : index
    %453 = vector.load %arg12[%c1_229, %c1_230, %c5_231] : memref<2x10x22xf32, #tpu.memory_space<vmem>>, vector<1x4x16xf32>
    %454 = vector.shape_cast %453 : vector<1x4x16xf32> to vector<4x16xf32>
    %455 = vector.broadcast %452 : f32 to vector<4x16xf32>
    %456 = arith.mulf %455, %454 : vector<4x16xf32>
    %457 = arith.addf %451, %456 : vector<4x16xf32>
    %c62 = arith.constant 62 : index
    %458 = memref.load %arg7[%c62] : memref<99xf32, #tpu.memory_space<smem>>
    %c1_232 = arith.constant 1 : index
    %c1_233 = arith.constant 1 : index
    %c6_234 = arith.constant 6 : index
    %459 = vector.load %arg12[%c1_232, %c1_233, %c6_234] : memref<2x10x22xf32, #tpu.memory_space<vmem>>, vector<1x4x16xf32>
    %460 = vector.shape_cast %459 : vector<1x4x16xf32> to vector<4x16xf32>
    %461 = vector.broadcast %458 : f32 to vector<4x16xf32>
    %462 = arith.mulf %461, %460 : vector<4x16xf32>
    %463 = arith.addf %457, %462 : vector<4x16xf32>
    %c63 = arith.constant 63 : index
    %464 = memref.load %arg7[%c63] : memref<99xf32, #tpu.memory_space<smem>>
    %c1_235 = arith.constant 1 : index
    %c2_236 = arith.constant 2 : index
    %c0_237 = arith.constant 0 : index
    %465 = vector.load %arg12[%c1_235, %c2_236, %c0_237] : memref<2x10x22xf32, #tpu.memory_space<vmem>>, vector<1x4x16xf32>
    %466 = vector.shape_cast %465 : vector<1x4x16xf32> to vector<4x16xf32>
    %467 = vector.broadcast %464 : f32 to vector<4x16xf32>
    %468 = arith.mulf %467, %466 : vector<4x16xf32>
    %469 = arith.addf %463, %468 : vector<4x16xf32>
    %c64 = arith.constant 64 : index
    %470 = memref.load %arg7[%c64] : memref<99xf32, #tpu.memory_space<smem>>
    %c1_238 = arith.constant 1 : index
    %c2_239 = arith.constant 2 : index
    %c1_240 = arith.constant 1 : index
    %471 = vector.load %arg12[%c1_238, %c2_239, %c1_240] : memref<2x10x22xf32, #tpu.memory_space<vmem>>, vector<1x4x16xf32>
    %472 = vector.shape_cast %471 : vector<1x4x16xf32> to vector<4x16xf32>
    %473 = vector.broadcast %470 : f32 to vector<4x16xf32>
    %474 = arith.mulf %473, %472 : vector<4x16xf32>
    %475 = arith.addf %469, %474 : vector<4x16xf32>
    %c65 = arith.constant 65 : index
    %476 = memref.load %arg7[%c65] : memref<99xf32, #tpu.memory_space<smem>>
    %c1_241 = arith.constant 1 : index
    %c2_242 = arith.constant 2 : index
    %c2_243 = arith.constant 2 : index
    %477 = vector.load %arg12[%c1_241, %c2_242, %c2_243] : memref<2x10x22xf32, #tpu.memory_space<vmem>>, vector<1x4x16xf32>
    %478 = vector.shape_cast %477 : vector<1x4x16xf32> to vector<4x16xf32>
    %479 = vector.broadcast %476 : f32 to vector<4x16xf32>
    %480 = arith.mulf %479, %478 : vector<4x16xf32>
    %481 = arith.addf %475, %480 : vector<4x16xf32>
    %c66 = arith.constant 66 : index
    %482 = memref.load %arg7[%c66] : memref<99xf32, #tpu.memory_space<smem>>
    %c1_244 = arith.constant 1 : index
    %c2_245 = arith.constant 2 : index
    %c3_246 = arith.constant 3 : index
    %483 = vector.load %arg12[%c1_244, %c2_245, %c3_246] : memref<2x10x22xf32, #tpu.memory_space<vmem>>, vector<1x4x16xf32>
    %484 = vector.shape_cast %483 : vector<1x4x16xf32> to vector<4x16xf32>
    %485 = vector.broadcast %482 : f32 to vector<4x16xf32>
    %486 = arith.mulf %485, %484 : vector<4x16xf32>
    %487 = arith.addf %481, %486 : vector<4x16xf32>
    %c67 = arith.constant 67 : index
    %488 = memref.load %arg7[%c67] : memref<99xf32, #tpu.memory_space<smem>>
    %c1_247 = arith.constant 1 : index
    %c2_248 = arith.constant 2 : index
    %c4_249 = arith.constant 4 : index
    %489 = vector.load %arg12[%c1_247, %c2_248, %c4_249] : memref<2x10x22xf32, #tpu.memory_space<vmem>>, vector<1x4x16xf32>
    %490 = vector.shape_cast %489 : vector<1x4x16xf32> to vector<4x16xf32>
    %491 = vector.broadcast %488 : f32 to vector<4x16xf32>
    %492 = arith.mulf %491, %490 : vector<4x16xf32>
    %493 = arith.addf %487, %492 : vector<4x16xf32>
    %c68 = arith.constant 68 : index
    %494 = memref.load %arg7[%c68] : memref<99xf32, #tpu.memory_space<smem>>
    %c1_250 = arith.constant 1 : index
    %c2_251 = arith.constant 2 : index
    %c5_252 = arith.constant 5 : index
    %495 = vector.load %arg12[%c1_250, %c2_251, %c5_252] : memref<2x10x22xf32, #tpu.memory_space<vmem>>, vector<1x4x16xf32>
    %496 = vector.shape_cast %495 : vector<1x4x16xf32> to vector<4x16xf32>
    %497 = vector.broadcast %494 : f32 to vector<4x16xf32>
    %498 = arith.mulf %497, %496 : vector<4x16xf32>
    %499 = arith.addf %493, %498 : vector<4x16xf32>
    %c69 = arith.constant 69 : index
    %500 = memref.load %arg7[%c69] : memref<99xf32, #tpu.memory_space<smem>>
    %c1_253 = arith.constant 1 : index
    %c2_254 = arith.constant 2 : index
    %c6_255 = arith.constant 6 : index
    %501 = vector.load %arg12[%c1_253, %c2_254, %c6_255] : memref<2x10x22xf32, #tpu.memory_space<vmem>>, vector<1x4x16xf32>
    %502 = vector.shape_cast %501 : vector<1x4x16xf32> to vector<4x16xf32>
    %503 = vector.broadcast %500 : f32 to vector<4x16xf32>
    %504 = arith.mulf %503, %502 : vector<4x16xf32>
    %505 = arith.addf %499, %504 : vector<4x16xf32>
    %c70 = arith.constant 70 : index
    %506 = memref.load %arg7[%c70] : memref<99xf32, #tpu.memory_space<smem>>
    %c1_256 = arith.constant 1 : index
    %c3_257 = arith.constant 3 : index
    %c0_258 = arith.constant 0 : index
    %507 = vector.load %arg12[%c1_256, %c3_257, %c0_258] : memref<2x10x22xf32, #tpu.memory_space<vmem>>, vector<1x4x16xf32>
    %508 = vector.shape_cast %507 : vector<1x4x16xf32> to vector<4x16xf32>
    %509 = vector.broadcast %506 : f32 to vector<4x16xf32>
    %510 = arith.mulf %509, %508 : vector<4x16xf32>
    %511 = arith.addf %505, %510 : vector<4x16xf32>
    %c71 = arith.constant 71 : index
    %512 = memref.load %arg7[%c71] : memref<99xf32, #tpu.memory_space<smem>>
    %c1_259 = arith.constant 1 : index
    %c3_260 = arith.constant 3 : index
    %c1_261 = arith.constant 1 : index
    %513 = vector.load %arg12[%c1_259, %c3_260, %c1_261] : memref<2x10x22xf32, #tpu.memory_space<vmem>>, vector<1x4x16xf32>
    %514 = vector.shape_cast %513 : vector<1x4x16xf32> to vector<4x16xf32>
    %515 = vector.broadcast %512 : f32 to vector<4x16xf32>
    %516 = arith.mulf %515, %514 : vector<4x16xf32>
    %517 = arith.addf %511, %516 : vector<4x16xf32>
    %c72 = arith.constant 72 : index
    %518 = memref.load %arg7[%c72] : memref<99xf32, #tpu.memory_space<smem>>
    %c1_262 = arith.constant 1 : index
    %c3_263 = arith.constant 3 : index
    %c2_264 = arith.constant 2 : index
    %519 = vector.load %arg12[%c1_262, %c3_263, %c2_264] : memref<2x10x22xf32, #tpu.memory_space<vmem>>, vector<1x4x16xf32>
    %520 = vector.shape_cast %519 : vector<1x4x16xf32> to vector<4x16xf32>
    %521 = vector.broadcast %518 : f32 to vector<4x16xf32>
    %522 = arith.mulf %521, %520 : vector<4x16xf32>
    %523 = arith.addf %517, %522 : vector<4x16xf32>
    %c73 = arith.constant 73 : index
    %524 = memref.load %arg7[%c73] : memref<99xf32, #tpu.memory_space<smem>>
    %c1_265 = arith.constant 1 : index
    %c3_266 = arith.constant 3 : index
    %c3_267 = arith.constant 3 : index
    %525 = vector.load %arg12[%c1_265, %c3_266, %c3_267] : memref<2x10x22xf32, #tpu.memory_space<vmem>>, vector<1x4x16xf32>
    %526 = vector.shape_cast %525 : vector<1x4x16xf32> to vector<4x16xf32>
    %527 = vector.broadcast %524 : f32 to vector<4x16xf32>
    %528 = arith.mulf %527, %526 : vector<4x16xf32>
    %529 = arith.addf %523, %528 : vector<4x16xf32>
    %c74 = arith.constant 74 : index
    %530 = memref.load %arg7[%c74] : memref<99xf32, #tpu.memory_space<smem>>
    %c1_268 = arith.constant 1 : index
    %c3_269 = arith.constant 3 : index
    %c4_270 = arith.constant 4 : index
    %531 = vector.load %arg12[%c1_268, %c3_269, %c4_270] : memref<2x10x22xf32, #tpu.memory_space<vmem>>, vector<1x4x16xf32>
    %532 = vector.shape_cast %531 : vector<1x4x16xf32> to vector<4x16xf32>
    %533 = vector.broadcast %530 : f32 to vector<4x16xf32>
    %534 = arith.mulf %533, %532 : vector<4x16xf32>
    %535 = arith.addf %529, %534 : vector<4x16xf32>
    %c75 = arith.constant 75 : index
    %536 = memref.load %arg7[%c75] : memref<99xf32, #tpu.memory_space<smem>>
    %c1_271 = arith.constant 1 : index
    %c3_272 = arith.constant 3 : index
    %c5_273 = arith.constant 5 : index
    %537 = vector.load %arg12[%c1_271, %c3_272, %c5_273] : memref<2x10x22xf32, #tpu.memory_space<vmem>>, vector<1x4x16xf32>
    %538 = vector.shape_cast %537 : vector<1x4x16xf32> to vector<4x16xf32>
    %539 = vector.broadcast %536 : f32 to vector<4x16xf32>
    %540 = arith.mulf %539, %538 : vector<4x16xf32>
    %541 = arith.addf %535, %540 : vector<4x16xf32>
    %c76 = arith.constant 76 : index
    %542 = memref.load %arg7[%c76] : memref<99xf32, #tpu.memory_space<smem>>
    %c1_274 = arith.constant 1 : index
    %c3_275 = arith.constant 3 : index
    %c6_276 = arith.constant 6 : index
    %543 = vector.load %arg12[%c1_274, %c3_275, %c6_276] : memref<2x10x22xf32, #tpu.memory_space<vmem>>, vector<1x4x16xf32>
    %544 = vector.shape_cast %543 : vector<1x4x16xf32> to vector<4x16xf32>
    %545 = vector.broadcast %542 : f32 to vector<4x16xf32>
    %546 = arith.mulf %545, %544 : vector<4x16xf32>
    %547 = arith.addf %541, %546 : vector<4x16xf32>
    %c77 = arith.constant 77 : index
    %548 = memref.load %arg7[%c77] : memref<99xf32, #tpu.memory_space<smem>>
    %c1_277 = arith.constant 1 : index
    %c4_278 = arith.constant 4 : index
    %c0_279 = arith.constant 0 : index
    %549 = vector.load %arg12[%c1_277, %c4_278, %c0_279] : memref<2x10x22xf32, #tpu.memory_space<vmem>>, vector<1x4x16xf32>
    %550 = vector.shape_cast %549 : vector<1x4x16xf32> to vector<4x16xf32>
    %551 = vector.broadcast %548 : f32 to vector<4x16xf32>
    %552 = arith.mulf %551, %550 : vector<4x16xf32>
    %553 = arith.addf %547, %552 : vector<4x16xf32>
    %c78 = arith.constant 78 : index
    %554 = memref.load %arg7[%c78] : memref<99xf32, #tpu.memory_space<smem>>
    %c1_280 = arith.constant 1 : index
    %c4_281 = arith.constant 4 : index
    %c1_282 = arith.constant 1 : index
    %555 = vector.load %arg12[%c1_280, %c4_281, %c1_282] : memref<2x10x22xf32, #tpu.memory_space<vmem>>, vector<1x4x16xf32>
    %556 = vector.shape_cast %555 : vector<1x4x16xf32> to vector<4x16xf32>
    %557 = vector.broadcast %554 : f32 to vector<4x16xf32>
    %558 = arith.mulf %557, %556 : vector<4x16xf32>
    %559 = arith.addf %553, %558 : vector<4x16xf32>
    %c79 = arith.constant 79 : index
    %560 = memref.load %arg7[%c79] : memref<99xf32, #tpu.memory_space<smem>>
    %c1_283 = arith.constant 1 : index
    %c4_284 = arith.constant 4 : index
    %c2_285 = arith.constant 2 : index
    %561 = vector.load %arg12[%c1_283, %c4_284, %c2_285] : memref<2x10x22xf32, #tpu.memory_space<vmem>>, vector<1x4x16xf32>
    %562 = vector.shape_cast %561 : vector<1x4x16xf32> to vector<4x16xf32>
    %563 = vector.broadcast %560 : f32 to vector<4x16xf32>
    %564 = arith.mulf %563, %562 : vector<4x16xf32>
    %565 = arith.addf %559, %564 : vector<4x16xf32>
    %c80 = arith.constant 80 : index
    %566 = memref.load %arg7[%c80] : memref<99xf32, #tpu.memory_space<smem>>
    %c1_286 = arith.constant 1 : index
    %c4_287 = arith.constant 4 : index
    %c3_288 = arith.constant 3 : index
    %567 = vector.load %arg12[%c1_286, %c4_287, %c3_288] : memref<2x10x22xf32, #tpu.memory_space<vmem>>, vector<1x4x16xf32>
    %568 = vector.shape_cast %567 : vector<1x4x16xf32> to vector<4x16xf32>
    %569 = vector.broadcast %566 : f32 to vector<4x16xf32>
    %570 = arith.mulf %569, %568 : vector<4x16xf32>
    %571 = arith.addf %565, %570 : vector<4x16xf32>
    %c81 = arith.constant 81 : index
    %572 = memref.load %arg7[%c81] : memref<99xf32, #tpu.memory_space<smem>>
    %c1_289 = arith.constant 1 : index
    %c4_290 = arith.constant 4 : index
    %c4_291 = arith.constant 4 : index
    %573 = vector.load %arg12[%c1_289, %c4_290, %c4_291] : memref<2x10x22xf32, #tpu.memory_space<vmem>>, vector<1x4x16xf32>
    %574 = vector.shape_cast %573 : vector<1x4x16xf32> to vector<4x16xf32>
    %575 = vector.broadcast %572 : f32 to vector<4x16xf32>
    %576 = arith.mulf %575, %574 : vector<4x16xf32>
    %577 = arith.addf %571, %576 : vector<4x16xf32>
    %c82 = arith.constant 82 : index
    %578 = memref.load %arg7[%c82] : memref<99xf32, #tpu.memory_space<smem>>
    %c1_292 = arith.constant 1 : index
    %c4_293 = arith.constant 4 : index
    %c5_294 = arith.constant 5 : index
    %579 = vector.load %arg12[%c1_292, %c4_293, %c5_294] : memref<2x10x22xf32, #tpu.memory_space<vmem>>, vector<1x4x16xf32>
    %580 = vector.shape_cast %579 : vector<1x4x16xf32> to vector<4x16xf32>
    %581 = vector.broadcast %578 : f32 to vector<4x16xf32>
    %582 = arith.mulf %581, %580 : vector<4x16xf32>
    %583 = arith.addf %577, %582 : vector<4x16xf32>
    %c83 = arith.constant 83 : index
    %584 = memref.load %arg7[%c83] : memref<99xf32, #tpu.memory_space<smem>>
    %c1_295 = arith.constant 1 : index
    %c4_296 = arith.constant 4 : index
    %c6_297 = arith.constant 6 : index
    %585 = vector.load %arg12[%c1_295, %c4_296, %c6_297] : memref<2x10x22xf32, #tpu.memory_space<vmem>>, vector<1x4x16xf32>
    %586 = vector.shape_cast %585 : vector<1x4x16xf32> to vector<4x16xf32>
    %587 = vector.broadcast %584 : f32 to vector<4x16xf32>
    %588 = arith.mulf %587, %586 : vector<4x16xf32>
    %589 = arith.addf %583, %588 : vector<4x16xf32>
    %c84 = arith.constant 84 : index
    %590 = memref.load %arg7[%c84] : memref<99xf32, #tpu.memory_space<smem>>
    %c1_298 = arith.constant 1 : index
    %c5_299 = arith.constant 5 : index
    %c0_300 = arith.constant 0 : index
    %591 = vector.load %arg12[%c1_298, %c5_299, %c0_300] : memref<2x10x22xf32, #tpu.memory_space<vmem>>, vector<1x4x16xf32>
    %592 = vector.shape_cast %591 : vector<1x4x16xf32> to vector<4x16xf32>
    %593 = vector.broadcast %590 : f32 to vector<4x16xf32>
    %594 = arith.mulf %593, %592 : vector<4x16xf32>
    %595 = arith.addf %589, %594 : vector<4x16xf32>
    %c85 = arith.constant 85 : index
    %596 = memref.load %arg7[%c85] : memref<99xf32, #tpu.memory_space<smem>>
    %c1_301 = arith.constant 1 : index
    %c5_302 = arith.constant 5 : index
    %c1_303 = arith.constant 1 : index
    %597 = vector.load %arg12[%c1_301, %c5_302, %c1_303] : memref<2x10x22xf32, #tpu.memory_space<vmem>>, vector<1x4x16xf32>
    %598 = vector.shape_cast %597 : vector<1x4x16xf32> to vector<4x16xf32>
    %599 = vector.broadcast %596 : f32 to vector<4x16xf32>
    %600 = arith.mulf %599, %598 : vector<4x16xf32>
    %601 = arith.addf %595, %600 : vector<4x16xf32>
    %c86 = arith.constant 86 : index
    %602 = memref.load %arg7[%c86] : memref<99xf32, #tpu.memory_space<smem>>
    %c1_304 = arith.constant 1 : index
    %c5_305 = arith.constant 5 : index
    %c2_306 = arith.constant 2 : index
    %603 = vector.load %arg12[%c1_304, %c5_305, %c2_306] : memref<2x10x22xf32, #tpu.memory_space<vmem>>, vector<1x4x16xf32>
    %604 = vector.shape_cast %603 : vector<1x4x16xf32> to vector<4x16xf32>
    %605 = vector.broadcast %602 : f32 to vector<4x16xf32>
    %606 = arith.mulf %605, %604 : vector<4x16xf32>
    %607 = arith.addf %601, %606 : vector<4x16xf32>
    %c87 = arith.constant 87 : index
    %608 = memref.load %arg7[%c87] : memref<99xf32, #tpu.memory_space<smem>>
    %c1_307 = arith.constant 1 : index
    %c5_308 = arith.constant 5 : index
    %c3_309 = arith.constant 3 : index
    %609 = vector.load %arg12[%c1_307, %c5_308, %c3_309] : memref<2x10x22xf32, #tpu.memory_space<vmem>>, vector<1x4x16xf32>
    %610 = vector.shape_cast %609 : vector<1x4x16xf32> to vector<4x16xf32>
    %611 = vector.broadcast %608 : f32 to vector<4x16xf32>
    %612 = arith.mulf %611, %610 : vector<4x16xf32>
    %613 = arith.addf %607, %612 : vector<4x16xf32>
    %c88 = arith.constant 88 : index
    %614 = memref.load %arg7[%c88] : memref<99xf32, #tpu.memory_space<smem>>
    %c1_310 = arith.constant 1 : index
    %c5_311 = arith.constant 5 : index
    %c4_312 = arith.constant 4 : index
    %615 = vector.load %arg12[%c1_310, %c5_311, %c4_312] : memref<2x10x22xf32, #tpu.memory_space<vmem>>, vector<1x4x16xf32>
    %616 = vector.shape_cast %615 : vector<1x4x16xf32> to vector<4x16xf32>
    %617 = vector.broadcast %614 : f32 to vector<4x16xf32>
    %618 = arith.mulf %617, %616 : vector<4x16xf32>
    %619 = arith.addf %613, %618 : vector<4x16xf32>
    %c89 = arith.constant 89 : index
    %620 = memref.load %arg7[%c89] : memref<99xf32, #tpu.memory_space<smem>>
    %c1_313 = arith.constant 1 : index
    %c5_314 = arith.constant 5 : index
    %c5_315 = arith.constant 5 : index
    %621 = vector.load %arg12[%c1_313, %c5_314, %c5_315] : memref<2x10x22xf32, #tpu.memory_space<vmem>>, vector<1x4x16xf32>
    %622 = vector.shape_cast %621 : vector<1x4x16xf32> to vector<4x16xf32>
    %623 = vector.broadcast %620 : f32 to vector<4x16xf32>
    %624 = arith.mulf %623, %622 : vector<4x16xf32>
    %625 = arith.addf %619, %624 : vector<4x16xf32>
    %c90 = arith.constant 90 : index
    %626 = memref.load %arg7[%c90] : memref<99xf32, #tpu.memory_space<smem>>
    %c1_316 = arith.constant 1 : index
    %c5_317 = arith.constant 5 : index
    %c6_318 = arith.constant 6 : index
    %627 = vector.load %arg12[%c1_316, %c5_317, %c6_318] : memref<2x10x22xf32, #tpu.memory_space<vmem>>, vector<1x4x16xf32>
    %628 = vector.shape_cast %627 : vector<1x4x16xf32> to vector<4x16xf32>
    %629 = vector.broadcast %626 : f32 to vector<4x16xf32>
    %630 = arith.mulf %629, %628 : vector<4x16xf32>
    %631 = arith.addf %625, %630 : vector<4x16xf32>
    %c91 = arith.constant 91 : index
    %632 = memref.load %arg7[%c91] : memref<99xf32, #tpu.memory_space<smem>>
    %c1_319 = arith.constant 1 : index
    %c6_320 = arith.constant 6 : index
    %c0_321 = arith.constant 0 : index
    %633 = vector.load %arg12[%c1_319, %c6_320, %c0_321] : memref<2x10x22xf32, #tpu.memory_space<vmem>>, vector<1x4x16xf32>
    %634 = vector.shape_cast %633 : vector<1x4x16xf32> to vector<4x16xf32>
    %635 = vector.broadcast %632 : f32 to vector<4x16xf32>
    %636 = arith.mulf %635, %634 : vector<4x16xf32>
    %637 = arith.addf %631, %636 : vector<4x16xf32>
    %c92 = arith.constant 92 : index
    %638 = memref.load %arg7[%c92] : memref<99xf32, #tpu.memory_space<smem>>
    %c1_322 = arith.constant 1 : index
    %c6_323 = arith.constant 6 : index
    %c1_324 = arith.constant 1 : index
    %639 = vector.load %arg12[%c1_322, %c6_323, %c1_324] : memref<2x10x22xf32, #tpu.memory_space<vmem>>, vector<1x4x16xf32>
    %640 = vector.shape_cast %639 : vector<1x4x16xf32> to vector<4x16xf32>
    %641 = vector.broadcast %638 : f32 to vector<4x16xf32>
    %642 = arith.mulf %641, %640 : vector<4x16xf32>
    %643 = arith.addf %637, %642 : vector<4x16xf32>
    %c93 = arith.constant 93 : index
    %644 = memref.load %arg7[%c93] : memref<99xf32, #tpu.memory_space<smem>>
    %c1_325 = arith.constant 1 : index
    %c6_326 = arith.constant 6 : index
    %c2_327 = arith.constant 2 : index
    %645 = vector.load %arg12[%c1_325, %c6_326, %c2_327] : memref<2x10x22xf32, #tpu.memory_space<vmem>>, vector<1x4x16xf32>
    %646 = vector.shape_cast %645 : vector<1x4x16xf32> to vector<4x16xf32>
    %647 = vector.broadcast %644 : f32 to vector<4x16xf32>
    %648 = arith.mulf %647, %646 : vector<4x16xf32>
    %649 = arith.addf %643, %648 : vector<4x16xf32>
    %c94 = arith.constant 94 : index
    %650 = memref.load %arg7[%c94] : memref<99xf32, #tpu.memory_space<smem>>
    %c1_328 = arith.constant 1 : index
    %c6_329 = arith.constant 6 : index
    %c3_330 = arith.constant 3 : index
    %651 = vector.load %arg12[%c1_328, %c6_329, %c3_330] : memref<2x10x22xf32, #tpu.memory_space<vmem>>, vector<1x4x16xf32>
    %652 = vector.shape_cast %651 : vector<1x4x16xf32> to vector<4x16xf32>
    %653 = vector.broadcast %650 : f32 to vector<4x16xf32>
    %654 = arith.mulf %653, %652 : vector<4x16xf32>
    %655 = arith.addf %649, %654 : vector<4x16xf32>
    %c95 = arith.constant 95 : index
    %656 = memref.load %arg7[%c95] : memref<99xf32, #tpu.memory_space<smem>>
    %c1_331 = arith.constant 1 : index
    %c6_332 = arith.constant 6 : index
    %c4_333 = arith.constant 4 : index
    %657 = vector.load %arg12[%c1_331, %c6_332, %c4_333] : memref<2x10x22xf32, #tpu.memory_space<vmem>>, vector<1x4x16xf32>
    %658 = vector.shape_cast %657 : vector<1x4x16xf32> to vector<4x16xf32>
    %659 = vector.broadcast %656 : f32 to vector<4x16xf32>
    %660 = arith.mulf %659, %658 : vector<4x16xf32>
    %661 = arith.addf %655, %660 : vector<4x16xf32>
    %c96 = arith.constant 96 : index
    %662 = memref.load %arg7[%c96] : memref<99xf32, #tpu.memory_space<smem>>
    %c1_334 = arith.constant 1 : index
    %c6_335 = arith.constant 6 : index
    %c5_336 = arith.constant 5 : index
    %663 = vector.load %arg12[%c1_334, %c6_335, %c5_336] : memref<2x10x22xf32, #tpu.memory_space<vmem>>, vector<1x4x16xf32>
    %664 = vector.shape_cast %663 : vector<1x4x16xf32> to vector<4x16xf32>
    %665 = vector.broadcast %662 : f32 to vector<4x16xf32>
    %666 = arith.mulf %665, %664 : vector<4x16xf32>
    %667 = arith.addf %661, %666 : vector<4x16xf32>
    %c97 = arith.constant 97 : index
    %668 = memref.load %arg7[%c97] : memref<99xf32, #tpu.memory_space<smem>>
    %c1_337 = arith.constant 1 : index
    %c6_338 = arith.constant 6 : index
    %c6_339 = arith.constant 6 : index
    %669 = vector.load %arg12[%c1_337, %c6_338, %c6_339] : memref<2x10x22xf32, #tpu.memory_space<vmem>>, vector<1x4x16xf32>
    %670 = vector.shape_cast %669 : vector<1x4x16xf32> to vector<4x16xf32>
    %671 = vector.broadcast %668 : f32 to vector<4x16xf32>
    %672 = arith.mulf %671, %670 : vector<4x16xf32>
    %673 = arith.addf %667, %672 : vector<4x16xf32>
    %c98 = arith.constant 98 : index
    %674 = memref.load %arg7[%c98] : memref<99xf32, #tpu.memory_space<smem>>
    %675 = vector.broadcast %674 : f32 to vector<4x16xf32>
    %676 = arith.addf %673, %675 : vector<4x16xf32>
    %cst_340 = arith.constant 0.000000e+00 : f32
    %677 = vector.broadcast %cst_340 : f32 to vector<4x16xf32>
    %678 = arith.subf %677, %676 : vector<4x16xf32>
    %679 = math.exp %678 : vector<4x16xf32>
    %cst_341 = arith.constant 1.000000e+00 : f32
    %680 = vector.broadcast %cst_341 : f32 to vector<4x16xf32>
    %681 = arith.addf %680, %679 : vector<4x16xf32>
    %cst_342 = arith.constant 1.000000e+00 : f32
    %682 = vector.broadcast %cst_342 : f32 to vector<4x16xf32>
    %683 = arith.divf %682, %681 : vector<4x16xf32>
    %684 = arith.mulf %676, %683 : vector<4x16xf32>
    %cst_343 = arith.constant 0.000000e+00 : f32
    %685 = vector.broadcast %cst_343 : f32 to vector<4x16xf32>
    %686 = arith.subf %685, %684 : vector<4x16xf32>
    %687 = math.exp %686 : vector<4x16xf32>
    %cst_344 = arith.constant 1.000000e+00 : f32
    %688 = vector.broadcast %cst_344 : f32 to vector<4x16xf32>
    %689 = arith.addf %688, %687 : vector<4x16xf32>
    %cst_345 = arith.constant 1.000000e+00 : f32
    %690 = vector.broadcast %cst_345 : f32 to vector<4x16xf32>
    %691 = arith.divf %690, %689 : vector<4x16xf32>
    %c0_346 = arith.constant 0 : index
    %c0_347 = arith.constant 0 : index
    %692 = vector.load %arg14[%c0_346, %c0_347] : memref<4x256xf32, #tpu.memory_space<vmem>>, vector<4x16xf32>
    tpu.vector_store %arg14[%c0_346, %c0_347], %691 {strides = array<i32>} : memref<4x256xf32, #tpu.memory_space<vmem>>, vector<4x16xf32>,
    %c0_348 = arith.constant 0 : index
    %c16_349 = arith.constant 16 : index
    %693 = vector.load %arg14[%c0_348, %c16_349] : memref<4x256xf32, #tpu.memory_space<vmem>>, vector<4x16xf32>
    tpu.vector_store %arg14[%c0_348, %c16_349], %691 {strides = array<i32>} : memref<4x256xf32, #tpu.memory_space<vmem>>, vector<4x16xf32>,
    %c0_350 = arith.constant 0 : index
    %c32_351 = arith.constant 32 : index
    %694 = vector.load %arg14[%c0_350, %c32_351] : memref<4x256xf32, #tpu.memory_space<vmem>>, vector<4x16xf32>
    tpu.vector_store %arg14[%c0_350, %c32_351], %691 {strides = array<i32>} : memref<4x256xf32, #tpu.memory_space<vmem>>, vector<4x16xf32>,
    %c0_352 = arith.constant 0 : index
    %c48_353 = arith.constant 48 : index
    %695 = vector.load %arg14[%c0_352, %c48_353] : memref<4x256xf32, #tpu.memory_space<vmem>>, vector<4x16xf32>
    tpu.vector_store %arg14[%c0_352, %c48_353], %691 {strides = array<i32>} : memref<4x256xf32, #tpu.memory_space<vmem>>, vector<4x16xf32>,
    %c0_354 = arith.constant 0 : index
    %c64_355 = arith.constant 64 : index
    %696 = vector.load %arg14[%c0_354, %c64_355] : memref<4x256xf32, #tpu.memory_space<vmem>>, vector<4x16xf32>
    tpu.vector_store %arg14[%c0_354, %c64_355], %691 {strides = array<i32>} : memref<4x256xf32, #tpu.memory_space<vmem>>, vector<4x16xf32>,
    %c0_356 = arith.constant 0 : index
    %c80_357 = arith.constant 80 : index
    %697 = vector.load %arg14[%c0_356, %c80_357] : memref<4x256xf32, #tpu.memory_space<vmem>>, vector<4x16xf32>
    tpu.vector_store %arg14[%c0_356, %c80_357], %691 {strides = array<i32>} : memref<4x256xf32, #tpu.memory_space<vmem>>, vector<4x16xf32>,
    %c0_358 = arith.constant 0 : index
    %c96_359 = arith.constant 96 : index
    %698 = vector.load %arg14[%c0_358, %c96_359] : memref<4x256xf32, #tpu.memory_space<vmem>>, vector<4x16xf32>
    tpu.vector_store %arg14[%c0_358, %c96_359], %691 {strides = array<i32>} : memref<4x256xf32, #tpu.memory_space<vmem>>, vector<4x16xf32>,
    %c0_360 = arith.constant 0 : index
    %c112 = arith.constant 112 : index
    %699 = vector.load %arg14[%c0_360, %c112] : memref<4x256xf32, #tpu.memory_space<vmem>>, vector<4x16xf32>
    tpu.vector_store %arg14[%c0_360, %c112], %691 {strides = array<i32>} : memref<4x256xf32, #tpu.memory_space<vmem>>, vector<4x16xf32>,
    %c0_361 = arith.constant 0 : index
    %c128 = arith.constant 128 : index
    %700 = vector.load %arg14[%c0_361, %c128] : memref<4x256xf32, #tpu.memory_space<vmem>>, vector<4x16xf32>
    tpu.vector_store %arg14[%c0_361, %c128], %691 {strides = array<i32>} : memref<4x256xf32, #tpu.memory_space<vmem>>, vector<4x16xf32>,
    %c0_362 = arith.constant 0 : index
    %c144 = arith.constant 144 : index
    %701 = vector.load %arg14[%c0_362, %c144] : memref<4x256xf32, #tpu.memory_space<vmem>>, vector<4x16xf32>
    tpu.vector_store %arg14[%c0_362, %c144], %691 {strides = array<i32>} : memref<4x256xf32, #tpu.memory_space<vmem>>, vector<4x16xf32>,
    %c0_363 = arith.constant 0 : index
    %c160 = arith.constant 160 : index
    %702 = vector.load %arg14[%c0_363, %c160] : memref<4x256xf32, #tpu.memory_space<vmem>>, vector<4x16xf32>
    tpu.vector_store %arg14[%c0_363, %c160], %691 {strides = array<i32>} : memref<4x256xf32, #tpu.memory_space<vmem>>, vector<4x16xf32>,
    %c0_364 = arith.constant 0 : index
    %c176 = arith.constant 176 : index
    %703 = vector.load %arg14[%c0_364, %c176] : memref<4x256xf32, #tpu.memory_space<vmem>>, vector<4x16xf32>
    tpu.vector_store %arg14[%c0_364, %c176], %691 {strides = array<i32>} : memref<4x256xf32, #tpu.memory_space<vmem>>, vector<4x16xf32>,
    %c0_365 = arith.constant 0 : index
    %c192 = arith.constant 192 : index
    %704 = vector.load %arg14[%c0_365, %c192] : memref<4x256xf32, #tpu.memory_space<vmem>>, vector<4x16xf32>
    tpu.vector_store %arg14[%c0_365, %c192], %691 {strides = array<i32>} : memref<4x256xf32, #tpu.memory_space<vmem>>, vector<4x16xf32>,
    %c0_366 = arith.constant 0 : index
    %c208 = arith.constant 208 : index
    %705 = vector.load %arg14[%c0_366, %c208] : memref<4x256xf32, #tpu.memory_space<vmem>>, vector<4x16xf32>
    tpu.vector_store %arg14[%c0_366, %c208], %691 {strides = array<i32>} : memref<4x256xf32, #tpu.memory_space<vmem>>, vector<4x16xf32>,
    %c0_367 = arith.constant 0 : index
    %c224 = arith.constant 224 : index
    %706 = vector.load %arg14[%c0_367, %c224] : memref<4x256xf32, #tpu.memory_space<vmem>>, vector<4x16xf32>
    tpu.vector_store %arg14[%c0_367, %c224], %691 {strides = array<i32>} : memref<4x256xf32, #tpu.memory_space<vmem>>, vector<4x16xf32>,
    %c0_368 = arith.constant 0 : index
    %c240 = arith.constant 240 : index
    %707 = vector.load %arg14[%c0_368, %c240] : memref<4x256xf32, #tpu.memory_space<vmem>>, vector<4x16xf32>
    tpu.vector_store %arg14[%c0_368, %c240], %691 {strides = array<i32>} : memref<4x256xf32, #tpu.memory_space<vmem>>, vector<4x16xf32>,
    %c0_369 = arith.constant 0 : index
    %c0_370 = arith.constant 0 : index
    %708 = vector.load %arg14[%c0_369, %c0_370] : memref<4x256xf32, #tpu.memory_space<vmem>>, vector<4x256xf32>
    %709 = arith.mulf %3, %708 : vector<4x256xf32>
    %cst_371 = arith.constant 0.000000e+00 : f32
    %710 = vector.broadcast %cst_371 : f32 to vector<8x256xf32>
    %c0_372 = arith.constant 0 : index
    %c0_373 = arith.constant 0 : index
    %711 = vector.load %arg5[%c0_372, %c0_373] : memref<8x4xf32, #tpu.memory_space<vmem>>, vector<8x1xf32>
    %712 = vector.extract_strided_slice %709 {offsets = [0, 0], sizes = [1, 256], strides = [1, 1]} : vector<4x256xf32> to vector<1x256xf32>
    %713 = vector.broadcast %711 : vector<8x1xf32> to vector<8x256xf32>
    %714 = vector.broadcast %712 : vector<1x256xf32> to vector<8x256xf32>
    %715 = arith.mulf %713, %714 : vector<8x256xf32>
    %716 = arith.addf %710, %715 : vector<8x256xf32>
    %c0_374 = arith.constant 0 : index
    %c1_375 = arith.constant 1 : index
    %717 = vector.load %arg5[%c0_374, %c1_375] : memref<8x4xf32, #tpu.memory_space<vmem>>, vector<8x1xf32>
    %718 = vector.extract_strided_slice %709 {offsets = [1, 0], sizes = [1, 256], strides = [1, 1]} : vector<4x256xf32> to vector<1x256xf32>
    %719 = vector.broadcast %717 : vector<8x1xf32> to vector<8x256xf32>
    %720 = vector.broadcast %718 : vector<1x256xf32> to vector<8x256xf32>
    %721 = arith.mulf %719, %720 : vector<8x256xf32>
    %722 = arith.addf %716, %721 : vector<8x256xf32>
    %c0_376 = arith.constant 0 : index
    %c2_377 = arith.constant 2 : index
    %723 = vector.load %arg5[%c0_376, %c2_377] : memref<8x4xf32, #tpu.memory_space<vmem>>, vector<8x1xf32>
    %724 = vector.extract_strided_slice %709 {offsets = [2, 0], sizes = [1, 256], strides = [1, 1]} : vector<4x256xf32> to vector<1x256xf32>
    %725 = vector.broadcast %723 : vector<8x1xf32> to vector<8x256xf32>
    %726 = vector.broadcast %724 : vector<1x256xf32> to vector<8x256xf32>
    %727 = arith.mulf %725, %726 : vector<8x256xf32>
    %728 = arith.addf %722, %727 : vector<8x256xf32>
    %c0_378 = arith.constant 0 : index
    %c3_379 = arith.constant 3 : index
    %729 = vector.load %arg5[%c0_378, %c3_379] : memref<8x4xf32, #tpu.memory_space<vmem>>, vector<8x1xf32>
    %730 = vector.extract_strided_slice %709 {offsets = [3, 0], sizes = [1, 256], strides = [1, 1]} : vector<4x256xf32> to vector<1x256xf32>
    %731 = vector.broadcast %729 : vector<8x1xf32> to vector<8x256xf32>
    %732 = vector.broadcast %730 : vector<1x256xf32> to vector<8x256xf32>
    %733 = arith.mulf %731, %732 : vector<8x256xf32>
    %734 = arith.addf %728, %733 : vector<8x256xf32>
    %c0_380 = arith.constant 0 : index
    %c0_381 = arith.constant 0 : index
    %735 = vector.load %arg6[%c0_380, %c0_381] : memref<8x1xf32, #tpu.memory_space<vmem>>, vector<8x1xf32>
    %736 = vector.broadcast %735 : vector<8x1xf32> to vector<8x256xf32>
    %737 = arith.addf %734, %736 : vector<8x256xf32>
    %cst_382 = arith.constant 0.000000e+00 : f32
    %738 = vector.broadcast %cst_382 : f32 to vector<8x256xf32>
    %739 = arith.subf %738, %737 : vector<8x256xf32>
    %740 = math.exp %739 : vector<8x256xf32>
    %cst_383 = arith.constant 1.000000e+00 : f32
    %741 = vector.broadcast %cst_383 : f32 to vector<8x256xf32>
    %742 = arith.addf %741, %740 : vector<8x256xf32>
    %cst_384 = arith.constant 1.000000e+00 : f32
    %743 = vector.broadcast %cst_384 : f32 to vector<8x256xf32>
    %744 = arith.divf %743, %742 : vector<8x256xf32>
    %745 = arith.mulf %737, %744 : vector<8x256xf32>
    %cst_385 = arith.constant 0.000000e+00 : f32
    %746 = vector.broadcast %cst_385 : f32 to vector<2x10x22xf32>
    %c0_386 = arith.constant 0 : index
    %c0_387 = arith.constant 0 : index
    %c0_388 = arith.constant 0 : index
    %747 = vector.load %arg13[%c0_386, %c0_387, %c0_388] : memref<2x10x22xf32, #tpu.memory_space<vmem>>, vector<2x10x22xf32>
    tpu.vector_store %arg13[%c0_386, %c0_387, %c0_388], %746 {strides = array<i32>} : memref<2x10x22xf32, #tpu.memory_space<vmem>>, vector<2x10x22xf32>,
    %cst_389 = arith.constant dense<0xFF800000> : vector<4x16xf32>
    %748 = vector.multi_reduction <maximumf>, %1, %cst_389 [2] : vector<4x16x16xf32> to vector<4x16xf32>
    %c0_390 = arith.constant 0 : index
    %c3_391 = arith.constant 3 : index
    %c3_392 = arith.constant 3 : index
    %749 = vector.load %arg13[%c0_390, %c3_391, %c3_392] : memref<2x10x22xf32, #tpu.memory_space<vmem>>, vector<1x4x16xf32>
    %750 = vector.shape_cast %749 : vector<1x4x16xf32> to vector<4x16xf32>
    %751 = vector.shape_cast %748 : vector<4x16xf32> to vector<1x4x16xf32>
    tpu.vector_store %arg13[%c0_390, %c3_391, %c3_392], %751 {strides = array<i32>} : memref<2x10x22xf32, #tpu.memory_space<vmem>>, vector<1x4x16xf32>,
    %cst_393 = arith.constant dense<0.000000e+00> : vector<4x16xf32>
    %752 = vector.multi_reduction <add>, %1, %cst_393 [2] : vector<4x16x16xf32> to vector<4x16xf32>
    %cst_394 = arith.constant 1.600000e+01 : f32
    %753 = vector.broadcast %cst_394 : f32 to vector<4x16xf32>
    %754 = arith.divf %752, %753 : vector<4x16xf32>
    %c1_395 = arith.constant 1 : index
    %c3_396 = arith.constant 3 : index
    %c3_397 = arith.constant 3 : index
    %755 = vector.load %arg13[%c1_395, %c3_396, %c3_397] : memref<2x10x22xf32, #tpu.memory_space<vmem>>, vector<1x4x16xf32>
    %756 = vector.shape_cast %755 : vector<1x4x16xf32> to vector<4x16xf32>
    %757 = vector.shape_cast %754 : vector<4x16xf32> to vector<1x4x16xf32>
    tpu.vector_store %arg13[%c1_395, %c3_396, %c3_397], %757 {strides = array<i32>} : memref<2x10x22xf32, #tpu.memory_space<vmem>>, vector<1x4x16xf32>,
    %cst_398 = arith.constant 0.000000e+00 : f32
    %758 = vector.broadcast %cst_398 : f32 to vector<4x16xf32>
    %c0_399 = arith.constant 0 : index
    %759 = memref.load %arg8[%c0_399] : memref<99xf32, #tpu.memory_space<smem>>
    %c0_400 = arith.constant 0 : index
    %c0_401 = arith.constant 0 : index
    %c0_402 = arith.constant 0 : index
    %760 = vector.load %arg13[%c0_400, %c0_401, %c0_402] : memref<2x10x22xf32, #tpu.memory_space<vmem>>, vector<1x4x16xf32>
    %761 = vector.shape_cast %760 : vector<1x4x16xf32> to vector<4x16xf32>
    %762 = vector.broadcast %759 : f32 to vector<4x16xf32>
    %763 = arith.mulf %762, %761 : vector<4x16xf32>
    %764 = arith.addf %758, %763 : vector<4x16xf32>
    %c1_403 = arith.constant 1 : index
    %765 = memref.load %arg8[%c1_403] : memref<99xf32, #tpu.memory_space<smem>>
    %c0_404 = arith.constant 0 : index
    %c0_405 = arith.constant 0 : index
    %c1_406 = arith.constant 1 : index
    %766 = vector.load %arg13[%c0_404, %c0_405, %c1_406] : memref<2x10x22xf32, #tpu.memory_space<vmem>>, vector<1x4x16xf32>
    %767 = vector.shape_cast %766 : vector<1x4x16xf32> to vector<4x16xf32>
    %768 = vector.broadcast %765 : f32 to vector<4x16xf32>
    %769 = arith.mulf %768, %767 : vector<4x16xf32>
    %770 = arith.addf %764, %769 : vector<4x16xf32>
    %c2_407 = arith.constant 2 : index
    %771 = memref.load %arg8[%c2_407] : memref<99xf32, #tpu.memory_space<smem>>
    %c0_408 = arith.constant 0 : index
    %c0_409 = arith.constant 0 : index
    %c2_410 = arith.constant 2 : index
    %772 = vector.load %arg13[%c0_408, %c0_409, %c2_410] : memref<2x10x22xf32, #tpu.memory_space<vmem>>, vector<1x4x16xf32>
    %773 = vector.shape_cast %772 : vector<1x4x16xf32> to vector<4x16xf32>
    %774 = vector.broadcast %771 : f32 to vector<4x16xf32>
    %775 = arith.mulf %774, %773 : vector<4x16xf32>
    %776 = arith.addf %770, %775 : vector<4x16xf32>
    %c3_411 = arith.constant 3 : index
    %777 = memref.load %arg8[%c3_411] : memref<99xf32, #tpu.memory_space<smem>>
    %c0_412 = arith.constant 0 : index
    %c0_413 = arith.constant 0 : index
    %c3_414 = arith.constant 3 : index
    %778 = vector.load %arg13[%c0_412, %c0_413, %c3_414] : memref<2x10x22xf32, #tpu.memory_space<vmem>>, vector<1x4x16xf32>
    %779 = vector.shape_cast %778 : vector<1x4x16xf32> to vector<4x16xf32>
    %780 = vector.broadcast %777 : f32 to vector<4x16xf32>
    %781 = arith.mulf %780, %779 : vector<4x16xf32>
    %782 = arith.addf %776, %781 : vector<4x16xf32>
    %c4_415 = arith.constant 4 : index
    %783 = memref.load %arg8[%c4_415] : memref<99xf32, #tpu.memory_space<smem>>
    %c0_416 = arith.constant 0 : index
    %c0_417 = arith.constant 0 : index
    %c4_418 = arith.constant 4 : index
    %784 = vector.load %arg13[%c0_416, %c0_417, %c4_418] : memref<2x10x22xf32, #tpu.memory_space<vmem>>, vector<1x4x16xf32>
    %785 = vector.shape_cast %784 : vector<1x4x16xf32> to vector<4x16xf32>
    %786 = vector.broadcast %783 : f32 to vector<4x16xf32>
    %787 = arith.mulf %786, %785 : vector<4x16xf32>
    %788 = arith.addf %782, %787 : vector<4x16xf32>
    %c5_419 = arith.constant 5 : index
    %789 = memref.load %arg8[%c5_419] : memref<99xf32, #tpu.memory_space<smem>>
    %c0_420 = arith.constant 0 : index
    %c0_421 = arith.constant 0 : index
    %c5_422 = arith.constant 5 : index
    %790 = vector.load %arg13[%c0_420, %c0_421, %c5_422] : memref<2x10x22xf32, #tpu.memory_space<vmem>>, vector<1x4x16xf32>
    %791 = vector.shape_cast %790 : vector<1x4x16xf32> to vector<4x16xf32>
    %792 = vector.broadcast %789 : f32 to vector<4x16xf32>
    %793 = arith.mulf %792, %791 : vector<4x16xf32>
    %794 = arith.addf %788, %793 : vector<4x16xf32>
    %c6_423 = arith.constant 6 : index
    %795 = memref.load %arg8[%c6_423] : memref<99xf32, #tpu.memory_space<smem>>
    %c0_424 = arith.constant 0 : index
    %c0_425 = arith.constant 0 : index
    %c6_426 = arith.constant 6 : index
    %796 = vector.load %arg13[%c0_424, %c0_425, %c6_426] : memref<2x10x22xf32, #tpu.memory_space<vmem>>, vector<1x4x16xf32>
    %797 = vector.shape_cast %796 : vector<1x4x16xf32> to vector<4x16xf32>
    %798 = vector.broadcast %795 : f32 to vector<4x16xf32>
    %799 = arith.mulf %798, %797 : vector<4x16xf32>
    %800 = arith.addf %794, %799 : vector<4x16xf32>
    %c7_427 = arith.constant 7 : index
    %801 = memref.load %arg8[%c7_427] : memref<99xf32, #tpu.memory_space<smem>>
    %c0_428 = arith.constant 0 : index
    %c1_429 = arith.constant 1 : index
    %c0_430 = arith.constant 0 : index
    %802 = vector.load %arg13[%c0_428, %c1_429, %c0_430] : memref<2x10x22xf32, #tpu.memory_space<vmem>>, vector<1x4x16xf32>
    %803 = vector.shape_cast %802 : vector<1x4x16xf32> to vector<4x16xf32>
    %804 = vector.broadcast %801 : f32 to vector<4x16xf32>
    %805 = arith.mulf %804, %803 : vector<4x16xf32>
    %806 = arith.addf %800, %805 : vector<4x16xf32>
    %c8_431 = arith.constant 8 : index
    %807 = memref.load %arg8[%c8_431] : memref<99xf32, #tpu.memory_space<smem>>
    %c0_432 = arith.constant 0 : index
    %c1_433 = arith.constant 1 : index
    %c1_434 = arith.constant 1 : index
    %808 = vector.load %arg13[%c0_432, %c1_433, %c1_434] : memref<2x10x22xf32, #tpu.memory_space<vmem>>, vector<1x4x16xf32>
    %809 = vector.shape_cast %808 : vector<1x4x16xf32> to vector<4x16xf32>
    %810 = vector.broadcast %807 : f32 to vector<4x16xf32>
    %811 = arith.mulf %810, %809 : vector<4x16xf32>
    %812 = arith.addf %806, %811 : vector<4x16xf32>
    %c9_435 = arith.constant 9 : index
    %813 = memref.load %arg8[%c9_435] : memref<99xf32, #tpu.memory_space<smem>>
    %c0_436 = arith.constant 0 : index
    %c1_437 = arith.constant 1 : index
    %c2_438 = arith.constant 2 : index
    %814 = vector.load %arg13[%c0_436, %c1_437, %c2_438] : memref<2x10x22xf32, #tpu.memory_space<vmem>>, vector<1x4x16xf32>
    %815 = vector.shape_cast %814 : vector<1x4x16xf32> to vector<4x16xf32>
    %816 = vector.broadcast %813 : f32 to vector<4x16xf32>
    %817 = arith.mulf %816, %815 : vector<4x16xf32>
    %818 = arith.addf %812, %817 : vector<4x16xf32>
    %c10_439 = arith.constant 10 : index
    %819 = memref.load %arg8[%c10_439] : memref<99xf32, #tpu.memory_space<smem>>
    %c0_440 = arith.constant 0 : index
    %c1_441 = arith.constant 1 : index
    %c3_442 = arith.constant 3 : index
    %820 = vector.load %arg13[%c0_440, %c1_441, %c3_442] : memref<2x10x22xf32, #tpu.memory_space<vmem>>, vector<1x4x16xf32>
    %821 = vector.shape_cast %820 : vector<1x4x16xf32> to vector<4x16xf32>
    %822 = vector.broadcast %819 : f32 to vector<4x16xf32>
    %823 = arith.mulf %822, %821 : vector<4x16xf32>
    %824 = arith.addf %818, %823 : vector<4x16xf32>
    %c11_443 = arith.constant 11 : index
    %825 = memref.load %arg8[%c11_443] : memref<99xf32, #tpu.memory_space<smem>>
    %c0_444 = arith.constant 0 : index
    %c1_445 = arith.constant 1 : index
    %c4_446 = arith.constant 4 : index
    %826 = vector.load %arg13[%c0_444, %c1_445, %c4_446] : memref<2x10x22xf32, #tpu.memory_space<vmem>>, vector<1x4x16xf32>
    %827 = vector.shape_cast %826 : vector<1x4x16xf32> to vector<4x16xf32>
    %828 = vector.broadcast %825 : f32 to vector<4x16xf32>
    %829 = arith.mulf %828, %827 : vector<4x16xf32>
    %830 = arith.addf %824, %829 : vector<4x16xf32>
    %c12_447 = arith.constant 12 : index
    %831 = memref.load %arg8[%c12_447] : memref<99xf32, #tpu.memory_space<smem>>
    %c0_448 = arith.constant 0 : index
    %c1_449 = arith.constant 1 : index
    %c5_450 = arith.constant 5 : index
    %832 = vector.load %arg13[%c0_448, %c1_449, %c5_450] : memref<2x10x22xf32, #tpu.memory_space<vmem>>, vector<1x4x16xf32>
    %833 = vector.shape_cast %832 : vector<1x4x16xf32> to vector<4x16xf32>
    %834 = vector.broadcast %831 : f32 to vector<4x16xf32>
    %835 = arith.mulf %834, %833 : vector<4x16xf32>
    %836 = arith.addf %830, %835 : vector<4x16xf32>
    %c13_451 = arith.constant 13 : index
    %837 = memref.load %arg8[%c13_451] : memref<99xf32, #tpu.memory_space<smem>>
    %c0_452 = arith.constant 0 : index
    %c1_453 = arith.constant 1 : index
    %c6_454 = arith.constant 6 : index
    %838 = vector.load %arg13[%c0_452, %c1_453, %c6_454] : memref<2x10x22xf32, #tpu.memory_space<vmem>>, vector<1x4x16xf32>
    %839 = vector.shape_cast %838 : vector<1x4x16xf32> to vector<4x16xf32>
    %840 = vector.broadcast %837 : f32 to vector<4x16xf32>
    %841 = arith.mulf %840, %839 : vector<4x16xf32>
    %842 = arith.addf %836, %841 : vector<4x16xf32>
    %c14_455 = arith.constant 14 : index
    %843 = memref.load %arg8[%c14_455] : memref<99xf32, #tpu.memory_space<smem>>
    %c0_456 = arith.constant 0 : index
    %c2_457 = arith.constant 2 : index
    %c0_458 = arith.constant 0 : index
    %844 = vector.load %arg13[%c0_456, %c2_457, %c0_458] : memref<2x10x22xf32, #tpu.memory_space<vmem>>, vector<1x4x16xf32>
    %845 = vector.shape_cast %844 : vector<1x4x16xf32> to vector<4x16xf32>
    %846 = vector.broadcast %843 : f32 to vector<4x16xf32>
    %847 = arith.mulf %846, %845 : vector<4x16xf32>
    %848 = arith.addf %842, %847 : vector<4x16xf32>
    %c15_459 = arith.constant 15 : index
    %849 = memref.load %arg8[%c15_459] : memref<99xf32, #tpu.memory_space<smem>>
    %c0_460 = arith.constant 0 : index
    %c2_461 = arith.constant 2 : index
    %c1_462 = arith.constant 1 : index
    %850 = vector.load %arg13[%c0_460, %c2_461, %c1_462] : memref<2x10x22xf32, #tpu.memory_space<vmem>>, vector<1x4x16xf32>
    %851 = vector.shape_cast %850 : vector<1x4x16xf32> to vector<4x16xf32>
    %852 = vector.broadcast %849 : f32 to vector<4x16xf32>
    %853 = arith.mulf %852, %851 : vector<4x16xf32>
    %854 = arith.addf %848, %853 : vector<4x16xf32>
    %c16_463 = arith.constant 16 : index
    %855 = memref.load %arg8[%c16_463] : memref<99xf32, #tpu.memory_space<smem>>
    %c0_464 = arith.constant 0 : index
    %c2_465 = arith.constant 2 : index
    %c2_466 = arith.constant 2 : index
    %856 = vector.load %arg13[%c0_464, %c2_465, %c2_466] : memref<2x10x22xf32, #tpu.memory_space<vmem>>, vector<1x4x16xf32>
    %857 = vector.shape_cast %856 : vector<1x4x16xf32> to vector<4x16xf32>
    %858 = vector.broadcast %855 : f32 to vector<4x16xf32>
    %859 = arith.mulf %858, %857 : vector<4x16xf32>
    %860 = arith.addf %854, %859 : vector<4x16xf32>
    %c17_467 = arith.constant 17 : index
    %861 = memref.load %arg8[%c17_467] : memref<99xf32, #tpu.memory_space<smem>>
    %c0_468 = arith.constant 0 : index
    %c2_469 = arith.constant 2 : index
    %c3_470 = arith.constant 3 : index
    %862 = vector.load %arg13[%c0_468, %c2_469, %c3_470] : memref<2x10x22xf32, #tpu.memory_space<vmem>>, vector<1x4x16xf32>
    %863 = vector.shape_cast %862 : vector<1x4x16xf32> to vector<4x16xf32>
    %864 = vector.broadcast %861 : f32 to vector<4x16xf32>
    %865 = arith.mulf %864, %863 : vector<4x16xf32>
    %866 = arith.addf %860, %865 : vector<4x16xf32>
    %c18_471 = arith.constant 18 : index
    %867 = memref.load %arg8[%c18_471] : memref<99xf32, #tpu.memory_space<smem>>
    %c0_472 = arith.constant 0 : index
    %c2_473 = arith.constant 2 : index
    %c4_474 = arith.constant 4 : index
    %868 = vector.load %arg13[%c0_472, %c2_473, %c4_474] : memref<2x10x22xf32, #tpu.memory_space<vmem>>, vector<1x4x16xf32>
    %869 = vector.shape_cast %868 : vector<1x4x16xf32> to vector<4x16xf32>
    %870 = vector.broadcast %867 : f32 to vector<4x16xf32>
    %871 = arith.mulf %870, %869 : vector<4x16xf32>
    %872 = arith.addf %866, %871 : vector<4x16xf32>
    %c19_475 = arith.constant 19 : index
    %873 = memref.load %arg8[%c19_475] : memref<99xf32, #tpu.memory_space<smem>>
    %c0_476 = arith.constant 0 : index
    %c2_477 = arith.constant 2 : index
    %c5_478 = arith.constant 5 : index
    %874 = vector.load %arg13[%c0_476, %c2_477, %c5_478] : memref<2x10x22xf32, #tpu.memory_space<vmem>>, vector<1x4x16xf32>
    %875 = vector.shape_cast %874 : vector<1x4x16xf32> to vector<4x16xf32>
    %876 = vector.broadcast %873 : f32 to vector<4x16xf32>
    %877 = arith.mulf %876, %875 : vector<4x16xf32>
    %878 = arith.addf %872, %877 : vector<4x16xf32>
    %c20_479 = arith.constant 20 : index
    %879 = memref.load %arg8[%c20_479] : memref<99xf32, #tpu.memory_space<smem>>
    %c0_480 = arith.constant 0 : index
    %c2_481 = arith.constant 2 : index
    %c6_482 = arith.constant 6 : index
    %880 = vector.load %arg13[%c0_480, %c2_481, %c6_482] : memref<2x10x22xf32, #tpu.memory_space<vmem>>, vector<1x4x16xf32>
    %881 = vector.shape_cast %880 : vector<1x4x16xf32> to vector<4x16xf32>
    %882 = vector.broadcast %879 : f32 to vector<4x16xf32>
    %883 = arith.mulf %882, %881 : vector<4x16xf32>
    %884 = arith.addf %878, %883 : vector<4x16xf32>
    %c21_483 = arith.constant 21 : index
    %885 = memref.load %arg8[%c21_483] : memref<99xf32, #tpu.memory_space<smem>>
    %c0_484 = arith.constant 0 : index
    %c3_485 = arith.constant 3 : index
    %c0_486 = arith.constant 0 : index
    %886 = vector.load %arg13[%c0_484, %c3_485, %c0_486] : memref<2x10x22xf32, #tpu.memory_space<vmem>>, vector<1x4x16xf32>
    %887 = vector.shape_cast %886 : vector<1x4x16xf32> to vector<4x16xf32>
    %888 = vector.broadcast %885 : f32 to vector<4x16xf32>
    %889 = arith.mulf %888, %887 : vector<4x16xf32>
    %890 = arith.addf %884, %889 : vector<4x16xf32>
    %c22_487 = arith.constant 22 : index
    %891 = memref.load %arg8[%c22_487] : memref<99xf32, #tpu.memory_space<smem>>
    %c0_488 = arith.constant 0 : index
    %c3_489 = arith.constant 3 : index
    %c1_490 = arith.constant 1 : index
    %892 = vector.load %arg13[%c0_488, %c3_489, %c1_490] : memref<2x10x22xf32, #tpu.memory_space<vmem>>, vector<1x4x16xf32>
    %893 = vector.shape_cast %892 : vector<1x4x16xf32> to vector<4x16xf32>
    %894 = vector.broadcast %891 : f32 to vector<4x16xf32>
    %895 = arith.mulf %894, %893 : vector<4x16xf32>
    %896 = arith.addf %890, %895 : vector<4x16xf32>
    %c23_491 = arith.constant 23 : index
    %897 = memref.load %arg8[%c23_491] : memref<99xf32, #tpu.memory_space<smem>>
    %c0_492 = arith.constant 0 : index
    %c3_493 = arith.constant 3 : index
    %c2_494 = arith.constant 2 : index
    %898 = vector.load %arg13[%c0_492, %c3_493, %c2_494] : memref<2x10x22xf32, #tpu.memory_space<vmem>>, vector<1x4x16xf32>
    %899 = vector.shape_cast %898 : vector<1x4x16xf32> to vector<4x16xf32>
    %900 = vector.broadcast %897 : f32 to vector<4x16xf32>
    %901 = arith.mulf %900, %899 : vector<4x16xf32>
    %902 = arith.addf %896, %901 : vector<4x16xf32>
    %c24_495 = arith.constant 24 : index
    %903 = memref.load %arg8[%c24_495] : memref<99xf32, #tpu.memory_space<smem>>
    %c0_496 = arith.constant 0 : index
    %c3_497 = arith.constant 3 : index
    %c3_498 = arith.constant 3 : index
    %904 = vector.load %arg13[%c0_496, %c3_497, %c3_498] : memref<2x10x22xf32, #tpu.memory_space<vmem>>, vector<1x4x16xf32>
    %905 = vector.shape_cast %904 : vector<1x4x16xf32> to vector<4x16xf32>
    %906 = vector.broadcast %903 : f32 to vector<4x16xf32>
    %907 = arith.mulf %906, %905 : vector<4x16xf32>
    %908 = arith.addf %902, %907 : vector<4x16xf32>
    %c25_499 = arith.constant 25 : index
    %909 = memref.load %arg8[%c25_499] : memref<99xf32, #tpu.memory_space<smem>>
    %c0_500 = arith.constant 0 : index
    %c3_501 = arith.constant 3 : index
    %c4_502 = arith.constant 4 : index
    %910 = vector.load %arg13[%c0_500, %c3_501, %c4_502] : memref<2x10x22xf32, #tpu.memory_space<vmem>>, vector<1x4x16xf32>
    %911 = vector.shape_cast %910 : vector<1x4x16xf32> to vector<4x16xf32>
    %912 = vector.broadcast %909 : f32 to vector<4x16xf32>
    %913 = arith.mulf %912, %911 : vector<4x16xf32>
    %914 = arith.addf %908, %913 : vector<4x16xf32>
    %c26_503 = arith.constant 26 : index
    %915 = memref.load %arg8[%c26_503] : memref<99xf32, #tpu.memory_space<smem>>
    %c0_504 = arith.constant 0 : index
    %c3_505 = arith.constant 3 : index
    %c5_506 = arith.constant 5 : index
    %916 = vector.load %arg13[%c0_504, %c3_505, %c5_506] : memref<2x10x22xf32, #tpu.memory_space<vmem>>, vector<1x4x16xf32>
    %917 = vector.shape_cast %916 : vector<1x4x16xf32> to vector<4x16xf32>
    %918 = vector.broadcast %915 : f32 to vector<4x16xf32>
    %919 = arith.mulf %918, %917 : vector<4x16xf32>
    %920 = arith.addf %914, %919 : vector<4x16xf32>
    %c27_507 = arith.constant 27 : index
    %921 = memref.load %arg8[%c27_507] : memref<99xf32, #tpu.memory_space<smem>>
    %c0_508 = arith.constant 0 : index
    %c3_509 = arith.constant 3 : index
    %c6_510 = arith.constant 6 : index
    %922 = vector.load %arg13[%c0_508, %c3_509, %c6_510] : memref<2x10x22xf32, #tpu.memory_space<vmem>>, vector<1x4x16xf32>
    %923 = vector.shape_cast %922 : vector<1x4x16xf32> to vector<4x16xf32>
    %924 = vector.broadcast %921 : f32 to vector<4x16xf32>
    %925 = arith.mulf %924, %923 : vector<4x16xf32>
    %926 = arith.addf %920, %925 : vector<4x16xf32>
    %c28_511 = arith.constant 28 : index
    %927 = memref.load %arg8[%c28_511] : memref<99xf32, #tpu.memory_space<smem>>
    %c0_512 = arith.constant 0 : index
    %c4_513 = arith.constant 4 : index
    %c0_514 = arith.constant 0 : index
    %928 = vector.load %arg13[%c0_512, %c4_513, %c0_514] : memref<2x10x22xf32, #tpu.memory_space<vmem>>, vector<1x4x16xf32>
    %929 = vector.shape_cast %928 : vector<1x4x16xf32> to vector<4x16xf32>
    %930 = vector.broadcast %927 : f32 to vector<4x16xf32>
    %931 = arith.mulf %930, %929 : vector<4x16xf32>
    %932 = arith.addf %926, %931 : vector<4x16xf32>
    %c29_515 = arith.constant 29 : index
    %933 = memref.load %arg8[%c29_515] : memref<99xf32, #tpu.memory_space<smem>>
    %c0_516 = arith.constant 0 : index
    %c4_517 = arith.constant 4 : index
    %c1_518 = arith.constant 1 : index
    %934 = vector.load %arg13[%c0_516, %c4_517, %c1_518] : memref<2x10x22xf32, #tpu.memory_space<vmem>>, vector<1x4x16xf32>
    %935 = vector.shape_cast %934 : vector<1x4x16xf32> to vector<4x16xf32>
    %936 = vector.broadcast %933 : f32 to vector<4x16xf32>
    %937 = arith.mulf %936, %935 : vector<4x16xf32>
    %938 = arith.addf %932, %937 : vector<4x16xf32>
    %c30_519 = arith.constant 30 : index
    %939 = memref.load %arg8[%c30_519] : memref<99xf32, #tpu.memory_space<smem>>
    %c0_520 = arith.constant 0 : index
    %c4_521 = arith.constant 4 : index
    %c2_522 = arith.constant 2 : index
    %940 = vector.load %arg13[%c0_520, %c4_521, %c2_522] : memref<2x10x22xf32, #tpu.memory_space<vmem>>, vector<1x4x16xf32>
    %941 = vector.shape_cast %940 : vector<1x4x16xf32> to vector<4x16xf32>
    %942 = vector.broadcast %939 : f32 to vector<4x16xf32>
    %943 = arith.mulf %942, %941 : vector<4x16xf32>
    %944 = arith.addf %938, %943 : vector<4x16xf32>
    %c31_523 = arith.constant 31 : index
    %945 = memref.load %arg8[%c31_523] : memref<99xf32, #tpu.memory_space<smem>>
    %c0_524 = arith.constant 0 : index
    %c4_525 = arith.constant 4 : index
    %c3_526 = arith.constant 3 : index
    %946 = vector.load %arg13[%c0_524, %c4_525, %c3_526] : memref<2x10x22xf32, #tpu.memory_space<vmem>>, vector<1x4x16xf32>
    %947 = vector.shape_cast %946 : vector<1x4x16xf32> to vector<4x16xf32>
    %948 = vector.broadcast %945 : f32 to vector<4x16xf32>
    %949 = arith.mulf %948, %947 : vector<4x16xf32>
    %950 = arith.addf %944, %949 : vector<4x16xf32>
    %c32_527 = arith.constant 32 : index
    %951 = memref.load %arg8[%c32_527] : memref<99xf32, #tpu.memory_space<smem>>
    %c0_528 = arith.constant 0 : index
    %c4_529 = arith.constant 4 : index
    %c4_530 = arith.constant 4 : index
    %952 = vector.load %arg13[%c0_528, %c4_529, %c4_530] : memref<2x10x22xf32, #tpu.memory_space<vmem>>, vector<1x4x16xf32>
    %953 = vector.shape_cast %952 : vector<1x4x16xf32> to vector<4x16xf32>
    %954 = vector.broadcast %951 : f32 to vector<4x16xf32>
    %955 = arith.mulf %954, %953 : vector<4x16xf32>
    %956 = arith.addf %950, %955 : vector<4x16xf32>
    %c33_531 = arith.constant 33 : index
    %957 = memref.load %arg8[%c33_531] : memref<99xf32, #tpu.memory_space<smem>>
    %c0_532 = arith.constant 0 : index
    %c4_533 = arith.constant 4 : index
    %c5_534 = arith.constant 5 : index
    %958 = vector.load %arg13[%c0_532, %c4_533, %c5_534] : memref<2x10x22xf32, #tpu.memory_space<vmem>>, vector<1x4x16xf32>
    %959 = vector.shape_cast %958 : vector<1x4x16xf32> to vector<4x16xf32>
    %960 = vector.broadcast %957 : f32 to vector<4x16xf32>
    %961 = arith.mulf %960, %959 : vector<4x16xf32>
    %962 = arith.addf %956, %961 : vector<4x16xf32>
    %c34_535 = arith.constant 34 : index
    %963 = memref.load %arg8[%c34_535] : memref<99xf32, #tpu.memory_space<smem>>
    %c0_536 = arith.constant 0 : index
    %c4_537 = arith.constant 4 : index
    %c6_538 = arith.constant 6 : index
    %964 = vector.load %arg13[%c0_536, %c4_537, %c6_538] : memref<2x10x22xf32, #tpu.memory_space<vmem>>, vector<1x4x16xf32>
    %965 = vector.shape_cast %964 : vector<1x4x16xf32> to vector<4x16xf32>
    %966 = vector.broadcast %963 : f32 to vector<4x16xf32>
    %967 = arith.mulf %966, %965 : vector<4x16xf32>
    %968 = arith.addf %962, %967 : vector<4x16xf32>
    %c35_539 = arith.constant 35 : index
    %969 = memref.load %arg8[%c35_539] : memref<99xf32, #tpu.memory_space<smem>>
    %c0_540 = arith.constant 0 : index
    %c5_541 = arith.constant 5 : index
    %c0_542 = arith.constant 0 : index
    %970 = vector.load %arg13[%c0_540, %c5_541, %c0_542] : memref<2x10x22xf32, #tpu.memory_space<vmem>>, vector<1x4x16xf32>
    %971 = vector.shape_cast %970 : vector<1x4x16xf32> to vector<4x16xf32>
    %972 = vector.broadcast %969 : f32 to vector<4x16xf32>
    %973 = arith.mulf %972, %971 : vector<4x16xf32>
    %974 = arith.addf %968, %973 : vector<4x16xf32>
    %c36_543 = arith.constant 36 : index
    %975 = memref.load %arg8[%c36_543] : memref<99xf32, #tpu.memory_space<smem>>
    %c0_544 = arith.constant 0 : index
    %c5_545 = arith.constant 5 : index
    %c1_546 = arith.constant 1 : index
    %976 = vector.load %arg13[%c0_544, %c5_545, %c1_546] : memref<2x10x22xf32, #tpu.memory_space<vmem>>, vector<1x4x16xf32>
    %977 = vector.shape_cast %976 : vector<1x4x16xf32> to vector<4x16xf32>
    %978 = vector.broadcast %975 : f32 to vector<4x16xf32>
    %979 = arith.mulf %978, %977 : vector<4x16xf32>
    %980 = arith.addf %974, %979 : vector<4x16xf32>
    %c37_547 = arith.constant 37 : index
    %981 = memref.load %arg8[%c37_547] : memref<99xf32, #tpu.memory_space<smem>>
    %c0_548 = arith.constant 0 : index
    %c5_549 = arith.constant 5 : index
    %c2_550 = arith.constant 2 : index
    %982 = vector.load %arg13[%c0_548, %c5_549, %c2_550] : memref<2x10x22xf32, #tpu.memory_space<vmem>>, vector<1x4x16xf32>
    %983 = vector.shape_cast %982 : vector<1x4x16xf32> to vector<4x16xf32>
    %984 = vector.broadcast %981 : f32 to vector<4x16xf32>
    %985 = arith.mulf %984, %983 : vector<4x16xf32>
    %986 = arith.addf %980, %985 : vector<4x16xf32>
    %c38_551 = arith.constant 38 : index
    %987 = memref.load %arg8[%c38_551] : memref<99xf32, #tpu.memory_space<smem>>
    %c0_552 = arith.constant 0 : index
    %c5_553 = arith.constant 5 : index
    %c3_554 = arith.constant 3 : index
    %988 = vector.load %arg13[%c0_552, %c5_553, %c3_554] : memref<2x10x22xf32, #tpu.memory_space<vmem>>, vector<1x4x16xf32>
    %989 = vector.shape_cast %988 : vector<1x4x16xf32> to vector<4x16xf32>
    %990 = vector.broadcast %987 : f32 to vector<4x16xf32>
    %991 = arith.mulf %990, %989 : vector<4x16xf32>
    %992 = arith.addf %986, %991 : vector<4x16xf32>
    %c39_555 = arith.constant 39 : index
    %993 = memref.load %arg8[%c39_555] : memref<99xf32, #tpu.memory_space<smem>>
    %c0_556 = arith.constant 0 : index
    %c5_557 = arith.constant 5 : index
    %c4_558 = arith.constant 4 : index
    %994 = vector.load %arg13[%c0_556, %c5_557, %c4_558] : memref<2x10x22xf32, #tpu.memory_space<vmem>>, vector<1x4x16xf32>
    %995 = vector.shape_cast %994 : vector<1x4x16xf32> to vector<4x16xf32>
    %996 = vector.broadcast %993 : f32 to vector<4x16xf32>
    %997 = arith.mulf %996, %995 : vector<4x16xf32>
    %998 = arith.addf %992, %997 : vector<4x16xf32>
    %c40_559 = arith.constant 40 : index
    %999 = memref.load %arg8[%c40_559] : memref<99xf32, #tpu.memory_space<smem>>
    %c0_560 = arith.constant 0 : index
    %c5_561 = arith.constant 5 : index
    %c5_562 = arith.constant 5 : index
    %1000 = vector.load %arg13[%c0_560, %c5_561, %c5_562] : memref<2x10x22xf32, #tpu.memory_space<vmem>>, vector<1x4x16xf32>
    %1001 = vector.shape_cast %1000 : vector<1x4x16xf32> to vector<4x16xf32>
    %1002 = vector.broadcast %999 : f32 to vector<4x16xf32>
    %1003 = arith.mulf %1002, %1001 : vector<4x16xf32>
    %1004 = arith.addf %998, %1003 : vector<4x16xf32>
    %c41_563 = arith.constant 41 : index
    %1005 = memref.load %arg8[%c41_563] : memref<99xf32, #tpu.memory_space<smem>>
    %c0_564 = arith.constant 0 : index
    %c5_565 = arith.constant 5 : index
    %c6_566 = arith.constant 6 : index
    %1006 = vector.load %arg13[%c0_564, %c5_565, %c6_566] : memref<2x10x22xf32, #tpu.memory_space<vmem>>, vector<1x4x16xf32>
    %1007 = vector.shape_cast %1006 : vector<1x4x16xf32> to vector<4x16xf32>
    %1008 = vector.broadcast %1005 : f32 to vector<4x16xf32>
    %1009 = arith.mulf %1008, %1007 : vector<4x16xf32>
    %1010 = arith.addf %1004, %1009 : vector<4x16xf32>
    %c42_567 = arith.constant 42 : index
    %1011 = memref.load %arg8[%c42_567] : memref<99xf32, #tpu.memory_space<smem>>
    %c0_568 = arith.constant 0 : index
    %c6_569 = arith.constant 6 : index
    %c0_570 = arith.constant 0 : index
    %1012 = vector.load %arg13[%c0_568, %c6_569, %c0_570] : memref<2x10x22xf32, #tpu.memory_space<vmem>>, vector<1x4x16xf32>
    %1013 = vector.shape_cast %1012 : vector<1x4x16xf32> to vector<4x16xf32>
    %1014 = vector.broadcast %1011 : f32 to vector<4x16xf32>
    %1015 = arith.mulf %1014, %1013 : vector<4x16xf32>
    %1016 = arith.addf %1010, %1015 : vector<4x16xf32>
    %c43_571 = arith.constant 43 : index
    %1017 = memref.load %arg8[%c43_571] : memref<99xf32, #tpu.memory_space<smem>>
    %c0_572 = arith.constant 0 : index
    %c6_573 = arith.constant 6 : index
    %c1_574 = arith.constant 1 : index
    %1018 = vector.load %arg13[%c0_572, %c6_573, %c1_574] : memref<2x10x22xf32, #tpu.memory_space<vmem>>, vector<1x4x16xf32>
    %1019 = vector.shape_cast %1018 : vector<1x4x16xf32> to vector<4x16xf32>
    %1020 = vector.broadcast %1017 : f32 to vector<4x16xf32>
    %1021 = arith.mulf %1020, %1019 : vector<4x16xf32>
    %1022 = arith.addf %1016, %1021 : vector<4x16xf32>
    %c44_575 = arith.constant 44 : index
    %1023 = memref.load %arg8[%c44_575] : memref<99xf32, #tpu.memory_space<smem>>
    %c0_576 = arith.constant 0 : index
    %c6_577 = arith.constant 6 : index
    %c2_578 = arith.constant 2 : index
    %1024 = vector.load %arg13[%c0_576, %c6_577, %c2_578] : memref<2x10x22xf32, #tpu.memory_space<vmem>>, vector<1x4x16xf32>
    %1025 = vector.shape_cast %1024 : vector<1x4x16xf32> to vector<4x16xf32>
    %1026 = vector.broadcast %1023 : f32 to vector<4x16xf32>
    %1027 = arith.mulf %1026, %1025 : vector<4x16xf32>
    %1028 = arith.addf %1022, %1027 : vector<4x16xf32>
    %c45_579 = arith.constant 45 : index
    %1029 = memref.load %arg8[%c45_579] : memref<99xf32, #tpu.memory_space<smem>>
    %c0_580 = arith.constant 0 : index
    %c6_581 = arith.constant 6 : index
    %c3_582 = arith.constant 3 : index
    %1030 = vector.load %arg13[%c0_580, %c6_581, %c3_582] : memref<2x10x22xf32, #tpu.memory_space<vmem>>, vector<1x4x16xf32>
    %1031 = vector.shape_cast %1030 : vector<1x4x16xf32> to vector<4x16xf32>
    %1032 = vector.broadcast %1029 : f32 to vector<4x16xf32>
    %1033 = arith.mulf %1032, %1031 : vector<4x16xf32>
    %1034 = arith.addf %1028, %1033 : vector<4x16xf32>
    %c46_583 = arith.constant 46 : index
    %1035 = memref.load %arg8[%c46_583] : memref<99xf32, #tpu.memory_space<smem>>
    %c0_584 = arith.constant 0 : index
    %c6_585 = arith.constant 6 : index
    %c4_586 = arith.constant 4 : index
    %1036 = vector.load %arg13[%c0_584, %c6_585, %c4_586] : memref<2x10x22xf32, #tpu.memory_space<vmem>>, vector<1x4x16xf32>
    %1037 = vector.shape_cast %1036 : vector<1x4x16xf32> to vector<4x16xf32>
    %1038 = vector.broadcast %1035 : f32 to vector<4x16xf32>
    %1039 = arith.mulf %1038, %1037 : vector<4x16xf32>
    %1040 = arith.addf %1034, %1039 : vector<4x16xf32>
    %c47_587 = arith.constant 47 : index
    %1041 = memref.load %arg8[%c47_587] : memref<99xf32, #tpu.memory_space<smem>>
    %c0_588 = arith.constant 0 : index
    %c6_589 = arith.constant 6 : index
    %c5_590 = arith.constant 5 : index
    %1042 = vector.load %arg13[%c0_588, %c6_589, %c5_590] : memref<2x10x22xf32, #tpu.memory_space<vmem>>, vector<1x4x16xf32>
    %1043 = vector.shape_cast %1042 : vector<1x4x16xf32> to vector<4x16xf32>
    %1044 = vector.broadcast %1041 : f32 to vector<4x16xf32>
    %1045 = arith.mulf %1044, %1043 : vector<4x16xf32>
    %1046 = arith.addf %1040, %1045 : vector<4x16xf32>
    %c48_591 = arith.constant 48 : index
    %1047 = memref.load %arg8[%c48_591] : memref<99xf32, #tpu.memory_space<smem>>
    %c0_592 = arith.constant 0 : index
    %c6_593 = arith.constant 6 : index
    %c6_594 = arith.constant 6 : index
    %1048 = vector.load %arg13[%c0_592, %c6_593, %c6_594] : memref<2x10x22xf32, #tpu.memory_space<vmem>>, vector<1x4x16xf32>
    %1049 = vector.shape_cast %1048 : vector<1x4x16xf32> to vector<4x16xf32>
    %1050 = vector.broadcast %1047 : f32 to vector<4x16xf32>
    %1051 = arith.mulf %1050, %1049 : vector<4x16xf32>
    %1052 = arith.addf %1046, %1051 : vector<4x16xf32>
    %c49_595 = arith.constant 49 : index
    %1053 = memref.load %arg8[%c49_595] : memref<99xf32, #tpu.memory_space<smem>>
    %c1_596 = arith.constant 1 : index
    %c0_597 = arith.constant 0 : index
    %c0_598 = arith.constant 0 : index
    %1054 = vector.load %arg13[%c1_596, %c0_597, %c0_598] : memref<2x10x22xf32, #tpu.memory_space<vmem>>, vector<1x4x16xf32>
    %1055 = vector.shape_cast %1054 : vector<1x4x16xf32> to vector<4x16xf32>
    %1056 = vector.broadcast %1053 : f32 to vector<4x16xf32>
    %1057 = arith.mulf %1056, %1055 : vector<4x16xf32>
    %1058 = arith.addf %1052, %1057 : vector<4x16xf32>
    %c50_599 = arith.constant 50 : index
    %1059 = memref.load %arg8[%c50_599] : memref<99xf32, #tpu.memory_space<smem>>
    %c1_600 = arith.constant 1 : index
    %c0_601 = arith.constant 0 : index
    %c1_602 = arith.constant 1 : index
    %1060 = vector.load %arg13[%c1_600, %c0_601, %c1_602] : memref<2x10x22xf32, #tpu.memory_space<vmem>>, vector<1x4x16xf32>
    %1061 = vector.shape_cast %1060 : vector<1x4x16xf32> to vector<4x16xf32>
    %1062 = vector.broadcast %1059 : f32 to vector<4x16xf32>
    %1063 = arith.mulf %1062, %1061 : vector<4x16xf32>
    %1064 = arith.addf %1058, %1063 : vector<4x16xf32>
    %c51_603 = arith.constant 51 : index
    %1065 = memref.load %arg8[%c51_603] : memref<99xf32, #tpu.memory_space<smem>>
    %c1_604 = arith.constant 1 : index
    %c0_605 = arith.constant 0 : index
    %c2_606 = arith.constant 2 : index
    %1066 = vector.load %arg13[%c1_604, %c0_605, %c2_606] : memref<2x10x22xf32, #tpu.memory_space<vmem>>, vector<1x4x16xf32>
    %1067 = vector.shape_cast %1066 : vector<1x4x16xf32> to vector<4x16xf32>
    %1068 = vector.broadcast %1065 : f32 to vector<4x16xf32>
    %1069 = arith.mulf %1068, %1067 : vector<4x16xf32>
    %1070 = arith.addf %1064, %1069 : vector<4x16xf32>
    %c52_607 = arith.constant 52 : index
    %1071 = memref.load %arg8[%c52_607] : memref<99xf32, #tpu.memory_space<smem>>
    %c1_608 = arith.constant 1 : index
    %c0_609 = arith.constant 0 : index
    %c3_610 = arith.constant 3 : index
    %1072 = vector.load %arg13[%c1_608, %c0_609, %c3_610] : memref<2x10x22xf32, #tpu.memory_space<vmem>>, vector<1x4x16xf32>
    %1073 = vector.shape_cast %1072 : vector<1x4x16xf32> to vector<4x16xf32>
    %1074 = vector.broadcast %1071 : f32 to vector<4x16xf32>
    %1075 = arith.mulf %1074, %1073 : vector<4x16xf32>
    %1076 = arith.addf %1070, %1075 : vector<4x16xf32>
    %c53_611 = arith.constant 53 : index
    %1077 = memref.load %arg8[%c53_611] : memref<99xf32, #tpu.memory_space<smem>>
    %c1_612 = arith.constant 1 : index
    %c0_613 = arith.constant 0 : index
    %c4_614 = arith.constant 4 : index
    %1078 = vector.load %arg13[%c1_612, %c0_613, %c4_614] : memref<2x10x22xf32, #tpu.memory_space<vmem>>, vector<1x4x16xf32>
    %1079 = vector.shape_cast %1078 : vector<1x4x16xf32> to vector<4x16xf32>
    %1080 = vector.broadcast %1077 : f32 to vector<4x16xf32>
    %1081 = arith.mulf %1080, %1079 : vector<4x16xf32>
    %1082 = arith.addf %1076, %1081 : vector<4x16xf32>
    %c54_615 = arith.constant 54 : index
    %1083 = memref.load %arg8[%c54_615] : memref<99xf32, #tpu.memory_space<smem>>
    %c1_616 = arith.constant 1 : index
    %c0_617 = arith.constant 0 : index
    %c5_618 = arith.constant 5 : index
    %1084 = vector.load %arg13[%c1_616, %c0_617, %c5_618] : memref<2x10x22xf32, #tpu.memory_space<vmem>>, vector<1x4x16xf32>
    %1085 = vector.shape_cast %1084 : vector<1x4x16xf32> to vector<4x16xf32>
    %1086 = vector.broadcast %1083 : f32 to vector<4x16xf32>
    %1087 = arith.mulf %1086, %1085 : vector<4x16xf32>
    %1088 = arith.addf %1082, %1087 : vector<4x16xf32>
    %c55_619 = arith.constant 55 : index
    %1089 = memref.load %arg8[%c55_619] : memref<99xf32, #tpu.memory_space<smem>>
    %c1_620 = arith.constant 1 : index
    %c0_621 = arith.constant 0 : index
    %c6_622 = arith.constant 6 : index
    %1090 = vector.load %arg13[%c1_620, %c0_621, %c6_622] : memref<2x10x22xf32, #tpu.memory_space<vmem>>, vector<1x4x16xf32>
    %1091 = vector.shape_cast %1090 : vector<1x4x16xf32> to vector<4x16xf32>
    %1092 = vector.broadcast %1089 : f32 to vector<4x16xf32>
    %1093 = arith.mulf %1092, %1091 : vector<4x16xf32>
    %1094 = arith.addf %1088, %1093 : vector<4x16xf32>
    %c56_623 = arith.constant 56 : index
    %1095 = memref.load %arg8[%c56_623] : memref<99xf32, #tpu.memory_space<smem>>
    %c1_624 = arith.constant 1 : index
    %c1_625 = arith.constant 1 : index
    %c0_626 = arith.constant 0 : index
    %1096 = vector.load %arg13[%c1_624, %c1_625, %c0_626] : memref<2x10x22xf32, #tpu.memory_space<vmem>>, vector<1x4x16xf32>
    %1097 = vector.shape_cast %1096 : vector<1x4x16xf32> to vector<4x16xf32>
    %1098 = vector.broadcast %1095 : f32 to vector<4x16xf32>
    %1099 = arith.mulf %1098, %1097 : vector<4x16xf32>
    %1100 = arith.addf %1094, %1099 : vector<4x16xf32>
    %c57_627 = arith.constant 57 : index
    %1101 = memref.load %arg8[%c57_627] : memref<99xf32, #tpu.memory_space<smem>>
    %c1_628 = arith.constant 1 : index
    %c1_629 = arith.constant 1 : index
    %c1_630 = arith.constant 1 : index
    %1102 = vector.load %arg13[%c1_628, %c1_629, %c1_630] : memref<2x10x22xf32, #tpu.memory_space<vmem>>, vector<1x4x16xf32>
    %1103 = vector.shape_cast %1102 : vector<1x4x16xf32> to vector<4x16xf32>
    %1104 = vector.broadcast %1101 : f32 to vector<4x16xf32>
    %1105 = arith.mulf %1104, %1103 : vector<4x16xf32>
    %1106 = arith.addf %1100, %1105 : vector<4x16xf32>
    %c58_631 = arith.constant 58 : index
    %1107 = memref.load %arg8[%c58_631] : memref<99xf32, #tpu.memory_space<smem>>
    %c1_632 = arith.constant 1 : index
    %c1_633 = arith.constant 1 : index
    %c2_634 = arith.constant 2 : index
    %1108 = vector.load %arg13[%c1_632, %c1_633, %c2_634] : memref<2x10x22xf32, #tpu.memory_space<vmem>>, vector<1x4x16xf32>
    %1109 = vector.shape_cast %1108 : vector<1x4x16xf32> to vector<4x16xf32>
    %1110 = vector.broadcast %1107 : f32 to vector<4x16xf32>
    %1111 = arith.mulf %1110, %1109 : vector<4x16xf32>
    %1112 = arith.addf %1106, %1111 : vector<4x16xf32>
    %c59_635 = arith.constant 59 : index
    %1113 = memref.load %arg8[%c59_635] : memref<99xf32, #tpu.memory_space<smem>>
    %c1_636 = arith.constant 1 : index
    %c1_637 = arith.constant 1 : index
    %c3_638 = arith.constant 3 : index
    %1114 = vector.load %arg13[%c1_636, %c1_637, %c3_638] : memref<2x10x22xf32, #tpu.memory_space<vmem>>, vector<1x4x16xf32>
    %1115 = vector.shape_cast %1114 : vector<1x4x16xf32> to vector<4x16xf32>
    %1116 = vector.broadcast %1113 : f32 to vector<4x16xf32>
    %1117 = arith.mulf %1116, %1115 : vector<4x16xf32>
    %1118 = arith.addf %1112, %1117 : vector<4x16xf32>
    %c60_639 = arith.constant 60 : index
    %1119 = memref.load %arg8[%c60_639] : memref<99xf32, #tpu.memory_space<smem>>
    %c1_640 = arith.constant 1 : index
    %c1_641 = arith.constant 1 : index
    %c4_642 = arith.constant 4 : index
    %1120 = vector.load %arg13[%c1_640, %c1_641, %c4_642] : memref<2x10x22xf32, #tpu.memory_space<vmem>>, vector<1x4x16xf32>
    %1121 = vector.shape_cast %1120 : vector<1x4x16xf32> to vector<4x16xf32>
    %1122 = vector.broadcast %1119 : f32 to vector<4x16xf32>
    %1123 = arith.mulf %1122, %1121 : vector<4x16xf32>
    %1124 = arith.addf %1118, %1123 : vector<4x16xf32>
    %c61_643 = arith.constant 61 : index
    %1125 = memref.load %arg8[%c61_643] : memref<99xf32, #tpu.memory_space<smem>>
    %c1_644 = arith.constant 1 : index
    %c1_645 = arith.constant 1 : index
    %c5_646 = arith.constant 5 : index
    %1126 = vector.load %arg13[%c1_644, %c1_645, %c5_646] : memref<2x10x22xf32, #tpu.memory_space<vmem>>, vector<1x4x16xf32>
    %1127 = vector.shape_cast %1126 : vector<1x4x16xf32> to vector<4x16xf32>
    %1128 = vector.broadcast %1125 : f32 to vector<4x16xf32>
    %1129 = arith.mulf %1128, %1127 : vector<4x16xf32>
    %1130 = arith.addf %1124, %1129 : vector<4x16xf32>
    %c62_647 = arith.constant 62 : index
    %1131 = memref.load %arg8[%c62_647] : memref<99xf32, #tpu.memory_space<smem>>
    %c1_648 = arith.constant 1 : index
    %c1_649 = arith.constant 1 : index
    %c6_650 = arith.constant 6 : index
    %1132 = vector.load %arg13[%c1_648, %c1_649, %c6_650] : memref<2x10x22xf32, #tpu.memory_space<vmem>>, vector<1x4x16xf32>
    %1133 = vector.shape_cast %1132 : vector<1x4x16xf32> to vector<4x16xf32>
    %1134 = vector.broadcast %1131 : f32 to vector<4x16xf32>
    %1135 = arith.mulf %1134, %1133 : vector<4x16xf32>
    %1136 = arith.addf %1130, %1135 : vector<4x16xf32>
    %c63_651 = arith.constant 63 : index
    %1137 = memref.load %arg8[%c63_651] : memref<99xf32, #tpu.memory_space<smem>>
    %c1_652 = arith.constant 1 : index
    %c2_653 = arith.constant 2 : index
    %c0_654 = arith.constant 0 : index
    %1138 = vector.load %arg13[%c1_652, %c2_653, %c0_654] : memref<2x10x22xf32, #tpu.memory_space<vmem>>, vector<1x4x16xf32>
    %1139 = vector.shape_cast %1138 : vector<1x4x16xf32> to vector<4x16xf32>
    %1140 = vector.broadcast %1137 : f32 to vector<4x16xf32>
    %1141 = arith.mulf %1140, %1139 : vector<4x16xf32>
    %1142 = arith.addf %1136, %1141 : vector<4x16xf32>
    %c64_655 = arith.constant 64 : index
    %1143 = memref.load %arg8[%c64_655] : memref<99xf32, #tpu.memory_space<smem>>
    %c1_656 = arith.constant 1 : index
    %c2_657 = arith.constant 2 : index
    %c1_658 = arith.constant 1 : index
    %1144 = vector.load %arg13[%c1_656, %c2_657, %c1_658] : memref<2x10x22xf32, #tpu.memory_space<vmem>>, vector<1x4x16xf32>
    %1145 = vector.shape_cast %1144 : vector<1x4x16xf32> to vector<4x16xf32>
    %1146 = vector.broadcast %1143 : f32 to vector<4x16xf32>
    %1147 = arith.mulf %1146, %1145 : vector<4x16xf32>
    %1148 = arith.addf %1142, %1147 : vector<4x16xf32>
    %c65_659 = arith.constant 65 : index
    %1149 = memref.load %arg8[%c65_659] : memref<99xf32, #tpu.memory_space<smem>>
    %c1_660 = arith.constant 1 : index
    %c2_661 = arith.constant 2 : index
    %c2_662 = arith.constant 2 : index
    %1150 = vector.load %arg13[%c1_660, %c2_661, %c2_662] : memref<2x10x22xf32, #tpu.memory_space<vmem>>, vector<1x4x16xf32>
    %1151 = vector.shape_cast %1150 : vector<1x4x16xf32> to vector<4x16xf32>
    %1152 = vector.broadcast %1149 : f32 to vector<4x16xf32>
    %1153 = arith.mulf %1152, %1151 : vector<4x16xf32>
    %1154 = arith.addf %1148, %1153 : vector<4x16xf32>
    %c66_663 = arith.constant 66 : index
    %1155 = memref.load %arg8[%c66_663] : memref<99xf32, #tpu.memory_space<smem>>
    %c1_664 = arith.constant 1 : index
    %c2_665 = arith.constant 2 : index
    %c3_666 = arith.constant 3 : index
    %1156 = vector.load %arg13[%c1_664, %c2_665, %c3_666] : memref<2x10x22xf32, #tpu.memory_space<vmem>>, vector<1x4x16xf32>
    %1157 = vector.shape_cast %1156 : vector<1x4x16xf32> to vector<4x16xf32>
    %1158 = vector.broadcast %1155 : f32 to vector<4x16xf32>
    %1159 = arith.mulf %1158, %1157 : vector<4x16xf32>
    %1160 = arith.addf %1154, %1159 : vector<4x16xf32>
    %c67_667 = arith.constant 67 : index
    %1161 = memref.load %arg8[%c67_667] : memref<99xf32, #tpu.memory_space<smem>>
    %c1_668 = arith.constant 1 : index
    %c2_669 = arith.constant 2 : index
    %c4_670 = arith.constant 4 : index
    %1162 = vector.load %arg13[%c1_668, %c2_669, %c4_670] : memref<2x10x22xf32, #tpu.memory_space<vmem>>, vector<1x4x16xf32>
    %1163 = vector.shape_cast %1162 : vector<1x4x16xf32> to vector<4x16xf32>
    %1164 = vector.broadcast %1161 : f32 to vector<4x16xf32>
    %1165 = arith.mulf %1164, %1163 : vector<4x16xf32>
    %1166 = arith.addf %1160, %1165 : vector<4x16xf32>
    %c68_671 = arith.constant 68 : index
    %1167 = memref.load %arg8[%c68_671] : memref<99xf32, #tpu.memory_space<smem>>
    %c1_672 = arith.constant 1 : index
    %c2_673 = arith.constant 2 : index
    %c5_674 = arith.constant 5 : index
    %1168 = vector.load %arg13[%c1_672, %c2_673, %c5_674] : memref<2x10x22xf32, #tpu.memory_space<vmem>>, vector<1x4x16xf32>
    %1169 = vector.shape_cast %1168 : vector<1x4x16xf32> to vector<4x16xf32>
    %1170 = vector.broadcast %1167 : f32 to vector<4x16xf32>
    %1171 = arith.mulf %1170, %1169 : vector<4x16xf32>
    %1172 = arith.addf %1166, %1171 : vector<4x16xf32>
    %c69_675 = arith.constant 69 : index
    %1173 = memref.load %arg8[%c69_675] : memref<99xf32, #tpu.memory_space<smem>>
    %c1_676 = arith.constant 1 : index
    %c2_677 = arith.constant 2 : index
    %c6_678 = arith.constant 6 : index
    %1174 = vector.load %arg13[%c1_676, %c2_677, %c6_678] : memref<2x10x22xf32, #tpu.memory_space<vmem>>, vector<1x4x16xf32>
    %1175 = vector.shape_cast %1174 : vector<1x4x16xf32> to vector<4x16xf32>
    %1176 = vector.broadcast %1173 : f32 to vector<4x16xf32>
    %1177 = arith.mulf %1176, %1175 : vector<4x16xf32>
    %1178 = arith.addf %1172, %1177 : vector<4x16xf32>
    %c70_679 = arith.constant 70 : index
    %1179 = memref.load %arg8[%c70_679] : memref<99xf32, #tpu.memory_space<smem>>
    %c1_680 = arith.constant 1 : index
    %c3_681 = arith.constant 3 : index
    %c0_682 = arith.constant 0 : index
    %1180 = vector.load %arg13[%c1_680, %c3_681, %c0_682] : memref<2x10x22xf32, #tpu.memory_space<vmem>>, vector<1x4x16xf32>
    %1181 = vector.shape_cast %1180 : vector<1x4x16xf32> to vector<4x16xf32>
    %1182 = vector.broadcast %1179 : f32 to vector<4x16xf32>
    %1183 = arith.mulf %1182, %1181 : vector<4x16xf32>
    %1184 = arith.addf %1178, %1183 : vector<4x16xf32>
    %c71_683 = arith.constant 71 : index
    %1185 = memref.load %arg8[%c71_683] : memref<99xf32, #tpu.memory_space<smem>>
    %c1_684 = arith.constant 1 : index
    %c3_685 = arith.constant 3 : index
    %c1_686 = arith.constant 1 : index
    %1186 = vector.load %arg13[%c1_684, %c3_685, %c1_686] : memref<2x10x22xf32, #tpu.memory_space<vmem>>, vector<1x4x16xf32>
    %1187 = vector.shape_cast %1186 : vector<1x4x16xf32> to vector<4x16xf32>
    %1188 = vector.broadcast %1185 : f32 to vector<4x16xf32>
    %1189 = arith.mulf %1188, %1187 : vector<4x16xf32>
    %1190 = arith.addf %1184, %1189 : vector<4x16xf32>
    %c72_687 = arith.constant 72 : index
    %1191 = memref.load %arg8[%c72_687] : memref<99xf32, #tpu.memory_space<smem>>
    %c1_688 = arith.constant 1 : index
    %c3_689 = arith.constant 3 : index
    %c2_690 = arith.constant 2 : index
    %1192 = vector.load %arg13[%c1_688, %c3_689, %c2_690] : memref<2x10x22xf32, #tpu.memory_space<vmem>>, vector<1x4x16xf32>
    %1193 = vector.shape_cast %1192 : vector<1x4x16xf32> to vector<4x16xf32>
    %1194 = vector.broadcast %1191 : f32 to vector<4x16xf32>
    %1195 = arith.mulf %1194, %1193 : vector<4x16xf32>
    %1196 = arith.addf %1190, %1195 : vector<4x16xf32>
    %c73_691 = arith.constant 73 : index
    %1197 = memref.load %arg8[%c73_691] : memref<99xf32, #tpu.memory_space<smem>>
    %c1_692 = arith.constant 1 : index
    %c3_693 = arith.constant 3 : index
    %c3_694 = arith.constant 3 : index
    %1198 = vector.load %arg13[%c1_692, %c3_693, %c3_694] : memref<2x10x22xf32, #tpu.memory_space<vmem>>, vector<1x4x16xf32>
    %1199 = vector.shape_cast %1198 : vector<1x4x16xf32> to vector<4x16xf32>
    %1200 = vector.broadcast %1197 : f32 to vector<4x16xf32>
    %1201 = arith.mulf %1200, %1199 : vector<4x16xf32>
    %1202 = arith.addf %1196, %1201 : vector<4x16xf32>
    %c74_695 = arith.constant 74 : index
    %1203 = memref.load %arg8[%c74_695] : memref<99xf32, #tpu.memory_space<smem>>
    %c1_696 = arith.constant 1 : index
    %c3_697 = arith.constant 3 : index
    %c4_698 = arith.constant 4 : index
    %1204 = vector.load %arg13[%c1_696, %c3_697, %c4_698] : memref<2x10x22xf32, #tpu.memory_space<vmem>>, vector<1x4x16xf32>
    %1205 = vector.shape_cast %1204 : vector<1x4x16xf32> to vector<4x16xf32>
    %1206 = vector.broadcast %1203 : f32 to vector<4x16xf32>
    %1207 = arith.mulf %1206, %1205 : vector<4x16xf32>
    %1208 = arith.addf %1202, %1207 : vector<4x16xf32>
    %c75_699 = arith.constant 75 : index
    %1209 = memref.load %arg8[%c75_699] : memref<99xf32, #tpu.memory_space<smem>>
    %c1_700 = arith.constant 1 : index
    %c3_701 = arith.constant 3 : index
    %c5_702 = arith.constant 5 : index
    %1210 = vector.load %arg13[%c1_700, %c3_701, %c5_702] : memref<2x10x22xf32, #tpu.memory_space<vmem>>, vector<1x4x16xf32>
    %1211 = vector.shape_cast %1210 : vector<1x4x16xf32> to vector<4x16xf32>
    %1212 = vector.broadcast %1209 : f32 to vector<4x16xf32>
    %1213 = arith.mulf %1212, %1211 : vector<4x16xf32>
    %1214 = arith.addf %1208, %1213 : vector<4x16xf32>
    %c76_703 = arith.constant 76 : index
    %1215 = memref.load %arg8[%c76_703] : memref<99xf32, #tpu.memory_space<smem>>
    %c1_704 = arith.constant 1 : index
    %c3_705 = arith.constant 3 : index
    %c6_706 = arith.constant 6 : index
    %1216 = vector.load %arg13[%c1_704, %c3_705, %c6_706] : memref<2x10x22xf32, #tpu.memory_space<vmem>>, vector<1x4x16xf32>
    %1217 = vector.shape_cast %1216 : vector<1x4x16xf32> to vector<4x16xf32>
    %1218 = vector.broadcast %1215 : f32 to vector<4x16xf32>
    %1219 = arith.mulf %1218, %1217 : vector<4x16xf32>
    %1220 = arith.addf %1214, %1219 : vector<4x16xf32>
    %c77_707 = arith.constant 77 : index
    %1221 = memref.load %arg8[%c77_707] : memref<99xf32, #tpu.memory_space<smem>>
    %c1_708 = arith.constant 1 : index
    %c4_709 = arith.constant 4 : index
    %c0_710 = arith.constant 0 : index
    %1222 = vector.load %arg13[%c1_708, %c4_709, %c0_710] : memref<2x10x22xf32, #tpu.memory_space<vmem>>, vector<1x4x16xf32>
    %1223 = vector.shape_cast %1222 : vector<1x4x16xf32> to vector<4x16xf32>
    %1224 = vector.broadcast %1221 : f32 to vector<4x16xf32>
    %1225 = arith.mulf %1224, %1223 : vector<4x16xf32>
    %1226 = arith.addf %1220, %1225 : vector<4x16xf32>
    %c78_711 = arith.constant 78 : index
    %1227 = memref.load %arg8[%c78_711] : memref<99xf32, #tpu.memory_space<smem>>
    %c1_712 = arith.constant 1 : index
    %c4_713 = arith.constant 4 : index
    %c1_714 = arith.constant 1 : index
    %1228 = vector.load %arg13[%c1_712, %c4_713, %c1_714] : memref<2x10x22xf32, #tpu.memory_space<vmem>>, vector<1x4x16xf32>
    %1229 = vector.shape_cast %1228 : vector<1x4x16xf32> to vector<4x16xf32>
    %1230 = vector.broadcast %1227 : f32 to vector<4x16xf32>
    %1231 = arith.mulf %1230, %1229 : vector<4x16xf32>
    %1232 = arith.addf %1226, %1231 : vector<4x16xf32>
    %c79_715 = arith.constant 79 : index
    %1233 = memref.load %arg8[%c79_715] : memref<99xf32, #tpu.memory_space<smem>>
    %c1_716 = arith.constant 1 : index
    %c4_717 = arith.constant 4 : index
    %c2_718 = arith.constant 2 : index
    %1234 = vector.load %arg13[%c1_716, %c4_717, %c2_718] : memref<2x10x22xf32, #tpu.memory_space<vmem>>, vector<1x4x16xf32>
    %1235 = vector.shape_cast %1234 : vector<1x4x16xf32> to vector<4x16xf32>
    %1236 = vector.broadcast %1233 : f32 to vector<4x16xf32>
    %1237 = arith.mulf %1236, %1235 : vector<4x16xf32>
    %1238 = arith.addf %1232, %1237 : vector<4x16xf32>
    %c80_719 = arith.constant 80 : index
    %1239 = memref.load %arg8[%c80_719] : memref<99xf32, #tpu.memory_space<smem>>
    %c1_720 = arith.constant 1 : index
    %c4_721 = arith.constant 4 : index
    %c3_722 = arith.constant 3 : index
    %1240 = vector.load %arg13[%c1_720, %c4_721, %c3_722] : memref<2x10x22xf32, #tpu.memory_space<vmem>>, vector<1x4x16xf32>
    %1241 = vector.shape_cast %1240 : vector<1x4x16xf32> to vector<4x16xf32>
    %1242 = vector.broadcast %1239 : f32 to vector<4x16xf32>
    %1243 = arith.mulf %1242, %1241 : vector<4x16xf32>
    %1244 = arith.addf %1238, %1243 : vector<4x16xf32>
    %c81_723 = arith.constant 81 : index
    %1245 = memref.load %arg8[%c81_723] : memref<99xf32, #tpu.memory_space<smem>>
    %c1_724 = arith.constant 1 : index
    %c4_725 = arith.constant 4 : index
    %c4_726 = arith.constant 4 : index
    %1246 = vector.load %arg13[%c1_724, %c4_725, %c4_726] : memref<2x10x22xf32, #tpu.memory_space<vmem>>, vector<1x4x16xf32>
    %1247 = vector.shape_cast %1246 : vector<1x4x16xf32> to vector<4x16xf32>
    %1248 = vector.broadcast %1245 : f32 to vector<4x16xf32>
    %1249 = arith.mulf %1248, %1247 : vector<4x16xf32>
    %1250 = arith.addf %1244, %1249 : vector<4x16xf32>
    %c82_727 = arith.constant 82 : index
    %1251 = memref.load %arg8[%c82_727] : memref<99xf32, #tpu.memory_space<smem>>
    %c1_728 = arith.constant 1 : index
    %c4_729 = arith.constant 4 : index
    %c5_730 = arith.constant 5 : index
    %1252 = vector.load %arg13[%c1_728, %c4_729, %c5_730] : memref<2x10x22xf32, #tpu.memory_space<vmem>>, vector<1x4x16xf32>
    %1253 = vector.shape_cast %1252 : vector<1x4x16xf32> to vector<4x16xf32>
    %1254 = vector.broadcast %1251 : f32 to vector<4x16xf32>
    %1255 = arith.mulf %1254, %1253 : vector<4x16xf32>
    %1256 = arith.addf %1250, %1255 : vector<4x16xf32>
    %c83_731 = arith.constant 83 : index
    %1257 = memref.load %arg8[%c83_731] : memref<99xf32, #tpu.memory_space<smem>>
    %c1_732 = arith.constant 1 : index
    %c4_733 = arith.constant 4 : index
    %c6_734 = arith.constant 6 : index
    %1258 = vector.load %arg13[%c1_732, %c4_733, %c6_734] : memref<2x10x22xf32, #tpu.memory_space<vmem>>, vector<1x4x16xf32>
    %1259 = vector.shape_cast %1258 : vector<1x4x16xf32> to vector<4x16xf32>
    %1260 = vector.broadcast %1257 : f32 to vector<4x16xf32>
    %1261 = arith.mulf %1260, %1259 : vector<4x16xf32>
    %1262 = arith.addf %1256, %1261 : vector<4x16xf32>
    %c84_735 = arith.constant 84 : index
    %1263 = memref.load %arg8[%c84_735] : memref<99xf32, #tpu.memory_space<smem>>
    %c1_736 = arith.constant 1 : index
    %c5_737 = arith.constant 5 : index
    %c0_738 = arith.constant 0 : index
    %1264 = vector.load %arg13[%c1_736, %c5_737, %c0_738] : memref<2x10x22xf32, #tpu.memory_space<vmem>>, vector<1x4x16xf32>
    %1265 = vector.shape_cast %1264 : vector<1x4x16xf32> to vector<4x16xf32>
    %1266 = vector.broadcast %1263 : f32 to vector<4x16xf32>
    %1267 = arith.mulf %1266, %1265 : vector<4x16xf32>
    %1268 = arith.addf %1262, %1267 : vector<4x16xf32>
    %c85_739 = arith.constant 85 : index
    %1269 = memref.load %arg8[%c85_739] : memref<99xf32, #tpu.memory_space<smem>>
    %c1_740 = arith.constant 1 : index
    %c5_741 = arith.constant 5 : index
    %c1_742 = arith.constant 1 : index
    %1270 = vector.load %arg13[%c1_740, %c5_741, %c1_742] : memref<2x10x22xf32, #tpu.memory_space<vmem>>, vector<1x4x16xf32>
    %1271 = vector.shape_cast %1270 : vector<1x4x16xf32> to vector<4x16xf32>
    %1272 = vector.broadcast %1269 : f32 to vector<4x16xf32>
    %1273 = arith.mulf %1272, %1271 : vector<4x16xf32>
    %1274 = arith.addf %1268, %1273 : vector<4x16xf32>
    %c86_743 = arith.constant 86 : index
    %1275 = memref.load %arg8[%c86_743] : memref<99xf32, #tpu.memory_space<smem>>
    %c1_744 = arith.constant 1 : index
    %c5_745 = arith.constant 5 : index
    %c2_746 = arith.constant 2 : index
    %1276 = vector.load %arg13[%c1_744, %c5_745, %c2_746] : memref<2x10x22xf32, #tpu.memory_space<vmem>>, vector<1x4x16xf32>
    %1277 = vector.shape_cast %1276 : vector<1x4x16xf32> to vector<4x16xf32>
    %1278 = vector.broadcast %1275 : f32 to vector<4x16xf32>
    %1279 = arith.mulf %1278, %1277 : vector<4x16xf32>
    %1280 = arith.addf %1274, %1279 : vector<4x16xf32>
    %c87_747 = arith.constant 87 : index
    %1281 = memref.load %arg8[%c87_747] : memref<99xf32, #tpu.memory_space<smem>>
    %c1_748 = arith.constant 1 : index
    %c5_749 = arith.constant 5 : index
    %c3_750 = arith.constant 3 : index
    %1282 = vector.load %arg13[%c1_748, %c5_749, %c3_750] : memref<2x10x22xf32, #tpu.memory_space<vmem>>, vector<1x4x16xf32>
    %1283 = vector.shape_cast %1282 : vector<1x4x16xf32> to vector<4x16xf32>
    %1284 = vector.broadcast %1281 : f32 to vector<4x16xf32>
    %1285 = arith.mulf %1284, %1283 : vector<4x16xf32>
    %1286 = arith.addf %1280, %1285 : vector<4x16xf32>
    %c88_751 = arith.constant 88 : index
    %1287 = memref.load %arg8[%c88_751] : memref<99xf32, #tpu.memory_space<smem>>
    %c1_752 = arith.constant 1 : index
    %c5_753 = arith.constant 5 : index
    %c4_754 = arith.constant 4 : index
    %1288 = vector.load %arg13[%c1_752, %c5_753, %c4_754] : memref<2x10x22xf32, #tpu.memory_space<vmem>>, vector<1x4x16xf32>
    %1289 = vector.shape_cast %1288 : vector<1x4x16xf32> to vector<4x16xf32>
    %1290 = vector.broadcast %1287 : f32 to vector<4x16xf32>
    %1291 = arith.mulf %1290, %1289 : vector<4x16xf32>
    %1292 = arith.addf %1286, %1291 : vector<4x16xf32>
    %c89_755 = arith.constant 89 : index
    %1293 = memref.load %arg8[%c89_755] : memref<99xf32, #tpu.memory_space<smem>>
    %c1_756 = arith.constant 1 : index
    %c5_757 = arith.constant 5 : index
    %c5_758 = arith.constant 5 : index
    %1294 = vector.load %arg13[%c1_756, %c5_757, %c5_758] : memref<2x10x22xf32, #tpu.memory_space<vmem>>, vector<1x4x16xf32>
    %1295 = vector.shape_cast %1294 : vector<1x4x16xf32> to vector<4x16xf32>
    %1296 = vector.broadcast %1293 : f32 to vector<4x16xf32>
    %1297 = arith.mulf %1296, %1295 : vector<4x16xf32>
    %1298 = arith.addf %1292, %1297 : vector<4x16xf32>
    %c90_759 = arith.constant 90 : index
    %1299 = memref.load %arg8[%c90_759] : memref<99xf32, #tpu.memory_space<smem>>
    %c1_760 = arith.constant 1 : index
    %c5_761 = arith.constant 5 : index
    %c6_762 = arith.constant 6 : index
    %1300 = vector.load %arg13[%c1_760, %c5_761, %c6_762] : memref<2x10x22xf32, #tpu.memory_space<vmem>>, vector<1x4x16xf32>
    %1301 = vector.shape_cast %1300 : vector<1x4x16xf32> to vector<4x16xf32>
    %1302 = vector.broadcast %1299 : f32 to vector<4x16xf32>
    %1303 = arith.mulf %1302, %1301 : vector<4x16xf32>
    %1304 = arith.addf %1298, %1303 : vector<4x16xf32>
    %c91_763 = arith.constant 91 : index
    %1305 = memref.load %arg8[%c91_763] : memref<99xf32, #tpu.memory_space<smem>>
    %c1_764 = arith.constant 1 : index
    %c6_765 = arith.constant 6 : index
    %c0_766 = arith.constant 0 : index
    %1306 = vector.load %arg13[%c1_764, %c6_765, %c0_766] : memref<2x10x22xf32, #tpu.memory_space<vmem>>, vector<1x4x16xf32>
    %1307 = vector.shape_cast %1306 : vector<1x4x16xf32> to vector<4x16xf32>
    %1308 = vector.broadcast %1305 : f32 to vector<4x16xf32>
    %1309 = arith.mulf %1308, %1307 : vector<4x16xf32>
    %1310 = arith.addf %1304, %1309 : vector<4x16xf32>
    %c92_767 = arith.constant 92 : index
    %1311 = memref.load %arg8[%c92_767] : memref<99xf32, #tpu.memory_space<smem>>
    %c1_768 = arith.constant 1 : index
    %c6_769 = arith.constant 6 : index
    %c1_770 = arith.constant 1 : index
    %1312 = vector.load %arg13[%c1_768, %c6_769, %c1_770] : memref<2x10x22xf32, #tpu.memory_space<vmem>>, vector<1x4x16xf32>
    %1313 = vector.shape_cast %1312 : vector<1x4x16xf32> to vector<4x16xf32>
    %1314 = vector.broadcast %1311 : f32 to vector<4x16xf32>
    %1315 = arith.mulf %1314, %1313 : vector<4x16xf32>
    %1316 = arith.addf %1310, %1315 : vector<4x16xf32>
    %c93_771 = arith.constant 93 : index
    %1317 = memref.load %arg8[%c93_771] : memref<99xf32, #tpu.memory_space<smem>>
    %c1_772 = arith.constant 1 : index
    %c6_773 = arith.constant 6 : index
    %c2_774 = arith.constant 2 : index
    %1318 = vector.load %arg13[%c1_772, %c6_773, %c2_774] : memref<2x10x22xf32, #tpu.memory_space<vmem>>, vector<1x4x16xf32>
    %1319 = vector.shape_cast %1318 : vector<1x4x16xf32> to vector<4x16xf32>
    %1320 = vector.broadcast %1317 : f32 to vector<4x16xf32>
    %1321 = arith.mulf %1320, %1319 : vector<4x16xf32>
    %1322 = arith.addf %1316, %1321 : vector<4x16xf32>
    %c94_775 = arith.constant 94 : index
    %1323 = memref.load %arg8[%c94_775] : memref<99xf32, #tpu.memory_space<smem>>
    %c1_776 = arith.constant 1 : index
    %c6_777 = arith.constant 6 : index
    %c3_778 = arith.constant 3 : index
    %1324 = vector.load %arg13[%c1_776, %c6_777, %c3_778] : memref<2x10x22xf32, #tpu.memory_space<vmem>>, vector<1x4x16xf32>
    %1325 = vector.shape_cast %1324 : vector<1x4x16xf32> to vector<4x16xf32>
    %1326 = vector.broadcast %1323 : f32 to vector<4x16xf32>
    %1327 = arith.mulf %1326, %1325 : vector<4x16xf32>
    %1328 = arith.addf %1322, %1327 : vector<4x16xf32>
    %c95_779 = arith.constant 95 : index
    %1329 = memref.load %arg8[%c95_779] : memref<99xf32, #tpu.memory_space<smem>>
    %c1_780 = arith.constant 1 : index
    %c6_781 = arith.constant 6 : index
    %c4_782 = arith.constant 4 : index
    %1330 = vector.load %arg13[%c1_780, %c6_781, %c4_782] : memref<2x10x22xf32, #tpu.memory_space<vmem>>, vector<1x4x16xf32>
    %1331 = vector.shape_cast %1330 : vector<1x4x16xf32> to vector<4x16xf32>
    %1332 = vector.broadcast %1329 : f32 to vector<4x16xf32>
    %1333 = arith.mulf %1332, %1331 : vector<4x16xf32>
    %1334 = arith.addf %1328, %1333 : vector<4x16xf32>
    %c96_783 = arith.constant 96 : index
    %1335 = memref.load %arg8[%c96_783] : memref<99xf32, #tpu.memory_space<smem>>
    %c1_784 = arith.constant 1 : index
    %c6_785 = arith.constant 6 : index
    %c5_786 = arith.constant 5 : index
    %1336 = vector.load %arg13[%c1_784, %c6_785, %c5_786] : memref<2x10x22xf32, #tpu.memory_space<vmem>>, vector<1x4x16xf32>
    %1337 = vector.shape_cast %1336 : vector<1x4x16xf32> to vector<4x16xf32>
    %1338 = vector.broadcast %1335 : f32 to vector<4x16xf32>
    %1339 = arith.mulf %1338, %1337 : vector<4x16xf32>
    %1340 = arith.addf %1334, %1339 : vector<4x16xf32>
    %c97_787 = arith.constant 97 : index
    %1341 = memref.load %arg8[%c97_787] : memref<99xf32, #tpu.memory_space<smem>>
    %c1_788 = arith.constant 1 : index
    %c6_789 = arith.constant 6 : index
    %c6_790 = arith.constant 6 : index
    %1342 = vector.load %arg13[%c1_788, %c6_789, %c6_790] : memref<2x10x22xf32, #tpu.memory_space<vmem>>, vector<1x4x16xf32>
    %1343 = vector.shape_cast %1342 : vector<1x4x16xf32> to vector<4x16xf32>
    %1344 = vector.broadcast %1341 : f32 to vector<4x16xf32>
    %1345 = arith.mulf %1344, %1343 : vector<4x16xf32>
    %1346 = arith.addf %1340, %1345 : vector<4x16xf32>
    %c98_791 = arith.constant 98 : index
    %1347 = memref.load %arg8[%c98_791] : memref<99xf32, #tpu.memory_space<smem>>
    %1348 = vector.broadcast %1347 : f32 to vector<4x16xf32>
    %1349 = arith.addf %1346, %1348 : vector<4x16xf32>
    %cst_792 = arith.constant 0.000000e+00 : f32
    %1350 = vector.broadcast %cst_792 : f32 to vector<4x16xf32>
    %1351 = arith.subf %1350, %1349 : vector<4x16xf32>
    %1352 = math.exp %1351 : vector<4x16xf32>
    %cst_793 = arith.constant 1.000000e+00 : f32
    %1353 = vector.broadcast %cst_793 : f32 to vector<4x16xf32>
    %1354 = arith.addf %1353, %1352 : vector<4x16xf32>
    %cst_794 = arith.constant 1.000000e+00 : f32
    %1355 = vector.broadcast %cst_794 : f32 to vector<4x16xf32>
    %1356 = arith.divf %1355, %1354 : vector<4x16xf32>
    %1357 = arith.mulf %1349, %1356 : vector<4x16xf32>
    %cst_795 = arith.constant 0.000000e+00 : f32
    %1358 = vector.broadcast %cst_795 : f32 to vector<4x16xf32>
    %1359 = arith.subf %1358, %1357 : vector<4x16xf32>
    %1360 = math.exp %1359 : vector<4x16xf32>
    %cst_796 = arith.constant 1.000000e+00 : f32
    %1361 = vector.broadcast %cst_796 : f32 to vector<4x16xf32>
    %1362 = arith.addf %1361, %1360 : vector<4x16xf32>
    %cst_797 = arith.constant 1.000000e+00 : f32
    %1363 = vector.broadcast %cst_797 : f32 to vector<4x16xf32>
    %1364 = arith.divf %1363, %1362 : vector<4x16xf32>
    %1365 = vector.extract_strided_slice %1364 {offsets = [0, 0], sizes = [4, 1], strides = [1, 1]} : vector<4x16xf32> to vector<4x1xf32>
    %1366 = vector.shape_cast %1365 : vector<4x1xf32> to vector<4x1xf32>
    %1367 = vector.broadcast %1366 : vector<4x1xf32> to vector<4x16xf32>
    %c0_798 = arith.constant 0 : index
    %c0_799 = arith.constant 0 : index
    %1368 = vector.load %arg14[%c0_798, %c0_799] : memref<4x256xf32, #tpu.memory_space<vmem>>, vector<4x16xf32>
    tpu.vector_store %arg14[%c0_798, %c0_799], %1367 {strides = array<i32>} : memref<4x256xf32, #tpu.memory_space<vmem>>, vector<4x16xf32>,
    %1369 = vector.extract_strided_slice %1364 {offsets = [0, 1], sizes = [4, 1], strides = [1, 1]} : vector<4x16xf32> to vector<4x1xf32>
    %1370 = vector.shape_cast %1369 : vector<4x1xf32> to vector<4x1xf32>
    %1371 = vector.broadcast %1370 : vector<4x1xf32> to vector<4x16xf32>
    %c0_800 = arith.constant 0 : index
    %c16_801 = arith.constant 16 : index
    %1372 = vector.load %arg14[%c0_800, %c16_801] : memref<4x256xf32, #tpu.memory_space<vmem>>, vector<4x16xf32>
    tpu.vector_store %arg14[%c0_800, %c16_801], %1371 {strides = array<i32>} : memref<4x256xf32, #tpu.memory_space<vmem>>, vector<4x16xf32>,
    %1373 = vector.extract_strided_slice %1364 {offsets = [0, 2], sizes = [4, 1], strides = [1, 1]} : vector<4x16xf32> to vector<4x1xf32>
    %1374 = vector.shape_cast %1373 : vector<4x1xf32> to vector<4x1xf32>
    %1375 = vector.broadcast %1374 : vector<4x1xf32> to vector<4x16xf32>
    %c0_802 = arith.constant 0 : index
    %c32_803 = arith.constant 32 : index
    %1376 = vector.load %arg14[%c0_802, %c32_803] : memref<4x256xf32, #tpu.memory_space<vmem>>, vector<4x16xf32>
    tpu.vector_store %arg14[%c0_802, %c32_803], %1375 {strides = array<i32>} : memref<4x256xf32, #tpu.memory_space<vmem>>, vector<4x16xf32>,
    %1377 = vector.extract_strided_slice %1364 {offsets = [0, 3], sizes = [4, 1], strides = [1, 1]} : vector<4x16xf32> to vector<4x1xf32>
    %1378 = vector.shape_cast %1377 : vector<4x1xf32> to vector<4x1xf32>
    %1379 = vector.broadcast %1378 : vector<4x1xf32> to vector<4x16xf32>
    %c0_804 = arith.constant 0 : index
    %c48_805 = arith.constant 48 : index
    %1380 = vector.load %arg14[%c0_804, %c48_805] : memref<4x256xf32, #tpu.memory_space<vmem>>, vector<4x16xf32>
    tpu.vector_store %arg14[%c0_804, %c48_805], %1379 {strides = array<i32>} : memref<4x256xf32, #tpu.memory_space<vmem>>, vector<4x16xf32>,
    %1381 = vector.extract_strided_slice %1364 {offsets = [0, 4], sizes = [4, 1], strides = [1, 1]} : vector<4x16xf32> to vector<4x1xf32>
    %1382 = vector.shape_cast %1381 : vector<4x1xf32> to vector<4x1xf32>
    %1383 = vector.broadcast %1382 : vector<4x1xf32> to vector<4x16xf32>
    %c0_806 = arith.constant 0 : index
    %c64_807 = arith.constant 64 : index
    %1384 = vector.load %arg14[%c0_806, %c64_807] : memref<4x256xf32, #tpu.memory_space<vmem>>, vector<4x16xf32>
    tpu.vector_store %arg14[%c0_806, %c64_807], %1383 {strides = array<i32>} : memref<4x256xf32, #tpu.memory_space<vmem>>, vector<4x16xf32>,
    %1385 = vector.extract_strided_slice %1364 {offsets = [0, 5], sizes = [4, 1], strides = [1, 1]} : vector<4x16xf32> to vector<4x1xf32>
    %1386 = vector.shape_cast %1385 : vector<4x1xf32> to vector<4x1xf32>
    %1387 = vector.broadcast %1386 : vector<4x1xf32> to vector<4x16xf32>
    %c0_808 = arith.constant 0 : index
    %c80_809 = arith.constant 80 : index
    %1388 = vector.load %arg14[%c0_808, %c80_809] : memref<4x256xf32, #tpu.memory_space<vmem>>, vector<4x16xf32>
    tpu.vector_store %arg14[%c0_808, %c80_809], %1387 {strides = array<i32>} : memref<4x256xf32, #tpu.memory_space<vmem>>, vector<4x16xf32>,
    %1389 = vector.extract_strided_slice %1364 {offsets = [0, 6], sizes = [4, 1], strides = [1, 1]} : vector<4x16xf32> to vector<4x1xf32>
    %1390 = vector.shape_cast %1389 : vector<4x1xf32> to vector<4x1xf32>
    %1391 = vector.broadcast %1390 : vector<4x1xf32> to vector<4x16xf32>
    %c0_810 = arith.constant 0 : index
    %c96_811 = arith.constant 96 : index
    %1392 = vector.load %arg14[%c0_810, %c96_811] : memref<4x256xf32, #tpu.memory_space<vmem>>, vector<4x16xf32>
    tpu.vector_store %arg14[%c0_810, %c96_811], %1391 {strides = array<i32>} : memref<4x256xf32, #tpu.memory_space<vmem>>, vector<4x16xf32>,
    %1393 = vector.extract_strided_slice %1364 {offsets = [0, 7], sizes = [4, 1], strides = [1, 1]} : vector<4x16xf32> to vector<4x1xf32>
    %1394 = vector.shape_cast %1393 : vector<4x1xf32> to vector<4x1xf32>
    %1395 = vector.broadcast %1394 : vector<4x1xf32> to vector<4x16xf32>
    %c0_812 = arith.constant 0 : index
    %c112_813 = arith.constant 112 : index
    %1396 = vector.load %arg14[%c0_812, %c112_813] : memref<4x256xf32, #tpu.memory_space<vmem>>, vector<4x16xf32>
    tpu.vector_store %arg14[%c0_812, %c112_813], %1395 {strides = array<i32>} : memref<4x256xf32, #tpu.memory_space<vmem>>, vector<4x16xf32>,
    %1397 = vector.extract_strided_slice %1364 {offsets = [0, 8], sizes = [4, 1], strides = [1, 1]} : vector<4x16xf32> to vector<4x1xf32>
    %1398 = vector.shape_cast %1397 : vector<4x1xf32> to vector<4x1xf32>
    %1399 = vector.broadcast %1398 : vector<4x1xf32> to vector<4x16xf32>
    %c0_814 = arith.constant 0 : index
    %c128_815 = arith.constant 128 : index
    %1400 = vector.load %arg14[%c0_814, %c128_815] : memref<4x256xf32, #tpu.memory_space<vmem>>, vector<4x16xf32>
    tpu.vector_store %arg14[%c0_814, %c128_815], %1399 {strides = array<i32>} : memref<4x256xf32, #tpu.memory_space<vmem>>, vector<4x16xf32>,
    %1401 = vector.extract_strided_slice %1364 {offsets = [0, 9], sizes = [4, 1], strides = [1, 1]} : vector<4x16xf32> to vector<4x1xf32>
    %1402 = vector.shape_cast %1401 : vector<4x1xf32> to vector<4x1xf32>
    %1403 = vector.broadcast %1402 : vector<4x1xf32> to vector<4x16xf32>
    %c0_816 = arith.constant 0 : index
    %c144_817 = arith.constant 144 : index
    %1404 = vector.load %arg14[%c0_816, %c144_817] : memref<4x256xf32, #tpu.memory_space<vmem>>, vector<4x16xf32>
    tpu.vector_store %arg14[%c0_816, %c144_817], %1403 {strides = array<i32>} : memref<4x256xf32, #tpu.memory_space<vmem>>, vector<4x16xf32>,
    %1405 = vector.extract_strided_slice %1364 {offsets = [0, 10], sizes = [4, 1], strides = [1, 1]} : vector<4x16xf32> to vector<4x1xf32>
    %1406 = vector.shape_cast %1405 : vector<4x1xf32> to vector<4x1xf32>
    %1407 = vector.broadcast %1406 : vector<4x1xf32> to vector<4x16xf32>
    %c0_818 = arith.constant 0 : index
    %c160_819 = arith.constant 160 : index
    %1408 = vector.load %arg14[%c0_818, %c160_819] : memref<4x256xf32, #tpu.memory_space<vmem>>, vector<4x16xf32>
    tpu.vector_store %arg14[%c0_818, %c160_819], %1407 {strides = array<i32>} : memref<4x256xf32, #tpu.memory_space<vmem>>, vector<4x16xf32>,
    %1409 = vector.extract_strided_slice %1364 {offsets = [0, 11], sizes = [4, 1], strides = [1, 1]} : vector<4x16xf32> to vector<4x1xf32>
    %1410 = vector.shape_cast %1409 : vector<4x1xf32> to vector<4x1xf32>
    %1411 = vector.broadcast %1410 : vector<4x1xf32> to vector<4x16xf32>
    %c0_820 = arith.constant 0 : index
    %c176_821 = arith.constant 176 : index
    %1412 = vector.load %arg14[%c0_820, %c176_821] : memref<4x256xf32, #tpu.memory_space<vmem>>, vector<4x16xf32>
    tpu.vector_store %arg14[%c0_820, %c176_821], %1411 {strides = array<i32>} : memref<4x256xf32, #tpu.memory_space<vmem>>, vector<4x16xf32>,
    %1413 = vector.extract_strided_slice %1364 {offsets = [0, 12], sizes = [4, 1], strides = [1, 1]} : vector<4x16xf32> to vector<4x1xf32>
    %1414 = vector.shape_cast %1413 : vector<4x1xf32> to vector<4x1xf32>
    %1415 = vector.broadcast %1414 : vector<4x1xf32> to vector<4x16xf32>
    %c0_822 = arith.constant 0 : index
    %c192_823 = arith.constant 192 : index
    %1416 = vector.load %arg14[%c0_822, %c192_823] : memref<4x256xf32, #tpu.memory_space<vmem>>, vector<4x16xf32>
    tpu.vector_store %arg14[%c0_822, %c192_823], %1415 {strides = array<i32>} : memref<4x256xf32, #tpu.memory_space<vmem>>, vector<4x16xf32>,
    %1417 = vector.extract_strided_slice %1364 {offsets = [0, 13], sizes = [4, 1], strides = [1, 1]} : vector<4x16xf32> to vector<4x1xf32>
    %1418 = vector.shape_cast %1417 : vector<4x1xf32> to vector<4x1xf32>
    %1419 = vector.broadcast %1418 : vector<4x1xf32> to vector<4x16xf32>
    %c0_824 = arith.constant 0 : index
    %c208_825 = arith.constant 208 : index
    %1420 = vector.load %arg14[%c0_824, %c208_825] : memref<4x256xf32, #tpu.memory_space<vmem>>, vector<4x16xf32>
    tpu.vector_store %arg14[%c0_824, %c208_825], %1419 {strides = array<i32>} : memref<4x256xf32, #tpu.memory_space<vmem>>, vector<4x16xf32>,
    %1421 = vector.extract_strided_slice %1364 {offsets = [0, 14], sizes = [4, 1], strides = [1, 1]} : vector<4x16xf32> to vector<4x1xf32>
    %1422 = vector.shape_cast %1421 : vector<4x1xf32> to vector<4x1xf32>
    %1423 = vector.broadcast %1422 : vector<4x1xf32> to vector<4x16xf32>
    %c0_826 = arith.constant 0 : index
    %c224_827 = arith.constant 224 : index
    %1424 = vector.load %arg14[%c0_826, %c224_827] : memref<4x256xf32, #tpu.memory_space<vmem>>, vector<4x16xf32>
    tpu.vector_store %arg14[%c0_826, %c224_827], %1423 {strides = array<i32>} : memref<4x256xf32, #tpu.memory_space<vmem>>, vector<4x16xf32>,
    %1425 = vector.extract_strided_slice %1364 {offsets = [0, 15], sizes = [4, 1], strides = [1, 1]} : vector<4x16xf32> to vector<4x1xf32>
    %1426 = vector.shape_cast %1425 : vector<4x1xf32> to vector<4x1xf32>
    %1427 = vector.broadcast %1426 : vector<4x1xf32> to vector<4x16xf32>
    %c0_828 = arith.constant 0 : index
    %c240_829 = arith.constant 240 : index
    %1428 = vector.load %arg14[%c0_828, %c240_829] : memref<4x256xf32, #tpu.memory_space<vmem>>, vector<4x16xf32>
    tpu.vector_store %arg14[%c0_828, %c240_829], %1427 {strides = array<i32>} : memref<4x256xf32, #tpu.memory_space<vmem>>, vector<4x16xf32>,
    %c0_830 = arith.constant 0 : index
    %c0_831 = arith.constant 0 : index
    %1429 = vector.load %arg14[%c0_830, %c0_831] : memref<4x256xf32, #tpu.memory_space<vmem>>, vector<4x256xf32>
    %1430 = arith.mulf %3, %1429 : vector<4x256xf32>
    %cst_832 = arith.constant 0.000000e+00 : f32
    %1431 = vector.broadcast %cst_832 : f32 to vector<8x256xf32>
    %c0_833 = arith.constant 0 : index
    %c0_834 = arith.constant 0 : index
    %1432 = vector.load %arg5[%c0_833, %c0_834] : memref<8x4xf32, #tpu.memory_space<vmem>>, vector<8x1xf32>
    %1433 = vector.extract_strided_slice %1430 {offsets = [0, 0], sizes = [1, 256], strides = [1, 1]} : vector<4x256xf32> to vector<1x256xf32>
    %1434 = vector.broadcast %1432 : vector<8x1xf32> to vector<8x256xf32>
    %1435 = vector.broadcast %1433 : vector<1x256xf32> to vector<8x256xf32>
    %1436 = arith.mulf %1434, %1435 : vector<8x256xf32>
    %1437 = arith.addf %1431, %1436 : vector<8x256xf32>
    %c0_835 = arith.constant 0 : index
    %c1_836 = arith.constant 1 : index
    %1438 = vector.load %arg5[%c0_835, %c1_836] : memref<8x4xf32, #tpu.memory_space<vmem>>, vector<8x1xf32>
    %1439 = vector.extract_strided_slice %1430 {offsets = [1, 0], sizes = [1, 256], strides = [1, 1]} : vector<4x256xf32> to vector<1x256xf32>
    %1440 = vector.broadcast %1438 : vector<8x1xf32> to vector<8x256xf32>
    %1441 = vector.broadcast %1439 : vector<1x256xf32> to vector<8x256xf32>
    %1442 = arith.mulf %1440, %1441 : vector<8x256xf32>
    %1443 = arith.addf %1437, %1442 : vector<8x256xf32>
    %c0_837 = arith.constant 0 : index
    %c2_838 = arith.constant 2 : index
    %1444 = vector.load %arg5[%c0_837, %c2_838] : memref<8x4xf32, #tpu.memory_space<vmem>>, vector<8x1xf32>
    %1445 = vector.extract_strided_slice %1430 {offsets = [2, 0], sizes = [1, 256], strides = [1, 1]} : vector<4x256xf32> to vector<1x256xf32>
    %1446 = vector.broadcast %1444 : vector<8x1xf32> to vector<8x256xf32>
    %1447 = vector.broadcast %1445 : vector<1x256xf32> to vector<8x256xf32>
    %1448 = arith.mulf %1446, %1447 : vector<8x256xf32>
    %1449 = arith.addf %1443, %1448 : vector<8x256xf32>
    %c0_839 = arith.constant 0 : index
    %c3_840 = arith.constant 3 : index
    %1450 = vector.load %arg5[%c0_839, %c3_840] : memref<8x4xf32, #tpu.memory_space<vmem>>, vector<8x1xf32>
    %1451 = vector.extract_strided_slice %1430 {offsets = [3, 0], sizes = [1, 256], strides = [1, 1]} : vector<4x256xf32> to vector<1x256xf32>
    %1452 = vector.broadcast %1450 : vector<8x1xf32> to vector<8x256xf32>
    %1453 = vector.broadcast %1451 : vector<1x256xf32> to vector<8x256xf32>
    %1454 = arith.mulf %1452, %1453 : vector<8x256xf32>
    %1455 = arith.addf %1449, %1454 : vector<8x256xf32>
    %c0_841 = arith.constant 0 : index
    %c0_842 = arith.constant 0 : index
    %1456 = vector.load %arg6[%c0_841, %c0_842] : memref<8x1xf32, #tpu.memory_space<vmem>>, vector<8x1xf32>
    %1457 = vector.broadcast %1456 : vector<8x1xf32> to vector<8x256xf32>
    %1458 = arith.addf %1455, %1457 : vector<8x256xf32>
    %cst_843 = arith.constant 0.000000e+00 : f32
    %1459 = vector.broadcast %cst_843 : f32 to vector<8x256xf32>
    %1460 = arith.subf %1459, %1458 : vector<8x256xf32>
    %1461 = math.exp %1460 : vector<8x256xf32>
    %cst_844 = arith.constant 1.000000e+00 : f32
    %1462 = vector.broadcast %cst_844 : f32 to vector<8x256xf32>
    %1463 = arith.addf %1462, %1461 : vector<8x256xf32>
    %cst_845 = arith.constant 1.000000e+00 : f32
    %1464 = vector.broadcast %cst_845 : f32 to vector<8x256xf32>
    %1465 = arith.divf %1464, %1463 : vector<8x256xf32>
    %1466 = arith.mulf %1458, %1465 : vector<8x256xf32>
    %c0_846 = arith.constant 0 : index
    %1467 = memref.load %arg10[%c0_846] : memref<3xf32, #tpu.memory_space<smem>>
    %1468 = vector.broadcast %1467 : f32 to vector<8x256xf32>
    %1469 = arith.mulf %1468, %72 : vector<8x256xf32>
    %c1_847 = arith.constant 1 : index
    %1470 = memref.load %arg10[%c1_847] : memref<3xf32, #tpu.memory_space<smem>>
    %1471 = vector.broadcast %1470 : f32 to vector<8x256xf32>
    %1472 = arith.mulf %1471, %745 : vector<8x256xf32>
    %1473 = arith.addf %1469, %1472 : vector<8x256xf32>
    %c2_848 = arith.constant 2 : index
    %1474 = memref.load %arg10[%c2_848] : memref<3xf32, #tpu.memory_space<smem>>
    %1475 = vector.broadcast %1474 : f32 to vector<8x256xf32>
    %1476 = arith.mulf %1475, %1466 : vector<8x256xf32>
    %1477 = arith.addf %1473, %1476 : vector<8x256xf32>
    %c0_849 = arith.constant 0 : index
    %c0_850 = arith.constant 0 : index
    %c0_851 = arith.constant 0 : index
    %1478 = vector.load %arg11[%c0_849, %c0_850, %c0_851] : memref<1x8x256xf32, #tpu.memory_space<vmem>>, vector<1x8x256xf32>
    %1479 = vector.shape_cast %1478 : vector<1x8x256xf32> to vector<8x256xf32>
    %1480 = vector.shape_cast %1477 : vector<8x256xf32> to vector<1x8x256xf32>
    tpu.vector_store %arg11[%c0_849, %c0_850, %c0_851], %1480 {strides = array<i32>} : memref<1x8x256xf32, #tpu.memory_space<vmem>>, vector<1x8x256xf32>,
    return
  }
  func.func @transform_0(%arg0: i32) -> (i32, i32, i32, i32) {
    %c0_i32 = arith.constant 0 : i32
    %c0_i32_0 = arith.constant 0 : i32
    %c0_i32_1 = arith.constant 0 : i32
    %c0_i32_2 = arith.constant 0 : i32
    return %arg0, %c0_i32, %c0_i32_0, %c0_i32_1 : i32, i32, i32, i32
  }
  func.func @transform_1(%arg0: i32) -> (i32, i32, i32) {
    %c0_i32 = arith.constant 0 : i32
    %c0_i32_0 = arith.constant 0 : i32
    %c0_i32_1 = arith.constant 0 : i32
    return %arg0, %c0_i32, %c0_i32_0 : i32, i32, i32
  }
  func.func @transform_2(%arg0: i32) -> (i32, i32) {
    %c0_i32 = arith.constant 0 : i32
    %c0_i32_0 = arith.constant 0 : i32
    %c0_i32_1 = arith.constant 0 : i32
    return %c0_i32, %c0_i32_0 : i32, i32
  }
  func.func @transform_3(%arg0: i32) -> (i32, i32) {
    %c0_i32 = arith.constant 0 : i32
    %c0_i32_0 = arith.constant 0 : i32
    %c0_i32_1 = arith.constant 0 : i32
    return %c0_i32, %c0_i32_0 : i32, i32
  }
  func.func @transform_4(%arg0: i32) -> (i32, i32) {
    %c0_i32 = arith.constant 0 : i32
    %c0_i32_0 = arith.constant 0 : i32
    %c0_i32_1 = arith.constant 0 : i32
    return %c0_i32, %c0_i32_0 : i32, i32
  }
  func.func @transform_5(%arg0: i32) -> (i32, i32) {
    %c0_i32 = arith.constant 0 : i32
    %c0_i32_0 = arith.constant 0 : i32
    %c0_i32_1 = arith.constant 0 : i32
    return %c0_i32, %c0_i32_0 : i32, i32
  }
  func.func @transform_6(%arg0: i32) -> i32 {
    %c0_i32 = arith.constant 0 : i32
    %c0_i32_0 = arith.constant 0 : i32
    return %c0_i32 : i32
  }
  func.func @transform_7(%arg0: i32) -> i32 {
    %c0_i32 = arith.constant 0 : i32
    %c0_i32_0 = arith.constant 0 : i32
    return %c0_i32 : i32
  }
  func.func @transform_8(%arg0: i32) -> i32 {
    %c0_i32 = arith.constant 0 : i32
    %c0_i32_0 = arith.constant 0 : i32
    return %c0_i32 : i32
  }
  func.func @transform_9(%arg0: i32) -> i32 {
    %c0_i32 = arith.constant 0 : i32
    %c0_i32_0 = arith.constant 0 : i32
    return %c0_i32 : i32
  }
  func.func @transform_10(%arg0: i32) -> (i32, i32, i32) {
    %c0_i32 = arith.constant 0 : i32
    %c0_i32_0 = arith.constant 0 : i32
    %c0_i32_1 = arith.constant 0 : i32
    return %arg0, %c0_i32, %c0_i32_0 : i32, i32, i32
  }
}

</mosaic_0001>

<llo_original>
// kernel: squeeze.2
$region0: #{squeeze.2}
  %s0 = inlined_call_operand.vmem [shape: f32[1,2,7,7], index: 0, kind: input, shape index: {}]
  %s1 = inlined_call_operand.vmem [shape: f32[98], index: 1, kind: output, shape index: {}]
  $region1: #{squeeze.2} parent=0
    #allocation0 [shape = 'u8[4096]{0}', space=vmem, size = 0x1000, scoped, tag = 'scoped mem for output reshape']
    %v2 = vld [vmem:[%s0] sm:$0x1]
    %vm3 = vcmask 56320
    %4 = vst.msk [vmem:[#allocation0] sm:$0x1] %vm3, %v2
    %s5 = scalar_lea.vmem %s0, 14
    %v6 = vld [vmem:[%s5] sm:$0x1]
    %7 = vrot.lane.b32.xlu0 %v6, 91
    %v8 = vpop.permute.xlu0 %7
    %vm9 = vcmask 802520
    %10 = vst.msk [vmem:[#allocation0] sm:$0x1] %vm9, %v8
    %s11 = scalar_lea.vmem %s0, 13
    %v12 = vld [vmem:[%s11] sm:$0x1]
    %13 = vrot.lane.b32.xlu0 %v12, 84
    %v14 = vpop.permute.xlu0 %13
    %vm15 = vcmask 745120
    %16 = vst.msk [vmem:[#allocation0] sm:$0x1] %vm15, %v14
    %s17 = scalar_lea.vmem %s0, 12
    %v18 = vld [vmem:[%s17] sm:$0x1]
    %19 = vrot.lane.b32.xlu0 %v18, 77
    %v20 = vpop.permute.xlu0 %19
    %vm21 = vcmask 687720
    %22 = vst.msk [vmem:[#allocation0] sm:$0x1] %vm21, %v20
    %s23 = scalar_lea.vmem %s0, 11
    %v24 = vld [vmem:[%s23] sm:$0x1]
    %25 = vrot.lane.b32.xlu0 %v24, 70
    %v26 = vpop.permute.xlu0 %25
    %vm27 = vcmask 630320
    %28 = vst.msk [vmem:[#allocation0] sm:$0x1] %vm27, %v26
    %s29 = scalar_lea.vmem %s0, 10
    %v30 = vld [vmem:[%s29] sm:$0x1]
    %31 = vrot.lane.b32.xlu0 %v30, 63
    %v32 = vpop.permute.xlu0 %31
    %vm33 = vcmask 572920
    %34 = vst.msk [vmem:[#allocation0] sm:$0x1] %vm33, %v32
    %s35 = scalar_lea.vmem %s0, 9
    %v36 = vld [vmem:[%s35] sm:$0x1]
    %37 = vrot.lane.b32.xlu0 %v36, 56
    %v38 = vpop.permute.xlu0 %37
    %vm39 = vcmask 515520
    %40 = vst.msk [vmem:[#allocation0] sm:$0x1] %vm39, %v38
    %s41 = scalar_lea.vmem %s0, 8
    %v42 = vld [vmem:[%s41] sm:$0x1]
    %43 = vrot.lane.b32.xlu0 %v42, 49
    %v44 = vpop.permute.xlu0 %43
    %vm45 = vcmask 458120
    %46 = vst.msk [vmem:[#allocation0] sm:$0x1] %vm45, %v44
    %s47 = scalar_lea.vmem %s0, 6
    %v48 = vld [vmem:[%s47] sm:$0x1]
    %49 = vrot.lane.b32.xlu0 %v48, 42
    %v50 = vpop.permute.xlu0 %49
    %vm51 = vcmask 400720
    %52 = vst.msk [vmem:[#allocation0] sm:$0x1] %vm51, %v50
    %s53 = scalar_lea.vmem %s0, 5
    %v54 = vld [vmem:[%s53] sm:$0x1]
    %55 = vrot.lane.b32.xlu0 %v54, 35
    %v56 = vpop.permute.xlu0 %55
    %vm57 = vcmask 343320
    %58 = vst.msk [vmem:[#allocation0] sm:$0x1] %vm57, %v56
    %s59 = scalar_lea.vmem %s0, 4
    %v60 = vld [vmem:[%s59] sm:$0x1]
    %61 = vrot.lane.b32.xlu0 %v60, 28
    %v62 = vpop.permute.xlu0 %61
    %vm63 = vcmask 285920
    %64 = vst.msk [vmem:[#allocation0] sm:$0x1] %vm63, %v62
    %s65 = scalar_lea.vmem %s0, 3
    %v66 = vld [vmem:[%s65] sm:$0x1]
    %67 = vrot.lane.b32.xlu0 %v66, 21
    %v68 = vpop.permute.xlu0 %67
    %vm69 = vcmask 228520
    %70 = vst.msk [vmem:[#allocation0] sm:$0x1] %vm69, %v68
    %s71 = scalar_lea.vmem %s0, 2
    %v72 = vld [vmem:[%s71] sm:$0x1]
    %73 = vrot.lane.b32.xlu0 %v72, 14
    %v74 = vpop.permute.xlu0 %73
    %vm75 = vcmask 171120
    %76 = vst.msk [vmem:[#allocation0] sm:$0x1] %vm75, %v74
    %s77 = scalar_lea.vmem %s0, 1
    %v78 = vld [vmem:[%s77] sm:$0x1]
    %79 = vrot.lane.b32.xlu0 %v78, 7
    %v80 = vpop.permute.xlu0 %79
    %vm81 = vcmask 113720
    %82 = vst.msk [vmem:[#allocation0] sm:$0x1] %vm81, %v80
    %s84 = sshll.u32 1, 1
    %s85 = ssub.s32 %s84, 1
    %v87 = vld [vmem:[#allocation0] sm:%s85]
    %s88 = sshll.u32 1, 1
    %s89 = ssub.s32 %s88, 1
    %90 = vst [vmem:[%s1] sm:%s89] %v87

// kernel: triplet_attention_conv_w.1
$region0: #{triplet_attention_conv_w.1}
  #allocation0 [shape = 'u32[]', space=smem, size = 0x4, offset = 0x4, fixed_abs, tag = 'smem constant byte address 0x4 - core index']
  #allocation1 [shape = 'u32[144,128]{1,0:T(1,128)}', space=vmem, size = 0x12000, scoped, tag = 'internal scratch']
  #allocation2 [shape = 'f32[2,10,22]{2,1,0:T(8,128)}', space=vmem, size = 0x4000, scoped, tag = 'scratch operand']
  #allocation3 [shape = 'f32[2,10,22]{2,1,0:T(8,128)}', space=vmem, size = 0x4000, scoped, tag = 'scratch operand']
  #allocation4 [shape = 'f32[4,256]{1,0:T(4,128)}', space=vmem, size = 0x1000, scoped, tag = 'scratch operand']
  %s0 = inlined_call_operand.vmem [shape: f32[2,4,16,16], index: 0, kind: input, shape index: {}]
  %s1 = inlined_call_operand.vmem [shape: f32[2,4,256], index: 1, kind: input, shape index: {}]
  %s2 = inlined_call_operand.vmem [shape: f32[8,4], index: 2, kind: input, shape index: {}]
  %s3 = inlined_call_operand.vmem [shape: f32[8,1], index: 3, kind: input, shape index: {}]
  %s4 = inlined_call_operand.vmem [shape: f32[8,4], index: 4, kind: input, shape index: {}]
  %s5 = inlined_call_operand.vmem [shape: f32[8,1], index: 5, kind: input, shape index: {}]
  %s6 = inlined_call_operand.vmem [shape: f32[99], index: 6, kind: input, shape index: {}]
  %s7 = inlined_call_operand.vmem [shape: f32[99], index: 7, kind: input, shape index: {}]
  %s8 = inlined_call_operand.vmem [shape: f32[3], index: 8, kind: input, shape index: {}]
  %s9 = inlined_call_operand.vmem [shape: f32[3], index: 9, kind: input, shape index: {}]
  %s10 = inlined_call_operand.vmem [shape: f32[2,8,256], index: 10, kind: output, shape index: {}]
  %s11 = sld [smem:[#allocation0]]
  $region89: #{triplet_attention_conv_w.1} parent=0
    _
  %s13 = ssub.s32 1, %s11
  %s14 = scalar_select 0, %s13, %s11
  $region1: #{triplet_attention_conv_w.1} parent=0
    #allocation5 [shape = 'u8[512]{0}', space=smem, size = 0x200, scoped, tag = 'input window, operand 6, single buffered']
    #allocation6 [shape = 's32[2]{0}', space=sflag, size = 0x8, scoped, tag = 'scoped memory for triplet_attention_conv_w.1']
    #allocation7 [shape = 'u8[512]{0}', space=smem, size = 0x200, scoped, tag = 'input window, operand 7, single buffered']
    #allocation8 [shape = 's32[1]{0}', space=sflag, size = 0x4, scoped, tag = 'scoped memory for triplet_attention_conv_w.1']
    #allocation9 [shape = 'u8[512]{0}', space=smem, size = 0x200, scoped, tag = 'input window, operand 8, single buffered']
    #allocation10 [shape = 'u8[512]{0}', space=smem, size = 0x200, scoped, tag = 'input window, operand 9, single buffered']
    #allocation11 [shape = 's32[1]{0}', space=sflag, size = 0x4, scoped, tag = 'scoped memory for triplet_attention_conv_w.1']
    %15 = vsyncpa [#allocation6], 0
    %16 = vsyncpa [#allocation8], 0
    %17 = vsyncpa [#allocation11], 0
    loop: start=0, step=1, limit=4
    $region2: #{triplet_attention_conv_w.1} parent=1 // loop_pre_header
      _
    $region3: #{triplet_attention_conv_w.1} parent=1 // loop_header
      %s19 = sphi 0, %s23
      %p20 = scmp.ge.s32.totalorder %s19, 4
      %s29 = sphi 0, %s31
      %s32 = sphi 0, %s29
      %s33 = sphi 0, %s32
      %s49 = sphi 0, %s33
      %s55 = sphi 0, %s57
      %s58 = sphi 0, %s55
      %s59 = sphi 0, %s58
      %s75 = sphi 0, %s59
      %s79 = sphi 0, %s79
      %s81 = sphi 0, %s79
      %s82 = sphi 0, %s81
      %s96 = sphi 0, %s82
      %s100 = sphi 0, %s100
      %s102 = sphi 0, %s100
      %s103 = sphi 0, %s102
      %s117 = sphi 0, %s103
      %s121 = sphi 0, %s121
      %s123 = sphi 0, %s121
      %s124 = sphi 0, %s123
      %s138 = sphi 0, %s124
      %s142 = sphi 0, %s142
      %s144 = sphi 0, %s142
      %s145 = sphi 0, %s144
      %s159 = sphi 0, %s145
      %s163 = sphi 0, %s163
      %s165 = sphi 0, %s163
      %s166 = sphi 0, %s165
      %s180 = sphi 0, %s166
      %s184 = sphi 0, %s184
      %s186 = sphi 0, %s184
      %s187 = sphi 0, %s186
      %s201 = sphi 0, %s187
      %s205 = sphi 0, %s205
      %s207 = sphi 0, %s205
      %s208 = sphi 0, %s207
      %s222 = sphi 0, %s208
      %s226 = sphi 0, %s226
      %s228 = sphi 0, %s226
      %s229 = sphi 0, %s228
      %s243 = sphi 0, %s229
      %s249 = sphi 0, %s251
      %s252 = sphi 0, %s249
      %s253 = sphi 0, %s252
      %s269 = sphi 0, %s253
    $region4: #{triplet_attention_conv_w.1} parent=1 // loop_header_branch
      %22 = sbr.rel (%p20) target = $region8
    $region5: #{triplet_attention_conv_w.1} parent=1 // loop_body
      %s24 = ssub.s32 %s19, 1
      %s25 = ssub.s32 %s19, 2
      %s26 = sadd.s32 %s19, 1
      %s27 = ssub.s32 %s19, %s26
      %p28 = scmp.eq.s32.totalorder %s27, 0
      %s30 = sadd.s32 %s29, 1
      %s31 = scalar_select %p28, %s29, %s30
      %p34 = pneg %p28
      %p35 = scmp.eq.s32.totalorder %s19, 1
      %p36 = por %p34, %p35
      %p37 = scmp.ne.s32.totalorder %s29, %s32
      %p38 = scmp.eq.s32.totalorder %s19, 0
      %p39 = por %p37, %p38
      %p40 = scmp.ne.s32.totalorder %s29, %s32
      %p41 = scmp.eq.s32.totalorder %s24, 1
      %p42 = por %p40, %p41
      %p43 = scmp.ne.s32.totalorder %s32, %s33
      %p44 = scmp.eq.s32.totalorder %s24, 0
      %p45 = por %p43, %p44
      %p46 = scmp.ne.s32.totalorder %s32, %s33
      %p47 = scmp.eq.s32.totalorder %s25, 1
      %p48 = por %p46, %p47
      %p50 = scmp.ne.s32.totalorder %s33, %s49
      %p51 = scmp.eq.s32.totalorder %s25, 0
      %p52 = por %p50, %p51
      %s53 = ssub.s32 %s19, %s26
      %p54 = scmp.eq.s32.totalorder %s53, 0
      %s56 = sadd.s32 %s55, 1
      %s57 = scalar_select %p54, %s55, %s56
      %p60 = pneg %p54
      %p61 = scmp.eq.s32.totalorder %s19, 1
      %p62 = por %p60, %p61
      %p63 = scmp.ne.s32.totalorder %s55, %s58
      %p64 = scmp.eq.s32.totalorder %s19, 0
      %p65 = por %p63, %p64
      %p66 = scmp.ne.s32.totalorder %s55, %s58
      %p67 = scmp.eq.s32.totalorder %s24, 1
      %p68 = por %p66, %p67
      %p69 = scmp.ne.s32.totalorder %s58, %s59
      %p70 = scmp.eq.s32.totalorder %s24, 0
      %p71 = por %p69, %p70
      %p72 = scmp.ne.s32.totalorder %s58, %s59
      %p73 = scmp.eq.s32.totalorder %s25, 1
      %p74 = por %p72, %p73
      %p76 = scmp.ne.s32.totalorder %s59, %s75
      %p77 = scmp.eq.s32.totalorder %s25, 0
      %p78 = por %p76, %p77
      %s80 = sadd.s32 %s79, 1
      %p83 = scmp.eq.s32.totalorder %s19, 1
      %p84 = scmp.ne.s32.totalorder %s79, %s81
      %p85 = scmp.eq.s32.totalorder %s19, 0
      %p86 = por %p84, %p85
      %p87 = scmp.ne.s32.totalorder %s79, %s81
      %p88 = scmp.eq.s32.totalorder %s24, 1
      %p89 = por %p87, %p88
      %p90 = scmp.ne.s32.totalorder %s81, %s82
      %p91 = scmp.eq.s32.totalorder %s24, 0
      %p92 = por %p90, %p91
      %p93 = scmp.ne.s32.totalorder %s81, %s82
      %p94 = scmp.eq.s32.totalorder %s25, 1
      %p95 = por %p93, %p94
      %p97 = scmp.ne.s32.totalorder %s82, %s96
      %p98 = scmp.eq.s32.totalorder %s25, 0
      %p99 = por %p97, %p98
      %s101 = sadd.s32 %s100, 1
      %p104 = scmp.eq.s32.totalorder %s19, 1
      %p105 = scmp.ne.s32.totalorder %s100, %s102
      %p106 = scmp.eq.s32.totalorder %s19, 0
      %p107 = por %p105, %p106
      %p108 = scmp.ne.s32.totalorder %s100, %s102
      %p109 = scmp.eq.s32.totalorder %s24, 1
      %p110 = por %p108, %p109
      %p111 = scmp.ne.s32.totalorder %s102, %s103
      %p112 = scmp.eq.s32.totalorder %s24, 0
      %p113 = por %p111, %p112
      %p114 = scmp.ne.s32.totalorder %s102, %s103
      %p115 = scmp.eq.s32.totalorder %s25, 1
      %p116 = por %p114, %p115
      %p118 = scmp.ne.s32.totalorder %s103, %s117
      %p119 = scmp.eq.s32.totalorder %s25, 0
      %p120 = por %p118, %p119
      %s122 = sadd.s32 %s121, 1
      %p125 = scmp.eq.s32.totalorder %s19, 1
      %p126 = scmp.ne.s32.totalorder %s121, %s123
      %p127 = scmp.eq.s32.totalorder %s19, 0
      %p128 = por %p126, %p127
      %p129 = scmp.ne.s32.totalorder %s121, %s123
      %p130 = scmp.eq.s32.totalorder %s24, 1
      %p131 = por %p129, %p130
      %p132 = scmp.ne.s32.totalorder %s123, %s124
      %p133 = scmp.eq.s32.totalorder %s24, 0
      %p134 = por %p132, %p133
      %p135 = scmp.ne.s32.totalorder %s123, %s124
      %p136 = scmp.eq.s32.totalorder %s25, 1
      %p137 = por %p135, %p136
      %p139 = scmp.ne.s32.totalorder %s124, %s138
      %p140 = scmp.eq.s32.totalorder %s25, 0
      %p141 = por %p139, %p140
      %s143 = sadd.s32 %s142, 1
      %p146 = scmp.eq.s32.totalorder %s19, 1
      %p147 = scmp.ne.s32.totalorder %s142, %s144
      %p148 = scmp.eq.s32.totalorder %s19, 0
      %p149 = por %p147, %p148
      %p150 = scmp.ne.s32.totalorder %s142, %s144
      %p151 = scmp.eq.s32.totalorder %s24, 1
      %p152 = por %p150, %p151
      %p153 = scmp.ne.s32.totalorder %s144, %s145
      %p154 = scmp.eq.s32.totalorder %s24, 0
      %p155 = por %p153, %p154
      %p156 = scmp.ne.s32.totalorder %s144, %s145
      %p157 = scmp.eq.s32.totalorder %s25, 1
      %p158 = por %p156, %p157
      %p160 = scmp.ne.s32.totalorder %s145, %s159
      %p161 = scmp.eq.s32.totalorder %s25, 0
      %p162 = por %p160, %p161
      %s164 = sadd.s32 %s163, 1
      %p167 = scmp.eq.s32.totalorder %s19, 1
      %p168 = scmp.ne.s32.totalorder %s163, %s165
      %p169 = scmp.eq.s32.totalorder %s19, 0
      %p170 = por %p168, %p169
      %p171 = scmp.ne.s32.totalorder %s163, %s165
      %p172 = scmp.eq.s32.totalorder %s24, 1
      %p173 = por %p171, %p172
      %p174 = scmp.ne.s32.totalorder %s165, %s166
      %p175 = scmp.eq.s32.totalorder %s24, 0
      %p176 = por %p174, %p175
      %p177 = scmp.ne.s32.totalorder %s165, %s166
      %p178 = scmp.eq.s32.totalorder %s25, 1
      %p179 = por %p177, %p178
      %p181 = scmp.ne.s32.totalorder %s166, %s180
      %p182 = scmp.eq.s32.totalorder %s25, 0
      %p183 = por %p181, %p182
      %s185 = sadd.s32 %s184, 1
      %p188 = scmp.eq.s32.totalorder %s19, 1
      %p189 = scmp.ne.s32.totalorder %s184, %s186
      %p190 = scmp.eq.s32.totalorder %s19, 0
      %p191 = por %p189, %p190
      %p192 = scmp.ne.s32.totalorder %s184, %s186
      %p193 = scmp.eq.s32.totalorder %s24, 1
      %p194 = por %p192, %p193
      %p195 = scmp.ne.s32.totalorder %s186, %s187
      %p196 = scmp.eq.s32.totalorder %s24, 0
      %p197 = por %p195, %p196
      %p198 = scmp.ne.s32.totalorder %s186, %s187
      %p199 = scmp.eq.s32.totalorder %s25, 1
      %p200 = por %p198, %p199
      %p202 = scmp.ne.s32.totalorder %s187, %s201
      %p203 = scmp.eq.s32.totalorder %s25, 0
      %p204 = por %p202, %p203
      %s206 = sadd.s32 %s205, 1
      %p209 = scmp.eq.s32.totalorder %s19, 1
      %p210 = scmp.ne.s32.totalorder %s205, %s207
      %p211 = scmp.eq.s32.totalorder %s19, 0
      %p212 = por %p210, %p211
      %p213 = scmp.ne.s32.totalorder %s205, %s207
      %p214 = scmp.eq.s32.totalorder %s24, 1
      %p215 = por %p213, %p214
      %p216 = scmp.ne.s32.totalorder %s207, %s208
      %p217 = scmp.eq.s32.totalorder %s24, 0
      %p218 = por %p216, %p217
      %p219 = scmp.ne.s32.totalorder %s207, %s208
      %p220 = scmp.eq.s32.totalorder %s25, 1
      %p221 = por %p219, %p220
      %p223 = scmp.ne.s32.totalorder %s208, %s222
      %p224 = scmp.eq.s32.totalorder %s25, 0
      %p225 = por %p223, %p224
      %s227 = sadd.s32 %s226, 1
      %p230 = scmp.eq.s32.totalorder %s19, 1
      %p231 = scmp.ne.s32.totalorder %s226, %s228
      %p232 = scmp.eq.s32.totalorder %s19, 0
      %p233 = por %p231, %p232
      %p234 = scmp.ne.s32.totalorder %s226, %s228
      %p235 = scmp.eq.s32.totalorder %s24, 1
      %p236 = por %p234, %p235
      %p237 = scmp.ne.s32.totalorder %s228, %s229
      %p238 = scmp.eq.s32.totalorder %s24, 0
      %p239 = por %p237, %p238
      %p240 = scmp.ne.s32.totalorder %s228, %s229
      %p241 = scmp.eq.s32.totalorder %s25, 1
      %p242 = por %p240, %p241
      %p244 = scmp.ne.s32.totalorder %s229, %s243
      %p245 = scmp.eq.s32.totalorder %s25, 0
      %p246 = por %p244, %p245
      %s247 = ssub.s32 %s19, %s26
      %p248 = scmp.eq.s32.totalorder %s247, 0
      %s250 = sadd.s32 %s249, 1
      %s251 = scalar_select %p248, %s249, %s250
      %p254 = pneg %p248
      %p255 = scmp.eq.s32.totalorder %s19, 1
      %p256 = por %p254, %p255
      %p257 = scmp.ne.s32.totalorder %s249, %s252
      %p258 = scmp.eq.s32.totalorder %s19, 0
      %p259 = por %p257, %p258
      %p260 = scmp.ne.s32.totalorder %s249, %s252
      %p261 = scmp.eq.s32.totalorder %s24, 1
      %p262 = por %p260, %p261
      %p263 = scmp.ne.s32.totalorder %s252, %s253
      %p264 = scmp.eq.s32.totalorder %s24, 0
      %p265 = por %p263, %p264
      %p266 = scmp.ne.s32.totalorder %s252, %s253
      %p267 = scmp.eq.s32.totalorder %s25, 1
      %p268 = por %p266, %p267
      %p270 = scmp.ne.s32.totalorder %s253, %s269
      %p271 = scmp.eq.s32.totalorder %s25, 0
      %p272 = por %p270, %p271
      %p273 = scmp.le.s32.totalorder 1, %s19
      %p274 = scmp.lt.s32.totalorder %s19, 3
      %p275 = pnand %p273, %p274
      %p276 = pneg %p275
      // Predicated region
      $region9: #{triplet_attention_conv_w.1} parent=5 // pred_check
        _
      $region10: #{triplet_attention_conv_w.1} parent=5 // pred_check_branch
        %278 = sbr.rel (%p275) target = $region12
      $region11: #{triplet_attention_conv_w.1} parent=5 // pred_region
        %s279 = ssub.s32 %s19, 1
        // Predicated region
        $region13: #{triplet_attention_conv_w.1} parent=11 // pred_check
          %p280 = pneg %p92
        $region14: #{triplet_attention_conv_w.1} parent=11 // pred_check_branch
          %282 = sbr.rel (%p280) target = $region16
        $region15: #{triplet_attention_conv_w.1} parent=11 // pred_region
          _
        $region16: #{triplet_attention_conv_w.1} parent=11 // pred_fallthru
          _
        // Predicated region
        $region17: #{triplet_attention_conv_w.1} parent=11 // pred_check
          %p283 = pneg %p113
        $region18: #{triplet_attention_conv_w.1} parent=11 // pred_check_branch
          %285 = sbr.rel (%p283) target = $region20
        $region19: #{triplet_attention_conv_w.1} parent=11 // pred_region
          _
        $region20: #{triplet_attention_conv_w.1} parent=11 // pred_fallthru
          _
        // Predicated region
        $region21: #{triplet_attention_conv_w.1} parent=11 // pred_check
          %p286 = pneg %p134
        $region22: #{triplet_attention_conv_w.1} parent=11 // pred_check_branch
          %288 = sbr.rel (%p286) target = $region24
        $region23: #{triplet_attention_conv_w.1} parent=11 // pred_region
          _
        $region24: #{triplet_attention_conv_w.1} parent=11 // pred_fallthru
          _
        // Predicated region
        $region25: #{triplet_attention_conv_w.1} parent=11 // pred_check
          %p289 = pneg %p155
        $region26: #{triplet_attention_conv_w.1} parent=11 // pred_check_branch
          %291 = sbr.rel (%p289) target = $region28
        $region27: #{triplet_attention_conv_w.1} parent=11 // pred_region
          _
        $region28: #{triplet_attention_conv_w.1} parent=11 // pred_fallthru
          _
        // Predicated region
        $region29: #{triplet_attention_conv_w.1} parent=11 // pred_check
          %p292 = pneg %p176
        $region30: #{triplet_attention_conv_w.1} parent=11 // pred_check_branch
          %294 = sbr.rel (%p292) target = $region32
        $region31: #{triplet_attention_conv_w.1} parent=11 // pred_region
          %s296 = ssub.s32 16, 16
          %297 = vsyncadd [#allocation6], %s296
          %s299 = sshll.u32 %s6, 4
          %s300 = int_to_ptr.vmem [resolvable:$true] %s299
          %302 = dma.vmem_to_smem %s300, 16, [#allocation5], [#allocation6]
        $region32: #{triplet_attention_conv_w.1} parent=11 // pred_fallthru
          _
        // Predicated region
        $region33: #{triplet_attention_conv_w.1} parent=11 // pred_check
          %p303 = pneg %p197
        $region34: #{triplet_attention_conv_w.1} parent=11 // pred_check_branch
          %305 = sbr.rel (%p303) target = $region36
        $region35: #{triplet_attention_conv_w.1} parent=11 // pred_region
          %s307 = ssub.s32 16, 16
          %308 = vsyncadd [#allocation8], %s307
          %s310 = sshll.u32 %s7, 4
          %s311 = int_to_ptr.vmem [resolvable:$true] %s310
          %313 = dma.vmem_to_smem %s311, 16, [#allocation7], [#allocation8]
        $region36: #{triplet_attention_conv_w.1} parent=11 // pred_fallthru
          _
        // Predicated region
        $region37: #{triplet_attention_conv_w.1} parent=11 // pred_check
          %p314 = pneg %p218
        $region38: #{triplet_attention_conv_w.1} parent=11 // pred_check_branch
          %316 = sbr.rel (%p314) target = $region40
        $region39: #{triplet_attention_conv_w.1} parent=11 // pred_region
          %s318 = ssub.s32 16, 16
          %319 = vsyncadd [#allocation8], %s318
          %s321 = sshll.u32 %s8, 4
          %s322 = int_to_ptr.vmem [resolvable:$true] %s321
          %324 = dma.vmem_to_smem %s322, 16, [#allocation9], [#allocation8]
        $region40: #{triplet_attention_conv_w.1} parent=11 // pred_fallthru
          _
        // Predicated region
        $region41: #{triplet_attention_conv_w.1} parent=11 // pred_check
          %p325 = pneg %p239
        $region42: #{triplet_attention_conv_w.1} parent=11 // pred_check_branch
          %327 = sbr.rel (%p325) target = $region44
        $region43: #{triplet_attention_conv_w.1} parent=11 // pred_region
          %s329 = ssub.s32 16, 16
          %330 = vsyncadd [#allocation11], %s329
          %s332 = sshll.u32 %s9, 4
          %s333 = int_to_ptr.vmem [resolvable:$true] %s332
          %335 = dma.vmem_to_smem %s333, 16, [#allocation10], [#allocation11]
        $region44: #{triplet_attention_conv_w.1} parent=11 // pred_fallthru
          _
      $region12: #{triplet_attention_conv_w.1} parent=5 // pred_fallthru
        _
      %p336 = scmp.lt.s32.totalorder %s19, 2
      // Predicated region
      $region45: #{triplet_attention_conv_w.1} parent=5 // pred_check
        %p337 = pneg %p336
      $region46: #{triplet_attention_conv_w.1} parent=5 // pred_check_branch
        %339 = sbr.rel (%p337) target = $region48
      $region47: #{triplet_attention_conv_w.1} parent=5 // pred_region
        // Predicated region
        $region49: #{triplet_attention_conv_w.1} parent=47 // pred_check
          %p340 = pneg %p39
        $region50: #{triplet_attention_conv_w.1} parent=47 // pred_check_branch
          %342 = sbr.rel (%p340) target = $region52
        $region51: #{triplet_attention_conv_w.1} parent=47 // pred_region
          %p343 = scmp.lt.s32.totalorder %s19, 1
          %s344 = scalar_select %p343, %s19, 1
          %s345 = smul.addr %s344, 8
          %s346 = smul.addr %s345, 8
          %s347 = scalar_lea.vmem %s0, %s346
        $region52: #{triplet_attention_conv_w.1} parent=47 // pred_fallthru
          _
        // Predicated region
        $region53: #{triplet_attention_conv_w.1} parent=47 // pred_check
          %p348 = pneg %p65
        $region54: #{triplet_attention_conv_w.1} parent=47 // pred_check_branch
          %350 = sbr.rel (%p348) target = $region56
        $region55: #{triplet_attention_conv_w.1} parent=47 // pred_region
          %p351 = scmp.lt.s32.totalorder %s19, 1
          %s352 = scalar_select %p351, %s19, 1
          %s353 = smul.addr %s352, 2
          %s354 = smul.addr %s353, 4
          %s355 = scalar_lea.vmem %s1, %s354
        $region56: #{triplet_attention_conv_w.1} parent=47 // pred_fallthru
          _
      $region48: #{triplet_attention_conv_w.1} parent=5 // pred_fallthru
        _
      %p356 = scmp.le.s32.totalorder 1, %s19
      %p357 = scmp.lt.s32.totalorder %s19, 3
      %p358 = pnand %p356, %p357
      %p359 = pneg %p358
      // Predicated region
      $region57: #{triplet_attention_conv_w.1} parent=5 // pred_check
        _
      $region58: #{triplet_attention_conv_w.1} parent=5 // pred_check_branch
        %361 = sbr.rel (%p358) target = $region60
      $region59: #{triplet_attention_conv_w.1} parent=5 // pred_region
        %s362 = ssub.s32 %s19, 1
        // Predicated region
        $region61: #{triplet_attention_conv_w.1} parent=59 // pred_check
          %p363 = pneg %p176
        $region62: #{triplet_attention_conv_w.1} parent=59 // pred_check_branch
          %365 = sbr.rel (%p363) target = $region64
        $region63: #{triplet_attention_conv_w.1} parent=59 // pred_region
          %366 = dma.done [#allocation6], 16
        $region64: #{triplet_attention_conv_w.1} parent=59 // pred_fallthru
          _
        // Predicated region
        $region65: #{triplet_attention_conv_w.1} parent=59 // pred_check
          %p367 = pneg %p197
        $region66: #{triplet_attention_conv_w.1} parent=59 // pred_check_branch
          %369 = sbr.rel (%p367) target = $region68
        $region67: #{triplet_attention_conv_w.1} parent=59 // pred_region
          %370 = dma.done [#allocation8], 16
        $region68: #{triplet_attention_conv_w.1} parent=59 // pred_fallthru
          _
        // Predicated region
        $region69: #{triplet_attention_conv_w.1} parent=59 // pred_check
          %p371 = pneg %p218
        $region70: #{triplet_attention_conv_w.1} parent=59 // pred_check_branch
          %373 = sbr.rel (%p371) target = $region72
        $region71: #{triplet_attention_conv_w.1} parent=59 // pred_region
          %374 = dma.done [#allocation8], 16
        $region72: #{triplet_attention_conv_w.1} parent=59 // pred_fallthru
          _
        // Predicated region
        $region73: #{triplet_attention_conv_w.1} parent=59 // pred_check
          %p375 = pneg %p239
        $region74: #{triplet_attention_conv_w.1} parent=59 // pred_check_branch
          %377 = sbr.rel (%p375) target = $region76
        $region75: #{triplet_attention_conv_w.1} parent=59 // pred_region
          %378 = dma.done [#allocation11], 16
        $region76: #{triplet_attention_conv_w.1} parent=59 // pred_fallthru
          _
        %379 = sfence
        %p380 = scmp.lt.s32.totalorder %s24, 1
        %s381 = scalar_select %p380, %s24, 1
        %s382 = smul.addr %s381, 8
        %s383 = smul.addr %s382, 8
        %s384 = scalar_lea.vmem %s0, %s383
        %p385 = pneg %p45
        %p386 = pneg %p42
        %p387 = scmp.lt.s32.totalorder %s24, 1
        %s388 = scalar_select %p387, %s24, 1
        %s389 = smul.addr %s388, 2
        %s390 = smul.addr %s389, 4
        %s391 = scalar_lea.vmem %s1, %s390
        %p392 = pneg %p71
        %p393 = pneg %p68
        %p394 = pneg %p92
        %p395 = pneg %p89
        %p396 = pneg %p113
        %p397 = pneg %p110
        %p398 = pneg %p134
        %p399 = pneg %p131
        %p400 = pneg %p155
        %p401 = pneg %p152
        %p402 = pneg %p176
        %p403 = pneg %p173
        %p404 = pneg %p197
        %p405 = pneg %p194
        %p406 = pneg %p218
        %p407 = pneg %p215
        %p408 = pneg %p239
        %p409 = pneg %p236
        %p410 = pneg %p265
        %p411 = pneg %p262
        %p412 = scmp.lt.s32.totalorder %s24, 1
        %s413 = scalar_select %p412, %s24, 1
        %s414 = smul.addr %s413, 2
        %s415 = smul.addr %s414, 8
        %s416 = scalar_lea.vmem %s10, %s415
        %p417 = scmp.lt.s32.totalorder %s24, 1
        %s418 = scalar_select %p417, %s24, 1
        %s419 = smul.addr %s418, 8
        %s420 = smul.addr %s419, 8
        %s421 = scalar_lea.vmem %s0, %s420
        %p422 = scmp.lt.s32.totalorder %s24, 1
        %s423 = scalar_select %p422, %s24, 1
        %s424 = smul.addr %s423, 2
        %s425 = smul.addr %s424, 4
        %s426 = scalar_lea.vmem %s1, %s425
        %p427 = scmp.lt.s32.totalorder %s24, 1
        %s428 = scalar_select %p427, %s24, 1
        %s429 = smul.addr %s428, 2
        %s430 = smul.addr %s429, 8
        %s431 = scalar_lea.vmem %s10, %s430
        %v432 = vld [vmem:[%s421] sm:$0xff]
        %v433 = vld [vmem:[%s421 + $0x8] sm:$0xff]
        %v434 = vld [vmem:[%s421 + $0x10] sm:$0xff]
        %v435 = vld [vmem:[%s421 + $0x18] sm:$0xff]
        %v436 = vld [vmem:[%s421 + $0x20] sm:$0xff]
        %v437 = vld [vmem:[%s421 + $0x28] sm:$0xff]
        %v438 = vld [vmem:[%s421 + $0x30] sm:$0xff]
        %v439 = vld [vmem:[%s421 + $0x38] sm:$0xff]
        %v440 = vld [vmem:[%s426] sm:$0xff]
        %v442 = vcombine.high %v440, %v440
        %vm444 = vcmask 1043456
        %v445 = vsel %vm444, %v440, -inf
        %v446 = vrot.slane %v445, 4
        %v447 = vmax.f32 %v445, %v446
        %v448 = vrot.slane %v447, 2
        %v449 = vmax.f32 %v447, %v448
        %v450 = vrot.slane %v449, 1
        %v451 = vmax.f32 %v449, %v450
        %v452 = vsel %vm444, %v442, -inf
        %v453 = vrot.slane %v452, 4
        %v454 = vmax.f32 %v452, %v453
        %v455 = vrot.slane %v454, 2
        %v456 = vmax.f32 %v454, %v455
        %v457 = vrot.slane %v456, 1
        %v458 = vmax.f32 %v456, %v457
        %v459 = vsel %vm444, %v440, 0.0
        %v460 = vrot.slane %v459, 4
        %v461 = vadd.f32 %v459, %v460
        %v462 = vrot.slane %v461, 2
        %v463 = vadd.f32 %v461, %v462
        %v464 = vrot.slane %v463, 1
        %v465 = vadd.f32 %v463, %v464
        %v466 = vsel %vm444, %v442, 0.0
        %v467 = vrot.slane %v466, 4
        %v468 = vadd.f32 %v466, %v467
        %v469 = vrot.slane %v468, 2
        %v470 = vadd.f32 %v468, %v469
        %v471 = vrot.slane %v470, 1
        %v472 = vadd.f32 %v470, %v471
        %v473 = vrcp.pop 4.0
        %v474 = vmul.f32 %v465, %v473
        %v475 = vmul.f32 %v472, %v473
        %s476 = sld [smem:[#allocation9]]
        %v477 = vstv %s476
        %v478 = vmul.f32 %v477, %v451
        %v479 = vmul.f32 %v477, %v458
        %s480 = sld [smem:[#allocation9 + $0x1]]
        %v481 = vstv %s480
        %v482 = vmul.f32 %v481, %v474
        %v483 = vmul.f32 %v481, %v475
        %v484 = vadd.f32 %v478, %v482
        %v485 = vadd.f32 %v479, %v483
        %s486 = sld [smem:[#allocation9 + $0x2]]
        %v487 = vstv %s486
        %v488 = vadd.f32 %v484, %v487
        %v489 = vadd.f32 %v485, %v487
        %v490 = vsub.f32 0.0, %v488
        %v491 = vsub.f32 0.0, %v489
        %v492 = vmul.f32 %v490, 1.442695
        %v493 = vpow.pop %v492
        %v494 = vmul.f32 %v491, 1.442695
        %v495 = vpow.pop %v494
        %v496 = vadd.f32 %v493, 1.0
        %v497 = vadd.f32 %v495, 1.0
        %v498 = vrcp.pop %v496
        %v499 = vmul.f32 1.0, %v498
        %v500 = vrcp.pop %v497
        %v501 = vmul.f32 1.0, %v500
        %v502 = vmul.f32 %v488, %v499
        %v503 = vmul.f32 %v489, %v501
        %v504 = vsub.f32 0.0, %v502
        %v505 = vsub.f32 0.0, %v503
        %v506 = vmul.f32 %v504, 1.442695
        %v507 = vpow.pop %v506
        %v508 = vmul.f32 %v505, 1.442695
        %v509 = vpow.pop %v508
        %v510 = vadd.f32 %v507, 1.0
        %v511 = vadd.f32 %v509, 1.0
        %v512 = vrcp.pop %v510
        %v513 = vmul.f32 1.0, %v512
        %v514 = vrcp.pop %v511
        %v515 = vmul.f32 1.0, %v514
        %v516 = vld [vmem:[%s2] sm:$0xff]
        %518 = vset.pattern.permute.xlu0 0
        %519 = vperm.xlu0 %518, %v516
        %v520 = vpop.permute.xlu0 %519
        %v522 = vlaneseq
        %v523 = vshrl.u32 %v522, 7
        %v524 = vsub.s32 0, %v523
        %v525 = vrot.slane %v440, %v524
        %v526 = vlaneseq
        %v527 = vshrl.u32 %v526, 7
        %v528 = vsub.s32 4, %v527
        %v529 = vrot.slane %v440, %v528
        %v532 = vlaneseq
        %v533 = vshrl.u32 %v532, 7
        %v534 = vsub.s32 0, %v533
        %v535 = vrot.slane %v525, %v534
        %v536 = vlaneseq
        %v537 = vshrl.u32 %v536, 7
        %v538 = vsub.s32 0, %v537
        %v539 = vrot.slane %v529, %v538
        %v540 = vmul.f32 %v520, %v535
        %v541 = vmul.f32 %v520, %v539
        %v542 = vadd.f32 %v540, 0.0
        %v543 = vadd.f32 %v541, 0.0
        %544 = vset.pattern.permute.xlu0 1
        %545 = vperm.xlu0 %544, %v516
        %v546 = vpop.permute.xlu0 %545
        %v548 = vlaneseq
        %v549 = vshrl.u32 %v548, 7
        %v550 = vsub.s32 1, %v549
        %v551 = vrot.slane %v440, %v550
        %v552 = vlaneseq
        %v553 = vshrl.u32 %v552, 7
        %v554 = vsub.s32 5, %v553
        %v555 = vrot.slane %v440, %v554
        %v558 = vlaneseq
        %v559 = vshrl.u32 %v558, 7
        %v560 = vsub.s32 1, %v559
        %v561 = vrot.slane %v551, %v560
        %v562 = vlaneseq
        %v563 = vshrl.u32 %v562, 7
        %v564 = vsub.s32 1, %v563
        %v565 = vrot.slane %v555, %v564
        %v566 = vmul.f32 %v546, %v561
        %v567 = vmul.f32 %v546, %v565
        %v568 = vadd.f32 %v542, %v566
        %v569 = vadd.f32 %v543, %v567
        %570 = vset.pattern.permute.xlu0 2
        %571 = vperm.xlu0 %570, %v516
        %v572 = vpop.permute.xlu0 %571
        %v574 = vlaneseq
        %v575 = vshrl.u32 %v574, 7
        %v576 = vsub.s32 2, %v575
        %v577 = vrot.slane %v440, %v576
        %v578 = vlaneseq
        %v579 = vshrl.u32 %v578, 7
        %v580 = vsub.s32 6, %v579
        %v581 = vrot.slane %v440, %v580
        %v584 = vlaneseq
        %v585 = vshrl.u32 %v584, 7
        %v586 = vsub.s32 2, %v585
        %v587 = vrot.slane %v577, %v586
        %v588 = vlaneseq
        %v589 = vshrl.u32 %v588, 7
        %v590 = vsub.s32 2, %v589
        %v591 = vrot.slane %v581, %v590
        %v592 = vmul.f32 %v572, %v587
        %v593 = vmul.f32 %v572, %v591
        %v594 = vadd.f32 %v568, %v592
        %v595 = vadd.f32 %v569, %v593
        %596 = vset.pattern.permute.xlu0 3
        %597 = vperm.xlu0 %596, %v516
        %v598 = vpop.permute.xlu0 %597
        %v600 = vlaneseq
        %v601 = vshrl.u32 %v600, 7
        %v602 = vsub.s32 3, %v601
        %v603 = vrot.slane %v440, %v602
        %v604 = vlaneseq
        %v605 = vshrl.u32 %v604, 7
        %v606 = vsub.s32 7, %v605
        %v607 = vrot.slane %v440, %v606
        %v610 = vlaneseq
        %v611 = vshrl.u32 %v610, 7
        %v612 = vsub.s32 3, %v611
        %v613 = vrot.slane %v603, %v612
        %v614 = vlaneseq
        %v615 = vshrl.u32 %v614, 7
        %v616 = vsub.s32 3, %v615
        %v617 = vrot.slane %v607, %v616
        %v618 = vmul.f32 %v598, %v613
        %v619 = vmul.f32 %v598, %v617
        %v620 = vadd.f32 %v594, %v618
        %v621 = vadd.f32 %v595, %v619
        %v622 = vld [vmem:[%s3] sm:$0xff]
        %624 = vset.pattern.permute.xlu0 0
        %625 = vperm.xlu0 %624, %v622
        %v626 = vpop.permute.xlu0 %625
        %v628 = vadd.f32 %v620, %v626
        %v629 = vadd.f32 %v621, %v626
        %v630 = vsub.f32 0.0, %v628
        %v631 = vsub.f32 0.0, %v629
        %v632 = vmul.f32 %v630, 1.442695
        %v633 = vpow.pop %v632
        %v634 = vmul.f32 %v631, 1.442695
        %v635 = vpow.pop %v634
        %v636 = vadd.f32 %v633, 1.0
        %v637 = vadd.f32 %v635, 1.0
        %v638 = vrcp.pop %v636
        %v639 = vmul.f32 1.0, %v638
        %v640 = vrcp.pop %v637
        %v641 = vmul.f32 1.0, %v640
        %v642 = vmul.f32 %v628, %v639
        %v643 = vmul.f32 %v629, %v641
        %v644 = vmul.f32 %v642, %v513
        %v645 = vmul.f32 %v643, %v515
        %vm646 = vcmask 179200
        %647 = vst.msk [vmem:[#allocation2] sm:$0xff] %vm646, 0.0
        %vm648 = vcmask 173056
        %649 = vst.msk [vmem:[#allocation2 + $0x8] sm:$0x3] %vm648, 0.0
        %650 = vst.msk [vmem:[#allocation2 + $0x10] sm:$0xff] %vm646, 0.0
        %651 = vst.msk [vmem:[#allocation2 + $0x18] sm:$0x3] %vm648, 0.0
        %vm652 = vcmask 130048
        %v653 = vsel %vm652, %v432, -inf
        %v654 = vsel %vm652, %v433, -inf
        %v655 = vmax.f32 %v653, %v654
        %v656 = vrot.slane %v655, 4
        %v657 = vmax.f32 %v655, %v656
        %v658 = vrot.slane %v657, 2
        %v659 = vmax.f32 %v657, %v658
        %v660 = vrot.slane %v659, 1
        %v661 = vmax.f32 %v659, %v660
        %v662 = vsel %vm652, %v434, -inf
        %v663 = vsel %vm652, %v435, -inf
        %v664 = vmax.f32 %v662, %v663
        %v665 = vrot.slane %v664, 4
        %v666 = vmax.f32 %v664, %v665
        %v667 = vrot.slane %v666, 2
        %v668 = vmax.f32 %v666, %v667
        %v669 = vrot.slane %v668, 1
        %v670 = vmax.f32 %v668, %v669
        %v671 = vsel %vm652, %v436, -inf
        %v672 = vsel %vm652, %v437, -inf
        %v673 = vmax.f32 %v671, %v672
        %v674 = vrot.slane %v673, 4
        %v675 = vmax.f32 %v673, %v674
        %v676 = vrot.slane %v675, 2
        %v677 = vmax.f32 %v675, %v676
        %v678 = vrot.slane %v677, 1
        %v679 = vmax.f32 %v677, %v678
        %v680 = vsel %vm652, %v438, -inf
        %v681 = vsel %vm652, %v439, -inf
        %v682 = vmax.f32 %v680, %v681
        %v683 = vrot.slane %v682, 4
        %v684 = vmax.f32 %v682, %v683
        %v685 = vrot.slane %v684, 2
        %v686 = vmax.f32 %v684, %v685
        %v687 = vrot.slane %v686, 1
        %v688 = vmax.f32 %v686, %v687
        %vm693 = vcmask 1041409
        %v694 = vsel %vm693, %v670, %v661
        %vm695 = vcmask 1042434
        %v696 = vsel %vm695, %v679, %v694
        %vm697 = vcmask 1043459
        %v698 = vsel %vm697, %v688, %v696
        %699 = vrot.lane.b32.xlu0 %v698, 3
        %v700 = vpop.permute.xlu0 %699
        %vm702 = vcmask 150552
        %703 = vst.msk [vmem:[#allocation2 + $0x3] sm:$0xf] %vm702, %v700
        %v704 = vsel %vm652, %v432, 0.0
        %v705 = vsel %vm652, %v433, 0.0
        %v706 = vadd.f32 %v704, %v705
        %v707 = vrot.slane %v706, 4
        %v708 = vadd.f32 %v706, %v707
        %v709 = vrot.slane %v708, 2
        %v710 = vadd.f32 %v708, %v709
        %v711 = vrot.slane %v710, 1
        %v712 = vadd.f32 %v710, %v711
        %v713 = vsel %vm652, %v434, 0.0
        %v714 = vsel %vm652, %v435, 0.0
        %v715 = vadd.f32 %v713, %v714
        %v716 = vrot.slane %v715, 4
        %v717 = vadd.f32 %v715, %v716
        %v718 = vrot.slane %v717, 2
        %v719 = vadd.f32 %v717, %v718
        %v720 = vrot.slane %v719, 1
        %v721 = vadd.f32 %v719, %v720
        %v722 = vsel %vm652, %v436, 0.0
        %v723 = vsel %vm652, %v437, 0.0
        %v724 = vadd.f32 %v722, %v723
        %v725 = vrot.slane %v724, 4
        %v726 = vadd.f32 %v724, %v725
        %v727 = vrot.slane %v726, 2
        %v728 = vadd.f32 %v726, %v727
        %v729 = vrot.slane %v728, 1
        %v730 = vadd.f32 %v728, %v729
        %v731 = vsel %vm652, %v438, 0.0
        %v732 = vsel %vm652, %v439, 0.0
        %v733 = vadd.f32 %v731, %v732
        %v734 = vrot.slane %v733, 4
        %v735 = vadd.f32 %v733, %v734
        %v736 = vrot.slane %v735, 2
        %v737 = vadd.f32 %v735, %v736
        %v738 = vrot.slane %v737, 1
        %v739 = vadd.f32 %v737, %v738
        %v740 = vrcp.pop 16.0
        %v741 = vmul.f32 %v712, %v740
        %v742 = vmul.f32 %v721, %v740
        %v743 = vmul.f32 %v730, %v740
        %v744 = vmul.f32 %v739, %v740
        %v749 = vsel %vm693, %v742, %v741
        %v750 = vsel %vm695, %v743, %v749
        %v751 = vsel %vm697, %v744, %v750
        %752 = vrot.lane.b32.xlu0 %v751, 3
        %v753 = vpop.permute.xlu0 %752
        %s755 = scalar_lea.vmem [#allocation2], 16
        %756 = vst.msk [vmem:[%s755 + $0x3] sm:$0xf] %vm702, %v753
        %s757 = sld [smem:[#allocation5]]
        %v758 = vld [vmem:[#allocation2] sm:$0xf]
        %v759 = vstv %s757
        %v760 = vmul.f32 %v759, %v758
        %v761 = vadd.f32 %v760, 0.0
        %s762 = sld [smem:[#allocation5 + $0x1]]
        %v763 = vstv %s762
        %v764 = vmul.f32 %v763, %v758
        %766 = vrot.lane.b32.xlu0 %v764, 127
        %v767 = vpop.permute.xlu0 %766
        %v769 = vadd.f32 %v761, %v767
        %s770 = sld [smem:[#allocation5 + $0x2]]
        %v771 = vstv %s770
        %v772 = vmul.f32 %v771, %v758
        %774 = vrot.lane.b32.xlu0 %v772, 126
        %v775 = vpop.permute.xlu0 %774
        %v777 = vadd.f32 %v769, %v775
        %s778 = sld [smem:[#allocation5 + $0x3]]
        %v779 = vstv %s778
        %v780 = vmul.f32 %v779, %v758
        %782 = vrot.lane.b32.xlu0 %v780, 125
        %v783 = vpop.permute.xlu0 %782
        %v785 = vadd.f32 %v777, %v783
        %s786 = sld [smem:[#allocation5 + $0x4]]
        %v787 = vstv %s786
        %v788 = vmul.f32 %v787, %v758
        %790 = vrot.lane.b32.xlu0 %v788, 124
        %v791 = vpop.permute.xlu0 %790
        %v793 = vadd.f32 %v785, %v791
        %s794 = sld [smem:[#allocation5 + $0x5]]
        %v795 = vstv %s794
        %v796 = vmul.f32 %v795, %v758
        %798 = vrot.lane.b32.xlu0 %v796, 123
        %v799 = vpop.permute.xlu0 %798
        %v801 = vadd.f32 %v793, %v799
        %s802 = sld [smem:[#allocation5 + $0x6]]
        %v803 = vstv %s802
        %v804 = vmul.f32 %v803, %v758
        %806 = vrot.lane.b32.xlu0 %v804, 122
        %v807 = vpop.permute.xlu0 %806
        %v809 = vadd.f32 %v801, %v807
        %s810 = sld [smem:[#allocation5 + $0x7]]
        %v811 = vld [vmem:[#allocation2 + $0x1] sm:$0xf]
        %v812 = vstv %s810
        %v813 = vmul.f32 %v812, %v811
        %v814 = vadd.f32 %v809, %v813
        %s815 = sld [smem:[#allocation5 + $0x8]]
        %v816 = vstv %s815
        %v817 = vmul.f32 %v816, %v811
        %819 = vrot.lane.b32.xlu0 %v817, 127
        %v820 = vpop.permute.xlu0 %819
        %v822 = vadd.f32 %v814, %v820
        %s823 = sld [smem:[#allocation5 + $0x9]]
        %v824 = vstv %s823
        %v825 = vmul.f32 %v824, %v811
        %827 = vrot.lane.b32.xlu0 %v825, 126
        %v828 = vpop.permute.xlu0 %827
        %v830 = vadd.f32 %v822, %v828
        %s831 = sld [smem:[#allocation5 + $0xa]]
        %v832 = vstv %s831
        %v833 = vmul.f32 %v832, %v811
        %835 = vrot.lane.b32.xlu0 %v833, 125
        %v836 = vpop.permute.xlu0 %835
        %v838 = vadd.f32 %v830, %v836
        %s839 = sld [smem:[#allocation5 + $0xb]]
        %v840 = vstv %s839
        %v841 = vmul.f32 %v840, %v811
        %843 = vrot.lane.b32.xlu0 %v841, 124
        %v844 = vpop.permute.xlu0 %843
        %v846 = vadd.f32 %v838, %v844
        %s847 = sld [smem:[#allocation5 + $0xc]]
        %v848 = vstv %s847
        %v849 = vmul.f32 %v848, %v811
        %851 = vrot.lane.b32.xlu0 %v849, 123
        %v852 = vpop.permute.xlu0 %851
        %v854 = vadd.f32 %v846, %v852
        %s855 = sld [smem:[#allocation5 + $0xd]]
        %v856 = vstv %s855
        %v857 = vmul.f32 %v856, %v811
        %859 = vrot.lane.b32.xlu0 %v857, 122
        %v860 = vpop.permute.xlu0 %859
        %v862 = vadd.f32 %v854, %v860
        %s863 = sld [smem:[#allocation5 + $0xe]]
        %v864 = vld [vmem:[#allocation2 + $0x2] sm:$0xf]
        %v865 = vstv %s863
        %v866 = vmul.f32 %v865, %v864
        %v867 = vadd.f32 %v862, %v866
        %s868 = sld [smem:[#allocation5 + $0xf]]
        %v869 = vstv %s868
        %v870 = vmul.f32 %v869, %v864
        %872 = vrot.lane.b32.xlu0 %v870, 127
        %v873 = vpop.permute.xlu0 %872
        %v875 = vadd.f32 %v867, %v873
        %s876 = sld [smem:[#allocation5 + $0x10]]
        %v877 = vstv %s876
        %v878 = vmul.f32 %v877, %v864
        %880 = vrot.lane.b32.xlu0 %v878, 126
        %v881 = vpop.permute.xlu0 %880
        %v883 = vadd.f32 %v875, %v881
        %s884 = sld [smem:[#allocation5 + $0x11]]
        %v885 = vstv %s884
        %v886 = vmul.f32 %v885, %v864
        %888 = vrot.lane.b32.xlu0 %v886, 125
        %v889 = vpop.permute.xlu0 %888
        %v891 = vadd.f32 %v883, %v889
        %s892 = sld [smem:[#allocation5 + $0x12]]
        %v893 = vstv %s892
        %v894 = vmul.f32 %v893, %v864
        %896 = vrot.lane.b32.xlu0 %v894, 124
        %v897 = vpop.permute.xlu0 %896
        %v899 = vadd.f32 %v891, %v897
        %s900 = sld [smem:[#allocation5 + $0x13]]
        %v901 = vstv %s900
        %v902 = vmul.f32 %v901, %v864
        %904 = vrot.lane.b32.xlu0 %v902, 123
        %v905 = vpop.permute.xlu0 %904
        %v907 = vadd.f32 %v899, %v905
        %s908 = sld [smem:[#allocation5 + $0x14]]
        %v909 = vstv %s908
        %v910 = vmul.f32 %v909, %v864
        %912 = vrot.lane.b32.xlu0 %v910, 122
        %v913 = vpop.permute.xlu0 %912
        %v915 = vadd.f32 %v907, %v913
        %s916 = sld [smem:[#allocation5 + $0x15]]
        %v917 = vld [vmem:[#allocation2 + $0x3] sm:$0xf]
        %v918 = vstv %s916
        %v919 = vmul.f32 %v918, %v917
        %v920 = vadd.f32 %v915, %v919
        %s921 = sld [smem:[#allocation5 + $0x16]]
        %v922 = vstv %s921
        %v923 = vmul.f32 %v922, %v917
        %925 = vrot.lane.b32.xlu0 %v923, 127
        %v926 = vpop.permute.xlu0 %925
        %v928 = vadd.f32 %v920, %v926
        %s929 = sld [smem:[#allocation5 + $0x17]]
        %v930 = vstv %s929
        %v931 = vmul.f32 %v930, %v917
        %933 = vrot.lane.b32.xlu0 %v931, 126
        %v934 = vpop.permute.xlu0 %933
        %v936 = vadd.f32 %v928, %v934
        %s937 = sld [smem:[#allocation5 + $0x18]]
        %v938 = vstv %s937
        %v939 = vmul.f32 %v938, %v917
        %941 = vrot.lane.b32.xlu0 %v939, 125
        %v942 = vpop.permute.xlu0 %941
        %v944 = vadd.f32 %v936, %v942
        %s945 = sld [smem:[#allocation5 + $0x19]]
        %v946 = vstv %s945
        %v947 = vmul.f32 %v946, %v917
        %949 = vrot.lane.b32.xlu0 %v947, 124
        %v950 = vpop.permute.xlu0 %949
        %v952 = vadd.f32 %v944, %v950
        %s953 = sld [smem:[#allocation5 + $0x1a]]
        %v954 = vstv %s953
        %v955 = vmul.f32 %v954, %v917
        %957 = vrot.lane.b32.xlu0 %v955, 123
        %v958 = vpop.permute.xlu0 %957
        %v960 = vadd.f32 %v952, %v958
        %s961 = sld [smem:[#allocation5 + $0x1b]]
        %v962 = vstv %s961
        %v963 = vmul.f32 %v962, %v917
        %965 = vrot.lane.b32.xlu0 %v963, 122
        %v966 = vpop.permute.xlu0 %965
        %v968 = vadd.f32 %v960, %v966
        %s969 = sld [smem:[#allocation5 + $0x1c]]
        %v970 = vld [vmem:[#allocation2 + $0x4] sm:$0xf]
        %v971 = vstv %s969
        %v972 = vmul.f32 %v971, %v970
        %v973 = vadd.f32 %v968, %v972
        %s974 = sld [smem:[#allocation5 + $0x1d]]
        %v975 = vstv %s974
        %v976 = vmul.f32 %v975, %v970
        %978 = vrot.lane.b32.xlu0 %v976, 127
        %v979 = vpop.permute.xlu0 %978
        %v981 = vadd.f32 %v973, %v979
        %s982 = sld [smem:[#allocation5 + $0x1e]]
        %v983 = vstv %s982
        %v984 = vmul.f32 %v983, %v970
        %986 = vrot.lane.b32.xlu0 %v984, 126
        %v987 = vpop.permute.xlu0 %986
        %v989 = vadd.f32 %v981, %v987
        %s990 = sld [smem:[#allocation5 + $0x1f]]
        %v991 = vstv %s990
        %v992 = vmul.f32 %v991, %v970
        %994 = vrot.lane.b32.xlu0 %v992, 125
        %v995 = vpop.permute.xlu0 %994
        %v997 = vadd.f32 %v989, %v995
        %s998 = sld [smem:[#allocation5 + $0x20]]
        %v999 = vstv %s998
        %v1000 = vmul.f32 %v999, %v970
        %1002 = vrot.lane.b32.xlu0 %v1000, 124
        %v1003 = vpop.permute.xlu0 %1002
        %v1005 = vadd.f32 %v997, %v1003
        %s1006 = sld [smem:[#allocation5 + $0x21]]
        %v1007 = vstv %s1006
        %v1008 = vmul.f32 %v1007, %v970
        %1010 = vrot.lane.b32.xlu0 %v1008, 123
        %v1011 = vpop.permute.xlu0 %1010
        %v1013 = vadd.f32 %v1005, %v1011
        %s1014 = sld [smem:[#allocation5 + $0x22]]
        %v1015 = vstv %s1014
        %v1016 = vmul.f32 %v1015, %v970
        %1018 = vrot.lane.b32.xlu0 %v1016, 122
        %v1019 = vpop.permute.xlu0 %1018
        %v1021 = vadd.f32 %v1013, %v1019
        %s1022 = sld [smem:[#allocation5 + $0x23]]
        %v1023 = vld [vmem:[#allocation2 + $0x5] sm:$0xf]
        %v1024 = vstv %s1022
        %v1025 = vmul.f32 %v1024, %v1023
        %v1026 = vadd.f32 %v1021, %v1025
        %s1027 = sld [smem:[#allocation5 + $0x24]]
        %v1028 = vstv %s1027
        %v1029 = vmul.f32 %v1028, %v1023
        %1031 = vrot.lane.b32.xlu0 %v1029, 127
        %v1032 = vpop.permute.xlu0 %1031
        %v1034 = vadd.f32 %v1026, %v1032
        %s1035 = sld [smem:[#allocation5 + $0x25]]
        %v1036 = vstv %s1035
        %v1037 = vmul.f32 %v1036, %v1023
        %1039 = vrot.lane.b32.xlu0 %v1037, 126
        %v1040 = vpop.permute.xlu0 %1039
        %v1042 = vadd.f32 %v1034, %v1040
        %s1043 = sld [smem:[#allocation5 + $0x26]]
        %v1044 = vstv %s1043
        %v1045 = vmul.f32 %v1044, %v1023
        %1047 = vrot.lane.b32.xlu0 %v1045, 125
        %v1048 = vpop.permute.xlu0 %1047
        %v1050 = vadd.f32 %v1042, %v1048
        %s1051 = sld [smem:[#allocation5 + $0x27]]
        %v1052 = vstv %s1051
        %v1053 = vmul.f32 %v1052, %v1023
        %1055 = vrot.lane.b32.xlu0 %v1053, 124
        %v1056 = vpop.permute.xlu0 %1055
        %v1058 = vadd.f32 %v1050, %v1056
        %s1059 = sld [smem:[#allocation5 + $0x28]]
        %v1060 = vstv %s1059
        %v1061 = vmul.f32 %v1060, %v1023
        %1063 = vrot.lane.b32.xlu0 %v1061, 123
        %v1064 = vpop.permute.xlu0 %1063
        %v1066 = vadd.f32 %v1058, %v1064
        %s1067 = sld [smem:[#allocation5 + $0x29]]
        %v1068 = vstv %s1067
        %v1069 = vmul.f32 %v1068, %v1023
        %1071 = vrot.lane.b32.xlu0 %v1069, 122
        %v1072 = vpop.permute.xlu0 %1071
        %v1074 = vadd.f32 %v1066, %v1072
        %s1075 = sld [smem:[#allocation5 + $0x2a]]
        %v1076 = vld [vmem:[#allocation2 + $0x6] sm:$0xf]
        %v1077 = vstv %s1075
        %v1078 = vmul.f32 %v1077, %v1076
        %v1079 = vadd.f32 %v1074, %v1078
        %s1080 = sld [smem:[#allocation5 + $0x2b]]
        %v1081 = vstv %s1080
        %v1082 = vmul.f32 %v1081, %v1076
        %1084 = vrot.lane.b32.xlu0 %v1082, 127
        %v1085 = vpop.permute.xlu0 %1084
        %v1087 = vadd.f32 %v1079, %v1085
        %s1088 = sld [smem:[#allocation5 + $0x2c]]
        %v1089 = vstv %s1088
        %v1090 = vmul.f32 %v1089, %v1076
        %1092 = vrot.lane.b32.xlu0 %v1090, 126
        %v1093 = vpop.permute.xlu0 %1092
        %v1095 = vadd.f32 %v1087, %v1093
        %s1096 = sld [smem:[#allocation5 + $0x2d]]
        %v1097 = vstv %s1096
        %v1098 = vmul.f32 %v1097, %v1076
        %1100 = vrot.lane.b32.xlu0 %v1098, 125
        %v1101 = vpop.permute.xlu0 %1100
        %v1103 = vadd.f32 %v1095, %v1101
        %s1104 = sld [smem:[#allocation5 + $0x2e]]
        %v1105 = vstv %s1104
        %v1106 = vmul.f32 %v1105, %v1076
        %1108 = vrot.lane.b32.xlu0 %v1106, 124
        %v1109 = vpop.permute.xlu0 %1108
        %v1111 = vadd.f32 %v1103, %v1109
        %s1112 = sld [smem:[#allocation5 + $0x2f]]
        %v1113 = vstv %s1112
        %v1114 = vmul.f32 %v1113, %v1076
        %1116 = vrot.lane.b32.xlu0 %v1114, 123
        %v1117 = vpop.permute.xlu0 %1116
        %v1119 = vadd.f32 %v1111, %v1117
        %s1120 = sld [smem:[#allocation5 + $0x30]]
        %v1121 = vstv %s1120
        %v1122 = vmul.f32 %v1121, %v1076
        %1124 = vrot.lane.b32.xlu0 %v1122, 122
        %v1125 = vpop.permute.xlu0 %1124
        %v1127 = vadd.f32 %v1119, %v1125
        %s1128 = sld [smem:[#allocation5 + $0x31]]
        %v1129 = vld [vmem:[%s755] sm:$0xf]
        %v1130 = vstv %s1128
        %v1131 = vmul.f32 %v1130, %v1129
        %v1132 = vadd.f32 %v1127, %v1131
        %s1133 = sld [smem:[#allocation5 + $0x32]]
        %v1134 = vstv %s1133
        %v1135 = vmul.f32 %v1134, %v1129
        %1137 = vrot.lane.b32.xlu0 %v1135, 127
        %v1138 = vpop.permute.xlu0 %1137
        %v1140 = vadd.f32 %v1132, %v1138
        %s1141 = sld [smem:[#allocation5 + $0x33]]
        %v1142 = vstv %s1141
        %v1143 = vmul.f32 %v1142, %v1129
        %1145 = vrot.lane.b32.xlu0 %v1143, 126
        %v1146 = vpop.permute.xlu0 %1145
        %v1148 = vadd.f32 %v1140, %v1146
        %s1149 = sld [smem:[#allocation5 + $0x34]]
        %v1150 = vstv %s1149
        %v1151 = vmul.f32 %v1150, %v1129
        %1153 = vrot.lane.b32.xlu0 %v1151, 125
        %v1154 = vpop.permute.xlu0 %1153
        %v1156 = vadd.f32 %v1148, %v1154
        %s1157 = sld [smem:[#allocation5 + $0x35]]
        %v1158 = vstv %s1157
        %v1159 = vmul.f32 %v1158, %v1129
        %1161 = vrot.lane.b32.xlu0 %v1159, 124
        %v1162 = vpop.permute.xlu0 %1161
        %v1164 = vadd.f32 %v1156, %v1162
        %s1165 = sld [smem:[#allocation5 + $0x36]]
        %v1166 = vstv %s1165
        %v1167 = vmul.f32 %v1166, %v1129
        %1169 = vrot.lane.b32.xlu0 %v1167, 123
        %v1170 = vpop.permute.xlu0 %1169
        %v1172 = vadd.f32 %v1164, %v1170
        %s1173 = sld [smem:[#allocation5 + $0x37]]
        %v1174 = vstv %s1173
        %v1175 = vmul.f32 %v1174, %v1129
        %1177 = vrot.lane.b32.xlu0 %v1175, 122
        %v1178 = vpop.permute.xlu0 %1177
        %v1180 = vadd.f32 %v1172, %v1178
        %s1181 = sld [smem:[#allocation5 + $0x38]]
        %v1182 = vld [vmem:[%s755 + $0x1] sm:$0xf]
        %v1183 = vstv %s1181
        %v1184 = vmul.f32 %v1183, %v1182
        %v1185 = vadd.f32 %v1180, %v1184
        %s1186 = sld [smem:[#allocation5 + $0x39]]
        %v1187 = vstv %s1186
        %v1188 = vmul.f32 %v1187, %v1182
        %1190 = vrot.lane.b32.xlu0 %v1188, 127
        %v1191 = vpop.permute.xlu0 %1190
        %v1193 = vadd.f32 %v1185, %v1191
        %s1194 = sld [smem:[#allocation5 + $0x3a]]
        %v1195 = vstv %s1194
        %v1196 = vmul.f32 %v1195, %v1182
        %1198 = vrot.lane.b32.xlu0 %v1196, 126
        %v1199 = vpop.permute.xlu0 %1198
        %v1201 = vadd.f32 %v1193, %v1199
        %s1202 = sld [smem:[#allocation5 + $0x3b]]
        %v1203 = vstv %s1202
        %v1204 = vmul.f32 %v1203, %v1182
        %1206 = vrot.lane.b32.xlu0 %v1204, 125
        %v1207 = vpop.permute.xlu0 %1206
        %v1209 = vadd.f32 %v1201, %v1207
        %s1210 = sld [smem:[#allocation5 + $0x3c]]
        %v1211 = vstv %s1210
        %v1212 = vmul.f32 %v1211, %v1182
        %1214 = vrot.lane.b32.xlu0 %v1212, 124
        %v1215 = vpop.permute.xlu0 %1214
        %v1217 = vadd.f32 %v1209, %v1215
        %s1218 = sld [smem:[#allocation5 + $0x3d]]
        %v1219 = vstv %s1218
        %v1220 = vmul.f32 %v1219, %v1182
        %1222 = vrot.lane.b32.xlu0 %v1220, 123
        %v1223 = vpop.permute.xlu0 %1222
        %v1225 = vadd.f32 %v1217, %v1223
        %s1226 = sld [smem:[#allocation5 + $0x3e]]
        %v1227 = vstv %s1226
        %v1228 = vmul.f32 %v1227, %v1182
        %1230 = vrot.lane.b32.xlu0 %v1228, 122
        %v1231 = vpop.permute.xlu0 %1230
        %v1233 = vadd.f32 %v1225, %v1231
        %s1234 = sld [smem:[#allocation5 + $0x3f]]
        %v1235 = vld [vmem:[%s755 + $0x2] sm:$0xf]
        %v1236 = vstv %s1234
        %v1237 = vmul.f32 %v1236, %v1235
        %v1238 = vadd.f32 %v1233, %v1237
        %s1239 = sld [smem:[#allocation5 + $0x40]]
        %v1240 = vstv %s1239
        %v1241 = vmul.f32 %v1240, %v1235
        %1243 = vrot.lane.b32.xlu0 %v1241, 127
        %v1244 = vpop.permute.xlu0 %1243
        %v1246 = vadd.f32 %v1238, %v1244
        %s1247 = sld [smem:[#allocation5 + $0x41]]
        %v1248 = vstv %s1247
        %v1249 = vmul.f32 %v1248, %v1235
        %1251 = vrot.lane.b32.xlu0 %v1249, 126
        %v1252 = vpop.permute.xlu0 %1251
        %v1254 = vadd.f32 %v1246, %v1252
        %s1255 = sld [smem:[#allocation5 + $0x42]]
        %v1256 = vstv %s1255
        %v1257 = vmul.f32 %v1256, %v1235
        %1259 = vrot.lane.b32.xlu0 %v1257, 125
        %v1260 = vpop.permute.xlu0 %1259
        %v1262 = vadd.f32 %v1254, %v1260
        %s1263 = sld [smem:[#allocation5 + $0x43]]
        %v1264 = vstv %s1263
        %v1265 = vmul.f32 %v1264, %v1235
        %1267 = vrot.lane.b32.xlu0 %v1265, 124
        %v1268 = vpop.permute.xlu0 %1267
        %v1270 = vadd.f32 %v1262, %v1268
        %s1271 = sld [smem:[#allocation5 + $0x44]]
        %v1272 = vstv %s1271
        %v1273 = vmul.f32 %v1272, %v1235
        %1275 = vrot.lane.b32.xlu0 %v1273, 123
        %v1276 = vpop.permute.xlu0 %1275
        %v1278 = vadd.f32 %v1270, %v1276
        %s1279 = sld [smem:[#allocation5 + $0x45]]
        %v1280 = vstv %s1279
        %v1281 = vmul.f32 %v1280, %v1235
        %1283 = vrot.lane.b32.xlu0 %v1281, 122
        %v1284 = vpop.permute.xlu0 %1283
        %v1286 = vadd.f32 %v1278, %v1284
        %s1287 = sld [smem:[#allocation5 + $0x46]]
        %v1288 = vld [vmem:[%s755 + $0x3] sm:$0xf]
        %v1289 = vstv %s1287
        %v1290 = vmul.f32 %v1289, %v1288
        %v1291 = vadd.f32 %v1286, %v1290
        %s1292 = sld [smem:[#allocation5 + $0x47]]
        %v1293 = vstv %s1292
        %v1294 = vmul.f32 %v1293, %v1288
        %1296 = vrot.lane.b32.xlu0 %v1294, 127
        %v1297 = vpop.permute.xlu0 %1296
        %v1299 = vadd.f32 %v1291, %v1297
        %s1300 = sld [smem:[#allocation5 + $0x48]]
        %v1301 = vstv %s1300
        %v1302 = vmul.f32 %v1301, %v1288
        %1304 = vrot.lane.b32.xlu0 %v1302, 126
        %v1305 = vpop.permute.xlu0 %1304
        %v1307 = vadd.f32 %v1299, %v1305
        %s1308 = sld [smem:[#allocation5 + $0x49]]
        %v1309 = vstv %s1308
        %v1310 = vmul.f32 %v1309, %v1288
        %1312 = vrot.lane.b32.xlu0 %v1310, 125
        %v1313 = vpop.permute.xlu0 %1312
        %v1315 = vadd.f32 %v1307, %v1313
        %s1316 = sld [smem:[#allocation5 + $0x4a]]
        %v1317 = vstv %s1316
        %v1318 = vmul.f32 %v1317, %v1288
        %1320 = vrot.lane.b32.xlu0 %v1318, 124
        %v1321 = vpop.permute.xlu0 %1320
        %v1323 = vadd.f32 %v1315, %v1321
        %s1324 = sld [smem:[#allocation5 + $0x4b]]
        %v1325 = vstv %s1324
        %v1326 = vmul.f32 %v1325, %v1288
        %1328 = vrot.lane.b32.xlu0 %v1326, 123
        %v1329 = vpop.permute.xlu0 %1328
        %v1331 = vadd.f32 %v1323, %v1329
        %s1332 = sld [smem:[#allocation5 + $0x4c]]
        %v1333 = vstv %s1332
        %v1334 = vmul.f32 %v1333, %v1288
        %1336 = vrot.lane.b32.xlu0 %v1334, 122
        %v1337 = vpop.permute.xlu0 %1336
        %v1339 = vadd.f32 %v1331, %v1337
        %s1340 = sld [smem:[#allocation5 + $0x4d]]
        %v1341 = vld [vmem:[%s755 + $0x4] sm:$0xf]
        %v1342 = vstv %s1340
        %v1343 = vmul.f32 %v1342, %v1341
        %v1344 = vadd.f32 %v1339, %v1343
        %s1345 = sld [smem:[#allocation5 + $0x4e]]
        %v1346 = vstv %s1345
        %v1347 = vmul.f32 %v1346, %v1341
        %1349 = vrot.lane.b32.xlu0 %v1347, 127
        %v1350 = vpop.permute.xlu0 %1349
        %v1352 = vadd.f32 %v1344, %v1350
        %s1353 = sld [smem:[#allocation5 + $0x4f]]
        %v1354 = vstv %s1353
        %v1355 = vmul.f32 %v1354, %v1341
        %1357 = vrot.lane.b32.xlu0 %v1355, 126
        %v1358 = vpop.permute.xlu0 %1357
        %v1360 = vadd.f32 %v1352, %v1358
        %s1361 = sld [smem:[#allocation5 + $0x50]]
        %v1362 = vstv %s1361
        %v1363 = vmul.f32 %v1362, %v1341
        %1365 = vrot.lane.b32.xlu0 %v1363, 125
        %v1366 = vpop.permute.xlu0 %1365
        %v1368 = vadd.f32 %v1360, %v1366
        %s1369 = sld [smem:[#allocation5 + $0x51]]
        %v1370 = vstv %s1369
        %v1371 = vmul.f32 %v1370, %v1341
        %1373 = vrot.lane.b32.xlu0 %v1371, 124
        %v1374 = vpop.permute.xlu0 %1373
        %v1376 = vadd.f32 %v1368, %v1374
        %s1377 = sld [smem:[#allocation5 + $0x52]]
        %v1378 = vstv %s1377
        %v1379 = vmul.f32 %v1378, %v1341
        %1381 = vrot.lane.b32.xlu0 %v1379, 123
        %v1382 = vpop.permute.xlu0 %1381
        %v1384 = vadd.f32 %v1376, %v1382
        %s1385 = sld [smem:[#allocation5 + $0x53]]
        %v1386 = vstv %s1385
        %v1387 = vmul.f32 %v1386, %v1341
        %1389 = vrot.lane.b32.xlu0 %v1387, 122
        %v1390 = vpop.permute.xlu0 %1389
        %v1392 = vadd.f32 %v1384, %v1390
        %s1393 = sld [smem:[#allocation5 + $0x54]]
        %v1394 = vld [vmem:[%s755 + $0x5] sm:$0xf]
        %v1395 = vstv %s1393
        %v1396 = vmul.f32 %v1395, %v1394
        %v1397 = vadd.f32 %v1392, %v1396
        %s1398 = sld [smem:[#allocation5 + $0x55]]
        %v1399 = vstv %s1398
        %v1400 = vmul.f32 %v1399, %v1394
        %1402 = vrot.lane.b32.xlu0 %v1400, 127
        %v1403 = vpop.permute.xlu0 %1402
        %v1405 = vadd.f32 %v1397, %v1403
        %s1406 = sld [smem:[#allocation5 + $0x56]]
        %v1407 = vstv %s1406
        %v1408 = vmul.f32 %v1407, %v1394
        %1410 = vrot.lane.b32.xlu0 %v1408, 126
        %v1411 = vpop.permute.xlu0 %1410
        %v1413 = vadd.f32 %v1405, %v1411
        %s1414 = sld [smem:[#allocation5 + $0x57]]
        %v1415 = vstv %s1414
        %v1416 = vmul.f32 %v1415, %v1394
        %1418 = vrot.lane.b32.xlu0 %v1416, 125
        %v1419 = vpop.permute.xlu0 %1418
        %v1421 = vadd.f32 %v1413, %v1419
        %s1422 = sld [smem:[#allocation5 + $0x58]]
        %v1423 = vstv %s1422
        %v1424 = vmul.f32 %v1423, %v1394
        %1426 = vrot.lane.b32.xlu0 %v1424, 124
        %v1427 = vpop.permute.xlu0 %1426
        %v1429 = vadd.f32 %v1421, %v1427
        %s1430 = sld [smem:[#allocation5 + $0x59]]
        %v1431 = vstv %s1430
        %v1432 = vmul.f32 %v1431, %v1394
        %1434 = vrot.lane.b32.xlu0 %v1432, 123
        %v1435 = vpop.permute.xlu0 %1434
        %v1437 = vadd.f32 %v1429, %v1435
        %s1438 = sld [smem:[#allocation5 + $0x5a]]
        %v1439 = vstv %s1438
        %v1440 = vmul.f32 %v1439, %v1394
        %1442 = vrot.lane.b32.xlu0 %v1440, 122
        %v1443 = vpop.permute.xlu0 %1442
        %v1445 = vadd.f32 %v1437, %v1443
        %s1446 = sld [smem:[#allocation5 + $0x5b]]
        %v1447 = vld [vmem:[%s755 + $0x6] sm:$0xf]
        %v1448 = vstv %s1446
        %v1449 = vmul.f32 %v1448, %v1447
        %v1450 = vadd.f32 %v1445, %v1449
        %s1451 = sld [smem:[#allocation5 + $0x5c]]
        %v1452 = vstv %s1451
        %v1453 = vmul.f32 %v1452, %v1447
        %1455 = vrot.lane.b32.xlu0 %v1453, 127
        %v1456 = vpop.permute.xlu0 %1455
        %v1458 = vadd.f32 %v1450, %v1456
        %s1459 = sld [smem:[#allocation5 + $0x5d]]
        %v1460 = vstv %s1459
        %v1461 = vmul.f32 %v1460, %v1447
        %1463 = vrot.lane.b32.xlu0 %v1461, 126
        %v1464 = vpop.permute.xlu0 %1463
        %v1466 = vadd.f32 %v1458, %v1464
        %s1467 = sld [smem:[#allocation5 + $0x5e]]
        %v1468 = vstv %s1467
        %v1469 = vmul.f32 %v1468, %v1447
        %1471 = vrot.lane.b32.xlu0 %v1469, 125
        %v1472 = vpop.permute.xlu0 %1471
        %v1474 = vadd.f32 %v1466, %v1472
        %s1475 = sld [smem:[#allocation5 + $0x5f]]
        %v1476 = vstv %s1475
        %v1477 = vmul.f32 %v1476, %v1447
        %1479 = vrot.lane.b32.xlu0 %v1477, 124
        %v1480 = vpop.permute.xlu0 %1479
        %v1482 = vadd.f32 %v1474, %v1480
        %s1483 = sld [smem:[#allocation5 + $0x60]]
        %v1484 = vstv %s1483
        %v1485 = vmul.f32 %v1484, %v1447
        %1487 = vrot.lane.b32.xlu0 %v1485, 123
        %v1488 = vpop.permute.xlu0 %1487
        %v1490 = vadd.f32 %v1482, %v1488
        %s1491 = sld [smem:[#allocation5 + $0x61]]
        %v1492 = vstv %s1491
        %v1493 = vmul.f32 %v1492, %v1447
        %1495 = vrot.lane.b32.xlu0 %v1493, 122
        %v1496 = vpop.permute.xlu0 %1495
        %v1498 = vadd.f32 %v1490, %v1496
        %s1499 = sld [smem:[#allocation5 + $0x62]]
        %v1500 = vstv %s1499
        %v1501 = vadd.f32 %v1498, %v1500
        %v1502 = vsub.f32 0.0, %v1501
        %v1503 = vmul.f32 %v1502, 1.442695
        %v1504 = vpow.pop %v1503
        %v1505 = vadd.f32 %v1504, 1.0
        %v1506 = vrcp.pop %v1505
        %v1507 = vmul.f32 1.0, %v1506
        %v1508 = vmul.f32 %v1501, %v1507
        %v1509 = vsub.f32 0.0, %v1508
        %v1510 = vmul.f32 %v1509, 1.442695
        %v1511 = vpow.pop %v1510
        %v1512 = vadd.f32 %v1511, 1.0
        %v1513 = vrcp.pop %v1512
        %v1514 = vmul.f32 1.0, %v1513
        %vm1515 = vcmask 125952
        %1516 = vst.msk [vmem:[#allocation4] sm:$0xf] %vm1515, %v1514
        %1518 = vrot.lane.b32.xlu0 %v1514, 16
        %v1519 = vpop.permute.xlu0 %1518
        %vm1521 = vcmask 257152
        %1522 = vst.msk [vmem:[#allocation4] sm:$0xf] %vm1521, %v1519
        %1523 = vrot.lane.b32.xlu0 %v1514, 32
        %v1524 = vpop.permute.xlu0 %1523
        %vm1526 = vcmask 388352
        %1527 = vst.msk [vmem:[#allocation4] sm:$0xf] %vm1526, %v1524
        %1528 = vrot.lane.b32.xlu0 %v1514, 48
        %v1529 = vpop.permute.xlu0 %1528
        %vm1531 = vcmask 519552
        %1532 = vst.msk [vmem:[#allocation4] sm:$0xf] %vm1531, %v1529
        %1533 = vrot.lane.b32.xlu0 %v1514, 64
        %v1534 = vpop.permute.xlu0 %1533
        %vm1536 = vcmask 650752
        %1537 = vst.msk [vmem:[#allocation4] sm:$0xf] %vm1536, %v1534
        %1538 = vrot.lane.b32.xlu0 %v1514, 80
        %v1539 = vpop.permute.xlu0 %1538
        %vm1541 = vcmask 781952
        %1542 = vst.msk [vmem:[#allocation4] sm:$0xf] %vm1541, %v1539
        %1543 = vrot.lane.b32.xlu0 %v1514, 96
        %v1544 = vpop.permute.xlu0 %1543
        %vm1546 = vcmask 913152
        %1547 = vst.msk [vmem:[#allocation4] sm:$0xf] %vm1546, %v1544
        %1548 = vrot.lane.b32.xlu0 %v1514, 112
        %v1549 = vpop.permute.xlu0 %1548
        %vm1551 = vcmask 1044352
        %1552 = vst.msk [vmem:[#allocation4] sm:$0xf] %vm1551, %v1549
        %1553 = vst.msk [vmem:[#allocation4 + $0x4] sm:$0xf] %vm1515, %v1514
        %1554 = vst.msk [vmem:[#allocation4 + $0x4] sm:$0xf] %vm1521, %v1519
        %1555 = vst.msk [vmem:[#allocation4 + $0x4] sm:$0xf] %vm1526, %v1524
        %1556 = vst.msk [vmem:[#allocation4 + $0x4] sm:$0xf] %vm1531, %v1529
        %1557 = vst.msk [vmem:[#allocation4 + $0x4] sm:$0xf] %vm1536, %v1534
        %1558 = vst.msk [vmem:[#allocation4 + $0x4] sm:$0xf] %vm1541, %v1539
        %1559 = vst.msk [vmem:[#allocation4 + $0x4] sm:$0xf] %vm1546, %v1544
        %1560 = vst.msk [vmem:[#allocation4 + $0x4] sm:$0xf] %vm1551, %v1549
        %v1561 = vld [vmem:[#allocation4] sm:$0xff]
        %v1562 = vmul.f32 %v440, %v1561
        %v1563 = vld [vmem:[%s4] sm:$0xff]
        %1565 = vset.pattern.permute.xlu0 0
        %1566 = vperm.xlu0 %1565, %v1563
        %v1567 = vpop.permute.xlu0 %1566
        %v1570 = vlaneseq
        %v1571 = vshrl.u32 %v1570, 7
        %v1572 = vsub.s32 0, %v1571
        %v1573 = vrot.slane %v1562, %v1572
        %v1574 = vlaneseq
        %v1575 = vshrl.u32 %v1574, 7
        %v1576 = vsub.s32 4, %v1575
        %v1577 = vrot.slane %v1562, %v1576
        %v1580 = vlaneseq
        %v1581 = vshrl.u32 %v1580, 7
        %v1582 = vsub.s32 0, %v1581
        %v1583 = vrot.slane %v1573, %v1582
        %v1584 = vlaneseq
        %v1585 = vshrl.u32 %v1584, 7
        %v1586 = vsub.s32 0, %v1585
        %v1587 = vrot.slane %v1577, %v1586
        %v1588 = vmul.f32 %v1567, %v1583
        %v1589 = vmul.f32 %v1567, %v1587
        %v1590 = vadd.f32 %v1588, 0.0
        %v1591 = vadd.f32 %v1589, 0.0
        %1592 = vset.pattern.permute.xlu0 1
        %1593 = vperm.xlu0 %1592, %v1563
        %v1594 = vpop.permute.xlu0 %1593
        %v1596 = vlaneseq
        %v1597 = vshrl.u32 %v1596, 7
        %v1598 = vsub.s32 1, %v1597
        %v1599 = vrot.slane %v1562, %v1598
        %v1600 = vlaneseq
        %v1601 = vshrl.u32 %v1600, 7
        %v1602 = vsub.s32 5, %v1601
        %v1603 = vrot.slane %v1562, %v1602
        %v1606 = vlaneseq
        %v1607 = vshrl.u32 %v1606, 7
        %v1608 = vsub.s32 1, %v1607
        %v1609 = vrot.slane %v1599, %v1608
        %v1610 = vlaneseq
        %v1611 = vshrl.u32 %v1610, 7
        %v1612 = vsub.s32 1, %v1611
        %v1613 = vrot.slane %v1603, %v1612
        %v1614 = vmul.f32 %v1594, %v1609
        %v1615 = vmul.f32 %v1594, %v1613
        %v1616 = vadd.f32 %v1590, %v1614
        %v1617 = vadd.f32 %v1591, %v1615
        %1618 = vset.pattern.permute.xlu0 2
        %1619 = vperm.xlu0 %1618, %v1563
        %v1620 = vpop.permute.xlu0 %1619
        %v1622 = vlaneseq
        %v1623 = vshrl.u32 %v1622, 7
        %v1624 = vsub.s32 2, %v1623
        %v1625 = vrot.slane %v1562, %v1624
        %v1626 = vlaneseq
        %v1627 = vshrl.u32 %v1626, 7
        %v1628 = vsub.s32 6, %v1627
        %v1629 = vrot.slane %v1562, %v1628
        %v1632 = vlaneseq
        %v1633 = vshrl.u32 %v1632, 7
        %v1634 = vsub.s32 2, %v1633
        %v1635 = vrot.slane %v1625, %v1634
        %v1636 = vlaneseq
        %v1637 = vshrl.u32 %v1636, 7
        %v1638 = vsub.s32 2, %v1637
        %v1639 = vrot.slane %v1629, %v1638
        %v1640 = vmul.f32 %v1620, %v1635
        %v1641 = vmul.f32 %v1620, %v1639
        %v1642 = vadd.f32 %v1616, %v1640
        %v1643 = vadd.f32 %v1617, %v1641
        %1644 = vset.pattern.permute.xlu0 3
        %1645 = vperm.xlu0 %1644, %v1563
        %v1646 = vpop.permute.xlu0 %1645
        %v1648 = vlaneseq
        %v1649 = vshrl.u32 %v1648, 7
        %v1650 = vsub.s32 3, %v1649
        %v1651 = vrot.slane %v1562, %v1650
        %v1652 = vlaneseq
        %v1653 = vshrl.u32 %v1652, 7
        %v1654 = vsub.s32 7, %v1653
        %v1655 = vrot.slane %v1562, %v1654
        %v1658 = vlaneseq
        %v1659 = vshrl.u32 %v1658, 7
        %v1660 = vsub.s32 3, %v1659
        %v1661 = vrot.slane %v1651, %v1660
        %v1662 = vlaneseq
        %v1663 = vshrl.u32 %v1662, 7
        %v1664 = vsub.s32 3, %v1663
        %v1665 = vrot.slane %v1655, %v1664
        %v1666 = vmul.f32 %v1646, %v1661
        %v1667 = vmul.f32 %v1646, %v1665
        %v1668 = vadd.f32 %v1642, %v1666
        %v1669 = vadd.f32 %v1643, %v1667
        %v1670 = vld [vmem:[%s5] sm:$0xff]
        %1672 = vset.pattern.permute.xlu0 0
        %1673 = vperm.xlu0 %1672, %v1670
        %v1674 = vpop.permute.xlu0 %1673
        %v1676 = vadd.f32 %v1668, %v1674
        %v1677 = vadd.f32 %v1669, %v1674
        %v1678 = vsub.f32 0.0, %v1676
        %v1679 = vsub.f32 0.0, %v1677
        %v1680 = vmul.f32 %v1678, 1.442695
        %v1681 = vpow.pop %v1680
        %v1682 = vmul.f32 %v1679, 1.442695
        %v1683 = vpow.pop %v1682
        %v1684 = vadd.f32 %v1681, 1.0
        %v1685 = vadd.f32 %v1683, 1.0
        %v1686 = vrcp.pop %v1684
        %v1687 = vmul.f32 1.0, %v1686
        %v1688 = vrcp.pop %v1685
        %v1689 = vmul.f32 1.0, %v1688
        %v1690 = vmul.f32 %v1676, %v1687
        %v1691 = vmul.f32 %v1677, %v1689
        %1692 = vst.msk [vmem:[#allocation3] sm:$0xff] %vm646, 0.0
        %1693 = vst.msk [vmem:[#allocation3 + $0x8] sm:$0x3] %vm648, 0.0
        %1694 = vst.msk [vmem:[#allocation3 + $0x10] sm:$0xff] %vm646, 0.0
        %1695 = vst.msk [vmem:[#allocation3 + $0x18] sm:$0x3] %vm648, 0.0
        %1696 = vmax.xlane.f32.xlu0 %v653
        %v1697 = vpop.xlane.xlu0 %1696
        %1698 = vmax.xlane.f32.xlu0 %v654
        %v1699 = vpop.xlane.xlu0 %1698
        %1700 = vmax.xlane.f32.xlu0 %v662
        %v1701 = vpop.xlane.xlu0 %1700
        %1702 = vmax.xlane.f32.xlu0 %v663
        %v1703 = vpop.xlane.xlu0 %1702
        %1704 = vmax.xlane.f32.xlu0 %v671
        %v1705 = vpop.xlane.xlu0 %1704
        %1706 = vmax.xlane.f32.xlu0 %v672
        %v1707 = vpop.xlane.xlu0 %1706
        %1708 = vmax.xlane.f32.xlu0 %v680
        %v1709 = vpop.xlane.xlu0 %1708
        %1710 = vmax.xlane.f32.xlu0 %v681
        %v1711 = vpop.xlane.xlu0 %1710
        %v1720 = vlaneseq
        %v1721 = vand.u32 %v1720, 127
        %v1722 = vadd.s32 %v1721, 4294967293
        %v1723 = vlaneseq
        %v1724 = vshrl.u32 %v1723, 7
        %v1725 = vsub.s32 %v1722, %v1724
        %v1726 = vrot.slane %v1697, %v1725
        %v1727 = vadd.s32 %v1721, 4294967285
        %v1728 = vlaneseq
        %v1729 = vshrl.u32 %v1728, 7
        %v1730 = vsub.s32 %v1727, %v1729
        %v1731 = vrot.slane %v1699, %v1730
        %vm1732 = vcmask 154712
        %v1733 = vsel %vm1732, %v1731, %v1726
        %v1734 = vlaneseq
        %v1735 = vshrl.u32 %v1734, 7
        %v1736 = vsub.s32 %v1722, %v1735
        %v1737 = vrot.slane %v1701, %v1736
        %v1738 = vlaneseq
        %v1739 = vshrl.u32 %v1738, 7
        %v1740 = vsub.s32 %v1727, %v1739
        %v1741 = vrot.slane %v1703, %v1740
        %v1742 = vsel %vm1732, %v1741, %v1737
        %v1743 = vlaneseq
        %v1744 = vshrl.u32 %v1743, 7
        %v1745 = vsub.s32 %v1722, %v1744
        %v1746 = vrot.slane %v1705, %v1745
        %v1747 = vlaneseq
        %v1748 = vshrl.u32 %v1747, 7
        %v1749 = vsub.s32 %v1727, %v1748
        %v1750 = vrot.slane %v1707, %v1749
        %v1751 = vsel %vm1732, %v1750, %v1746
        %v1752 = vlaneseq
        %v1753 = vshrl.u32 %v1752, 7
        %v1754 = vsub.s32 %v1722, %v1753
        %v1755 = vrot.slane %v1709, %v1754
        %v1756 = vlaneseq
        %v1757 = vshrl.u32 %v1756, 7
        %v1758 = vsub.s32 %v1727, %v1757
        %v1759 = vrot.slane %v1711, %v1758
        %v1760 = vsel %vm1732, %v1759, %v1755
        %v1761 = vsel %vm693, %v1742, %v1733
        %v1762 = vsel %vm695, %v1751, %v1761
        %v1763 = vsel %vm697, %v1760, %v1762
        %1765 = vst.msk [vmem:[#allocation3 + $0x3] sm:$0xf] %vm702, %v1763
        %1766 = vadd.xlane.f32.xlu0 %v704
        %v1767 = vpop.xlane.xlu0 %1766
        %1768 = vadd.xlane.f32.xlu0 %v705
        %v1769 = vpop.xlane.xlu0 %1768
        %1770 = vadd.xlane.f32.xlu0 %v713
        %v1771 = vpop.xlane.xlu0 %1770
        %1772 = vadd.xlane.f32.xlu0 %v714
        %v1773 = vpop.xlane.xlu0 %1772
        %1774 = vadd.xlane.f32.xlu0 %v722
        %v1775 = vpop.xlane.xlu0 %1774
        %1776 = vadd.xlane.f32.xlu0 %v723
        %v1777 = vpop.xlane.xlu0 %1776
        %1778 = vadd.xlane.f32.xlu0 %v731
        %v1779 = vpop.xlane.xlu0 %1778
        %1780 = vadd.xlane.f32.xlu0 %v732
        %v1781 = vpop.xlane.xlu0 %1780
        %v1782 = vmul.f32 %v1767, %v740
        %v1783 = vmul.f32 %v1769, %v740
        %v1784 = vmul.f32 %v1771, %v740
        %v1785 = vmul.f32 %v1773, %v740
        %v1786 = vmul.f32 %v1775, %v740
        %v1787 = vmul.f32 %v1777, %v740
        %v1788 = vmul.f32 %v1779, %v740
        %v1789 = vmul.f32 %v1781, %v740
        %v1798 = vlaneseq
        %v1799 = vshrl.u32 %v1798, 7
        %v1800 = vsub.s32 %v1722, %v1799
        %v1801 = vrot.slane %v1782, %v1800
        %v1802 = vlaneseq
        %v1803 = vshrl.u32 %v1802, 7
        %v1804 = vsub.s32 %v1727, %v1803
        %v1805 = vrot.slane %v1783, %v1804
        %v1806 = vsel %vm1732, %v1805, %v1801
        %v1807 = vlaneseq
        %v1808 = vshrl.u32 %v1807, 7
        %v1809 = vsub.s32 %v1722, %v1808
        %v1810 = vrot.slane %v1784, %v1809
        %v1811 = vlaneseq
        %v1812 = vshrl.u32 %v1811, 7
        %v1813 = vsub.s32 %v1727, %v1812
        %v1814 = vrot.slane %v1785, %v1813
        %v1815 = vsel %vm1732, %v1814, %v1810
        %v1816 = vlaneseq
        %v1817 = vshrl.u32 %v1816, 7
        %v1818 = vsub.s32 %v1722, %v1817
        %v1819 = vrot.slane %v1786, %v1818
        %v1820 = vlaneseq
        %v1821 = vshrl.u32 %v1820, 7
        %v1822 = vsub.s32 %v1727, %v1821
        %v1823 = vrot.slane %v1787, %v1822
        %v1824 = vsel %vm1732, %v1823, %v1819
        %v1825 = vlaneseq
        %v1826 = vshrl.u32 %v1825, 7
        %v1827 = vsub.s32 %v1722, %v1826
        %v1828 = vrot.slane %v1788, %v1827
        %v1829 = vlaneseq
        %v1830 = vshrl.u32 %v1829, 7
        %v1831 = vsub.s32 %v1727, %v1830
        %v1832 = vrot.slane %v1789, %v1831
        %v1833 = vsel %vm1732, %v1832, %v1828
        %v1834 = vsel %vm693, %v1815, %v1806
        %v1835 = vsel %vm695, %v1824, %v1834
        %v1836 = vsel %vm697, %v1833, %v1835
        %s1838 = scalar_lea.vmem [#allocation3], 16
        %1839 = vst.msk [vmem:[%s1838 + $0x3] sm:$0xf] %vm702, %v1836
        %s1840 = sld [smem:[#allocation7]]
        %v1841 = vld [vmem:[#allocation3] sm:$0xf]
        %v1842 = vstv %s1840
        %v1843 = vmul.f32 %v1842, %v1841
        %v1844 = vadd.f32 %v1843, 0.0
        %s1845 = sld [smem:[#allocation7 + $0x1]]
        %v1846 = vstv %s1845
        %v1847 = vmul.f32 %v1846, %v1841
        %1849 = vrot.lane.b32.xlu0 %v1847, 127
        %v1850 = vpop.permute.xlu0 %1849
        %v1852 = vadd.f32 %v1844, %v1850
        %s1853 = sld [smem:[#allocation7 + $0x2]]
        %v1854 = vstv %s1853
        %v1855 = vmul.f32 %v1854, %v1841
        %1857 = vrot.lane.b32.xlu0 %v1855, 126
        %v1858 = vpop.permute.xlu0 %1857
        %v1860 = vadd.f32 %v1852, %v1858
        %s1861 = sld [smem:[#allocation7 + $0x3]]
        %v1862 = vstv %s1861
        %v1863 = vmul.f32 %v1862, %v1841
        %1865 = vrot.lane.b32.xlu0 %v1863, 125
        %v1866 = vpop.permute.xlu0 %1865
        %v1868 = vadd.f32 %v1860, %v1866
        %s1869 = sld [smem:[#allocation7 + $0x4]]
        %v1870 = vstv %s1869
        %v1871 = vmul.f32 %v1870, %v1841
        %1873 = vrot.lane.b32.xlu0 %v1871, 124
        %v1874 = vpop.permute.xlu0 %1873
        %v1876 = vadd.f32 %v1868, %v1874
        %s1877 = sld [smem:[#allocation7 + $0x5]]
        %v1878 = vstv %s1877
        %v1879 = vmul.f32 %v1878, %v1841
        %1881 = vrot.lane.b32.xlu0 %v1879, 123
        %v1882 = vpop.permute.xlu0 %1881
        %v1884 = vadd.f32 %v1876, %v1882
        %s1885 = sld [smem:[#allocation7 + $0x6]]
        %v1886 = vstv %s1885
        %v1887 = vmul.f32 %v1886, %v1841
        %1889 = vrot.lane.b32.xlu0 %v1887, 122
        %v1890 = vpop.permute.xlu0 %1889
        %v1892 = vadd.f32 %v1884, %v1890
        %s1893 = sld [smem:[#allocation7 + $0x7]]
        %v1894 = vld [vmem:[#allocation3 + $0x1] sm:$0xf]
        %v1895 = vstv %s1893
        %v1896 = vmul.f32 %v1895, %v1894
        %v1897 = vadd.f32 %v1892, %v1896
        %s1898 = sld [smem:[#allocation7 + $0x8]]
        %v1899 = vstv %s1898
        %v1900 = vmul.f32 %v1899, %v1894
        %1902 = vrot.lane.b32.xlu0 %v1900, 127
        %v1903 = vpop.permute.xlu0 %1902
        %v1905 = vadd.f32 %v1897, %v1903
        %s1906 = sld [smem:[#allocation7 + $0x9]]
        %v1907 = vstv %s1906
        %v1908 = vmul.f32 %v1907, %v1894
        %1910 = vrot.lane.b32.xlu0 %v1908, 126
        %v1911 = vpop.permute.xlu0 %1910
        %v1913 = vadd.f32 %v1905, %v1911
        %s1914 = sld [smem:[#allocation7 + $0xa]]
        %v1915 = vstv %s1914
        %v1916 = vmul.f32 %v1915, %v1894
        %1918 = vrot.lane.b32.xlu0 %v1916, 125
        %v1919 = vpop.permute.xlu0 %1918
        %v1921 = vadd.f32 %v1913, %v1919
        %s1922 = sld [smem:[#allocation7 + $0xb]]
        %v1923 = vstv %s1922
        %v1924 = vmul.f32 %v1923, %v1894
        %1926 = vrot.lane.b32.xlu0 %v1924, 124
        %v1927 = vpop.permute.xlu0 %1926
        %v1929 = vadd.f32 %v1921, %v1927
        %s1930 = sld [smem:[#allocation7 + $0xc]]
        %v1931 = vstv %s1930
        %v1932 = vmul.f32 %v1931, %v1894
        %1934 = vrot.lane.b32.xlu0 %v1932, 123
        %v1935 = vpop.permute.xlu0 %1934
        %v1937 = vadd.f32 %v1929, %v1935
        %s1938 = sld [smem:[#allocation7 + $0xd]]
        %v1939 = vstv %s1938
        %v1940 = vmul.f32 %v1939, %v1894
        %1942 = vrot.lane.b32.xlu0 %v1940, 122
        %v1943 = vpop.permute.xlu0 %1942
        %v1945 = vadd.f32 %v1937, %v1943
        %s1946 = sld [smem:[#allocation7 + $0xe]]
        %v1947 = vld [vmem:[#allocation3 + $0x2] sm:$0xf]
        %v1948 = vstv %s1946
        %v1949 = vmul.f32 %v1948, %v1947
        %v1950 = vadd.f32 %v1945, %v1949
        %s1951 = sld [smem:[#allocation7 + $0xf]]
        %v1952 = vstv %s1951
        %v1953 = vmul.f32 %v1952, %v1947
        %1955 = vrot.lane.b32.xlu0 %v1953, 127
        %v1956 = vpop.permute.xlu0 %1955
        %v1958 = vadd.f32 %v1950, %v1956
        %s1959 = sld [smem:[#allocation7 + $0x10]]
        %v1960 = vstv %s1959
        %v1961 = vmul.f32 %v1960, %v1947
        %1963 = vrot.lane.b32.xlu0 %v1961, 126
        %v1964 = vpop.permute.xlu0 %1963
        %v1966 = vadd.f32 %v1958, %v1964
        %s1967 = sld [smem:[#allocation7 + $0x11]]
        %v1968 = vstv %s1967
        %v1969 = vmul.f32 %v1968, %v1947
        %1971 = vrot.lane.b32.xlu0 %v1969, 125
        %v1972 = vpop.permute.xlu0 %1971
        %v1974 = vadd.f32 %v1966, %v1972
        %s1975 = sld [smem:[#allocation7 + $0x12]]
        %v1976 = vstv %s1975
        %v1977 = vmul.f32 %v1976, %v1947
        %1979 = vrot.lane.b32.xlu0 %v1977, 124
        %v1980 = vpop.permute.xlu0 %1979
        %v1982 = vadd.f32 %v1974, %v1980
        %s1983 = sld [smem:[#allocation7 + $0x13]]
        %v1984 = vstv %s1983
        %v1985 = vmul.f32 %v1984, %v1947
        %1987 = vrot.lane.b32.xlu0 %v1985, 123
        %v1988 = vpop.permute.xlu0 %1987
        %v1990 = vadd.f32 %v1982, %v1988
        %s1991 = sld [smem:[#allocation7 + $0x14]]
        %v1992 = vstv %s1991
        %v1993 = vmul.f32 %v1992, %v1947
        %1995 = vrot.lane.b32.xlu0 %v1993, 122
        %v1996 = vpop.permute.xlu0 %1995
        %v1998 = vadd.f32 %v1990, %v1996
        %s1999 = sld [smem:[#allocation7 + $0x15]]
        %v2000 = vld [vmem:[#allocation3 + $0x3] sm:$0xf]
        %v2001 = vstv %s1999
        %v2002 = vmul.f32 %v2001, %v2000
        %v2003 = vadd.f32 %v1998, %v2002
        %s2004 = sld [smem:[#allocation7 + $0x16]]
        %v2005 = vstv %s2004
        %v2006 = vmul.f32 %v2005, %v2000
        %2008 = vrot.lane.b32.xlu0 %v2006, 127
        %v2009 = vpop.permute.xlu0 %2008
        %v2011 = vadd.f32 %v2003, %v2009
        %s2012 = sld [smem:[#allocation7 + $0x17]]
        %v2013 = vstv %s2012
        %v2014 = vmul.f32 %v2013, %v2000
        %2016 = vrot.lane.b32.xlu0 %v2014, 126
        %v2017 = vpop.permute.xlu0 %2016
        %v2019 = vadd.f32 %v2011, %v2017
        %s2020 = sld [smem:[#allocation7 + $0x18]]
        %v2021 = vstv %s2020
        %v2022 = vmul.f32 %v2021, %v2000
        %2024 = vrot.lane.b32.xlu0 %v2022, 125
        %v2025 = vpop.permute.xlu0 %2024
        %v2027 = vadd.f32 %v2019, %v2025
        %s2028 = sld [smem:[#allocation7 + $0x19]]
        %v2029 = vstv %s2028
        %v2030 = vmul.f32 %v2029, %v2000
        %2032 = vrot.lane.b32.xlu0 %v2030, 124
        %v2033 = vpop.permute.xlu0 %2032
        %v2035 = vadd.f32 %v2027, %v2033
        %s2036 = sld [smem:[#allocation7 + $0x1a]]
        %v2037 = vstv %s2036
        %v2038 = vmul.f32 %v2037, %v2000
        %2040 = vrot.lane.b32.xlu0 %v2038, 123
        %v2041 = vpop.permute.xlu0 %2040
        %v2043 = vadd.f32 %v2035, %v2041
        %s2044 = sld [smem:[#allocation7 + $0x1b]]
        %v2045 = vstv %s2044
        %v2046 = vmul.f32 %v2045, %v2000
        %2048 = vrot.lane.b32.xlu0 %v2046, 122
        %v2049 = vpop.permute.xlu0 %2048
        %v2051 = vadd.f32 %v2043, %v2049
        %s2052 = sld [smem:[#allocation7 + $0x1c]]
        %v2053 = vld [vmem:[#allocation3 + $0x4] sm:$0xf]
        %v2054 = vstv %s2052
        %v2055 = vmul.f32 %v2054, %v2053
        %v2056 = vadd.f32 %v2051, %v2055
        %s2057 = sld [smem:[#allocation7 + $0x1d]]
        %v2058 = vstv %s2057
        %v2059 = vmul.f32 %v2058, %v2053
        %2061 = vrot.lane.b32.xlu0 %v2059, 127
        %v2062 = vpop.permute.xlu0 %2061
        %v2064 = vadd.f32 %v2056, %v2062
        %s2065 = sld [smem:[#allocation7 + $0x1e]]
        %v2066 = vstv %s2065
        %v2067 = vmul.f32 %v2066, %v2053
        %2069 = vrot.lane.b32.xlu0 %v2067, 126
        %v2070 = vpop.permute.xlu0 %2069
        %v2072 = vadd.f32 %v2064, %v2070
        %s2073 = sld [smem:[#allocation7 + $0x1f]]
        %v2074 = vstv %s2073
        %v2075 = vmul.f32 %v2074, %v2053
        %2077 = vrot.lane.b32.xlu0 %v2075, 125
        %v2078 = vpop.permute.xlu0 %2077
        %v2080 = vadd.f32 %v2072, %v2078
        %s2081 = sld [smem:[#allocation7 + $0x20]]
        %v2082 = vstv %s2081
        %v2083 = vmul.f32 %v2082, %v2053
        %2085 = vrot.lane.b32.xlu0 %v2083, 124
        %v2086 = vpop.permute.xlu0 %2085
        %v2088 = vadd.f32 %v2080, %v2086
        %s2089 = sld [smem:[#allocation7 + $0x21]]
        %v2090 = vstv %s2089
        %v2091 = vmul.f32 %v2090, %v2053
        %2093 = vrot.lane.b32.xlu0 %v2091, 123
        %v2094 = vpop.permute.xlu0 %2093
        %v2096 = vadd.f32 %v2088, %v2094
        %s2097 = sld [smem:[#allocation7 + $0x22]]
        %v2098 = vstv %s2097
        %v2099 = vmul.f32 %v2098, %v2053
        %2101 = vrot.lane.b32.xlu0 %v2099, 122
        %v2102 = vpop.permute.xlu0 %2101
        %v2104 = vadd.f32 %v2096, %v2102
        %s2105 = sld [smem:[#allocation7 + $0x23]]
        %v2106 = vld [vmem:[#allocation3 + $0x5] sm:$0xf]
        %v2107 = vstv %s2105
        %v2108 = vmul.f32 %v2107, %v2106
        %v2109 = vadd.f32 %v2104, %v2108
        %s2110 = sld [smem:[#allocation7 + $0x24]]
        %v2111 = vstv %s2110
        %v2112 = vmul.f32 %v2111, %v2106
        %2114 = vrot.lane.b32.xlu0 %v2112, 127
        %v2115 = vpop.permute.xlu0 %2114
        %v2117 = vadd.f32 %v2109, %v2115
        %s2118 = sld [smem:[#allocation7 + $0x25]]
        %v2119 = vstv %s2118
        %v2120 = vmul.f32 %v2119, %v2106
        %2122 = vrot.lane.b32.xlu0 %v2120, 126
        %v2123 = vpop.permute.xlu0 %2122
        %v2125 = vadd.f32 %v2117, %v2123
        %s2126 = sld [smem:[#allocation7 + $0x26]]
        %v2127 = vstv %s2126
        %v2128 = vmul.f32 %v2127, %v2106
        %2130 = vrot.lane.b32.xlu0 %v2128, 125
        %v2131 = vpop.permute.xlu0 %2130
        %v2133 = vadd.f32 %v2125, %v2131
        %s2134 = sld [smem:[#allocation7 + $0x27]]
        %v2135 = vstv %s2134
        %v2136 = vmul.f32 %v2135, %v2106
        %2138 = vrot.lane.b32.xlu0 %v2136, 124
        %v2139 = vpop.permute.xlu0 %2138
        %v2141 = vadd.f32 %v2133, %v2139
        %s2142 = sld [smem:[#allocation7 + $0x28]]
        %v2143 = vstv %s2142
        %v2144 = vmul.f32 %v2143, %v2106
        %2146 = vrot.lane.b32.xlu0 %v2144, 123
        %v2147 = vpop.permute.xlu0 %2146
        %v2149 = vadd.f32 %v2141, %v2147
        %s2150 = sld [smem:[#allocation7 + $0x29]]
        %v2151 = vstv %s2150
        %v2152 = vmul.f32 %v2151, %v2106
        %2154 = vrot.lane.b32.xlu0 %v2152, 122
        %v2155 = vpop.permute.xlu0 %2154
        %v2157 = vadd.f32 %v2149, %v2155
        %s2158 = sld [smem:[#allocation7 + $0x2a]]
        %v2159 = vld [vmem:[#allocation3 + $0x6] sm:$0xf]
        %v2160 = vstv %s2158
        %v2161 = vmul.f32 %v2160, %v2159
        %v2162 = vadd.f32 %v2157, %v2161
        %s2163 = sld [smem:[#allocation7 + $0x2b]]
        %v2164 = vstv %s2163
        %v2165 = vmul.f32 %v2164, %v2159
        %2167 = vrot.lane.b32.xlu0 %v2165, 127
        %v2168 = vpop.permute.xlu0 %2167
        %v2170 = vadd.f32 %v2162, %v2168
        %s2171 = sld [smem:[#allocation7 + $0x2c]]
        %v2172 = vstv %s2171
        %v2173 = vmul.f32 %v2172, %v2159
        %2175 = vrot.lane.b32.xlu0 %v2173, 126
        %v2176 = vpop.permute.xlu0 %2175
        %v2178 = vadd.f32 %v2170, %v2176
        %s2179 = sld [smem:[#allocation7 + $0x2d]]
        %v2180 = vstv %s2179
        %v2181 = vmul.f32 %v2180, %v2159
        %2183 = vrot.lane.b32.xlu0 %v2181, 125
        %v2184 = vpop.permute.xlu0 %2183
        %v2186 = vadd.f32 %v2178, %v2184
        %s2187 = sld [smem:[#allocation7 + $0x2e]]
        %v2188 = vstv %s2187
        %v2189 = vmul.f32 %v2188, %v2159
        %2191 = vrot.lane.b32.xlu0 %v2189, 124
        %v2192 = vpop.permute.xlu0 %2191
        %v2194 = vadd.f32 %v2186, %v2192
        %s2195 = sld [smem:[#allocation7 + $0x2f]]
        %v2196 = vstv %s2195
        %v2197 = vmul.f32 %v2196, %v2159
        %2199 = vrot.lane.b32.xlu0 %v2197, 123
        %v2200 = vpop.permute.xlu0 %2199
        %v2202 = vadd.f32 %v2194, %v2200
        %s2203 = sld [smem:[#allocation7 + $0x30]]
        %v2204 = vstv %s2203
        %v2205 = vmul.f32 %v2204, %v2159
        %2207 = vrot.lane.b32.xlu0 %v2205, 122
        %v2208 = vpop.permute.xlu0 %2207
        %v2210 = vadd.f32 %v2202, %v2208
        %s2211 = sld [smem:[#allocation7 + $0x31]]
        %v2212 = vld [vmem:[%s1838] sm:$0xf]
        %v2213 = vstv %s2211
        %v2214 = vmul.f32 %v2213, %v2212
        %v2215 = vadd.f32 %v2210, %v2214
        %s2216 = sld [smem:[#allocation7 + $0x32]]
        %v2217 = vstv %s2216
        %v2218 = vmul.f32 %v2217, %v2212
        %2220 = vrot.lane.b32.xlu0 %v2218, 127
        %v2221 = vpop.permute.xlu0 %2220
        %v2223 = vadd.f32 %v2215, %v2221
        %s2224 = sld [smem:[#allocation7 + $0x33]]
        %v2225 = vstv %s2224
        %v2226 = vmul.f32 %v2225, %v2212
        %2228 = vrot.lane.b32.xlu0 %v2226, 126
        %v2229 = vpop.permute.xlu0 %2228
        %v2231 = vadd.f32 %v2223, %v2229
        %s2232 = sld [smem:[#allocation7 + $0x34]]
        %v2233 = vstv %s2232
        %v2234 = vmul.f32 %v2233, %v2212
        %2236 = vrot.lane.b32.xlu0 %v2234, 125
        %v2237 = vpop.permute.xlu0 %2236
        %v2239 = vadd.f32 %v2231, %v2237
        %s2240 = sld [smem:[#allocation7 + $0x35]]
        %v2241 = vstv %s2240
        %v2242 = vmul.f32 %v2241, %v2212
        %2244 = vrot.lane.b32.xlu0 %v2242, 124
        %v2245 = vpop.permute.xlu0 %2244
        %v2247 = vadd.f32 %v2239, %v2245
        %s2248 = sld [smem:[#allocation7 + $0x36]]
        %v2249 = vstv %s2248
        %v2250 = vmul.f32 %v2249, %v2212
        %2252 = vrot.lane.b32.xlu0 %v2250, 123
        %v2253 = vpop.permute.xlu0 %2252
        %v2255 = vadd.f32 %v2247, %v2253
        %s2256 = sld [smem:[#allocation7 + $0x37]]
        %v2257 = vstv %s2256
        %v2258 = vmul.f32 %v2257, %v2212
        %2260 = vrot.lane.b32.xlu0 %v2258, 122
        %v2261 = vpop.permute.xlu0 %2260
        %v2263 = vadd.f32 %v2255, %v2261
        %s2264 = sld [smem:[#allocation7 + $0x38]]
        %v2265 = vld [vmem:[%s1838 + $0x1] sm:$0xf]
        %v2266 = vstv %s2264
        %v2267 = vmul.f32 %v2266, %v2265
        %v2268 = vadd.f32 %v2263, %v2267
        %s2269 = sld [smem:[#allocation7 + $0x39]]
        %v2270 = vstv %s2269
        %v2271 = vmul.f32 %v2270, %v2265
        %2273 = vrot.lane.b32.xlu0 %v2271, 127
        %v2274 = vpop.permute.xlu0 %2273
        %v2276 = vadd.f32 %v2268, %v2274
        %s2277 = sld [smem:[#allocation7 + $0x3a]]
        %v2278 = vstv %s2277
        %v2279 = vmul.f32 %v2278, %v2265
        %2281 = vrot.lane.b32.xlu0 %v2279, 126
        %v2282 = vpop.permute.xlu0 %2281
        %v2284 = vadd.f32 %v2276, %v2282
        %s2285 = sld [smem:[#allocation7 + $0x3b]]
        %v2286 = vstv %s2285
        %v2287 = vmul.f32 %v2286, %v2265
        %2289 = vrot.lane.b32.xlu0 %v2287, 125
        %v2290 = vpop.permute.xlu0 %2289
        %v2292 = vadd.f32 %v2284, %v2290
        %s2293 = sld [smem:[#allocation7 + $0x3c]]
        %v2294 = vstv %s2293
        %v2295 = vmul.f32 %v2294, %v2265
        %2297 = vrot.lane.b32.xlu0 %v2295, 124
        %v2298 = vpop.permute.xlu0 %2297
        %v2300 = vadd.f32 %v2292, %v2298
        %s2301 = sld [smem:[#allocation7 + $0x3d]]
        %v2302 = vstv %s2301
        %v2303 = vmul.f32 %v2302, %v2265
        %2305 = vrot.lane.b32.xlu0 %v2303, 123
        %v2306 = vpop.permute.xlu0 %2305
        %v2308 = vadd.f32 %v2300, %v2306
        %s2309 = sld [smem:[#allocation7 + $0x3e]]
        %v2310 = vstv %s2309
        %v2311 = vmul.f32 %v2310, %v2265
        %2313 = vrot.lane.b32.xlu0 %v2311, 122
        %v2314 = vpop.permute.xlu0 %2313
        %v2316 = vadd.f32 %v2308, %v2314
        %s2317 = sld [smem:[#allocation7 + $0x3f]]
        %v2318 = vld [vmem:[%s1838 + $0x2] sm:$0xf]
        %v2319 = vstv %s2317
        %v2320 = vmul.f32 %v2319, %v2318
        %v2321 = vadd.f32 %v2316, %v2320
        %s2322 = sld [smem:[#allocation7 + $0x40]]
        %v2323 = vstv %s2322
        %v2324 = vmul.f32 %v2323, %v2318
        %2326 = vrot.lane.b32.xlu0 %v2324, 127
        %v2327 = vpop.permute.xlu0 %2326
        %v2329 = vadd.f32 %v2321, %v2327
        %s2330 = sld [smem:[#allocation7 + $0x41]]
        %v2331 = vstv %s2330
        %v2332 = vmul.f32 %v2331, %v2318
        %2334 = vrot.lane.b32.xlu0 %v2332, 126
        %v2335 = vpop.permute.xlu0 %2334
        %v2337 = vadd.f32 %v2329, %v2335
        %s2338 = sld [smem:[#allocation7 + $0x42]]
        %v2339 = vstv %s2338
        %v2340 = vmul.f32 %v2339, %v2318
        %2342 = vrot.lane.b32.xlu0 %v2340, 125
        %v2343 = vpop.permute.xlu0 %2342
        %v2345 = vadd.f32 %v2337, %v2343
        %s2346 = sld [smem:[#allocation7 + $0x43]]
        %v2347 = vstv %s2346
        %v2348 = vmul.f32 %v2347, %v2318
        %2350 = vrot.lane.b32.xlu0 %v2348, 124
        %v2351 = vpop.permute.xlu0 %2350
        %v2353 = vadd.f32 %v2345, %v2351
        %s2354 = sld [smem:[#allocation7 + $0x44]]
        %v2355 = vstv %s2354
        %v2356 = vmul.f32 %v2355, %v2318
        %2358 = vrot.lane.b32.xlu0 %v2356, 123
        %v2359 = vpop.permute.xlu0 %2358
        %v2361 = vadd.f32 %v2353, %v2359
        %s2362 = sld [smem:[#allocation7 + $0x45]]
        %v2363 = vstv %s2362
        %v2364 = vmul.f32 %v2363, %v2318
        %2366 = vrot.lane.b32.xlu0 %v2364, 122
        %v2367 = vpop.permute.xlu0 %2366
        %v2369 = vadd.f32 %v2361, %v2367
        %s2370 = sld [smem:[#allocation7 + $0x46]]
        %v2371 = vld [vmem:[%s1838 + $0x3] sm:$0xf]
        %v2372 = vstv %s2370
        %v2373 = vmul.f32 %v2372, %v2371
        %v2374 = vadd.f32 %v2369, %v2373
        %s2375 = sld [smem:[#allocation7 + $0x47]]
        %v2376 = vstv %s2375
        %v2377 = vmul.f32 %v2376, %v2371
        %2379 = vrot.lane.b32.xlu0 %v2377, 127
        %v2380 = vpop.permute.xlu0 %2379
        %v2382 = vadd.f32 %v2374, %v2380
        %s2383 = sld [smem:[#allocation7 + $0x48]]
        %v2384 = vstv %s2383
        %v2385 = vmul.f32 %v2384, %v2371
        %2387 = vrot.lane.b32.xlu0 %v2385, 126
        %v2388 = vpop.permute.xlu0 %2387
        %v2390 = vadd.f32 %v2382, %v2388
        %s2391 = sld [smem:[#allocation7 + $0x49]]
        %v2392 = vstv %s2391
        %v2393 = vmul.f32 %v2392, %v2371
        %2395 = vrot.lane.b32.xlu0 %v2393, 125
        %v2396 = vpop.permute.xlu0 %2395
        %v2398 = vadd.f32 %v2390, %v2396
        %s2399 = sld [smem:[#allocation7 + $0x4a]]
        %v2400 = vstv %s2399
        %v2401 = vmul.f32 %v2400, %v2371
        %2403 = vrot.lane.b32.xlu0 %v2401, 124
        %v2404 = vpop.permute.xlu0 %2403
        %v2406 = vadd.f32 %v2398, %v2404
        %s2407 = sld [smem:[#allocation7 + $0x4b]]
        %v2408 = vstv %s2407
        %v2409 = vmul.f32 %v2408, %v2371
        %2411 = vrot.lane.b32.xlu0 %v2409, 123
        %v2412 = vpop.permute.xlu0 %2411
        %v2414 = vadd.f32 %v2406, %v2412
        %s2415 = sld [smem:[#allocation7 + $0x4c]]
        %v2416 = vstv %s2415
        %v2417 = vmul.f32 %v2416, %v2371
        %2419 = vrot.lane.b32.xlu0 %v2417, 122
        %v2420 = vpop.permute.xlu0 %2419
        %v2422 = vadd.f32 %v2414, %v2420
        %s2423 = sld [smem:[#allocation7 + $0x4d]]
        %v2424 = vld [vmem:[%s1838 + $0x4] sm:$0xf]
        %v2425 = vstv %s2423
        %v2426 = vmul.f32 %v2425, %v2424
        %v2427 = vadd.f32 %v2422, %v2426
        %s2428 = sld [smem:[#allocation7 + $0x4e]]
        %v2429 = vstv %s2428
        %v2430 = vmul.f32 %v2429, %v2424
        %2432 = vrot.lane.b32.xlu0 %v2430, 127
        %v2433 = vpop.permute.xlu0 %2432
        %v2435 = vadd.f32 %v2427, %v2433
        %s2436 = sld [smem:[#allocation7 + $0x4f]]
        %v2437 = vstv %s2436
        %v2438 = vmul.f32 %v2437, %v2424
        %2440 = vrot.lane.b32.xlu0 %v2438, 126
        %v2441 = vpop.permute.xlu0 %2440
        %v2443 = vadd.f32 %v2435, %v2441
        %s2444 = sld [smem:[#allocation7 + $0x50]]
        %v2445 = vstv %s2444
        %v2446 = vmul.f32 %v2445, %v2424
        %2448 = vrot.lane.b32.xlu0 %v2446, 125
        %v2449 = vpop.permute.xlu0 %2448
        %v2451 = vadd.f32 %v2443, %v2449
        %s2452 = sld [smem:[#allocation7 + $0x51]]
        %v2453 = vstv %s2452
        %v2454 = vmul.f32 %v2453, %v2424
        %2456 = vrot.lane.b32.xlu0 %v2454, 124
        %v2457 = vpop.permute.xlu0 %2456
        %v2459 = vadd.f32 %v2451, %v2457
        %s2460 = sld [smem:[#allocation7 + $0x52]]
        %v2461 = vstv %s2460
        %v2462 = vmul.f32 %v2461, %v2424
        %2464 = vrot.lane.b32.xlu0 %v2462, 123
        %v2465 = vpop.permute.xlu0 %2464
        %v2467 = vadd.f32 %v2459, %v2465
        %s2468 = sld [smem:[#allocation7 + $0x53]]
        %v2469 = vstv %s2468
        %v2470 = vmul.f32 %v2469, %v2424
        %2472 = vrot.lane.b32.xlu0 %v2470, 122
        %v2473 = vpop.permute.xlu0 %2472
        %v2475 = vadd.f32 %v2467, %v2473
        %s2476 = sld [smem:[#allocation7 + $0x54]]
        %v2477 = vld [vmem:[%s1838 + $0x5] sm:$0xf]
        %v2478 = vstv %s2476
        %v2479 = vmul.f32 %v2478, %v2477
        %v2480 = vadd.f32 %v2475, %v2479
        %s2481 = sld [smem:[#allocation7 + $0x55]]
        %v2482 = vstv %s2481
        %v2483 = vmul.f32 %v2482, %v2477
        %2485 = vrot.lane.b32.xlu0 %v2483, 127
        %v2486 = vpop.permute.xlu0 %2485
        %v2488 = vadd.f32 %v2480, %v2486
        %s2489 = sld [smem:[#allocation7 + $0x56]]
        %v2490 = vstv %s2489
        %v2491 = vmul.f32 %v2490, %v2477
        %2493 = vrot.lane.b32.xlu0 %v2491, 126
        %v2494 = vpop.permute.xlu0 %2493
        %v2496 = vadd.f32 %v2488, %v2494
        %s2497 = sld [smem:[#allocation7 + $0x57]]
        %v2498 = vstv %s2497
        %v2499 = vmul.f32 %v2498, %v2477
        %2501 = vrot.lane.b32.xlu0 %v2499, 125
        %v2502 = vpop.permute.xlu0 %2501
        %v2504 = vadd.f32 %v2496, %v2502
        %s2505 = sld [smem:[#allocation7 + $0x58]]
        %v2506 = vstv %s2505
        %v2507 = vmul.f32 %v2506, %v2477
        %2509 = vrot.lane.b32.xlu0 %v2507, 124
        %v2510 = vpop.permute.xlu0 %2509
        %v2512 = vadd.f32 %v2504, %v2510
        %s2513 = sld [smem:[#allocation7 + $0x59]]
        %v2514 = vstv %s2513
        %v2515 = vmul.f32 %v2514, %v2477
        %2517 = vrot.lane.b32.xlu0 %v2515, 123
        %v2518 = vpop.permute.xlu0 %2517
        %v2520 = vadd.f32 %v2512, %v2518
        %s2521 = sld [smem:[#allocation7 + $0x5a]]
        %v2522 = vstv %s2521
        %v2523 = vmul.f32 %v2522, %v2477
        %2525 = vrot.lane.b32.xlu0 %v2523, 122
        %v2526 = vpop.permute.xlu0 %2525
        %v2528 = vadd.f32 %v2520, %v2526
        %s2529 = sld [smem:[#allocation7 + $0x5b]]
        %v2530 = vld [vmem:[%s1838 + $0x6] sm:$0xf]
        %v2531 = vstv %s2529
        %v2532 = vmul.f32 %v2531, %v2530
        %v2533 = vadd.f32 %v2528, %v2532
        %s2534 = sld [smem:[#allocation7 + $0x5c]]
        %v2535 = vstv %s2534
        %v2536 = vmul.f32 %v2535, %v2530
        %2538 = vrot.lane.b32.xlu0 %v2536, 127
        %v2539 = vpop.permute.xlu0 %2538
        %v2541 = vadd.f32 %v2533, %v2539
        %s2542 = sld [smem:[#allocation7 + $0x5d]]
        %v2543 = vstv %s2542
        %v2544 = vmul.f32 %v2543, %v2530
        %2546 = vrot.lane.b32.xlu0 %v2544, 126
        %v2547 = vpop.permute.xlu0 %2546
        %v2549 = vadd.f32 %v2541, %v2547
        %s2550 = sld [smem:[#allocation7 + $0x5e]]
        %v2551 = vstv %s2550
        %v2552 = vmul.f32 %v2551, %v2530
        %2554 = vrot.lane.b32.xlu0 %v2552, 125
        %v2555 = vpop.permute.xlu0 %2554
        %v2557 = vadd.f32 %v2549, %v2555
        %s2558 = sld [smem:[#allocation7 + $0x5f]]
        %v2559 = vstv %s2558
        %v2560 = vmul.f32 %v2559, %v2530
        %2562 = vrot.lane.b32.xlu0 %v2560, 124
        %v2563 = vpop.permute.xlu0 %2562
        %v2565 = vadd.f32 %v2557, %v2563
        %s2566 = sld [smem:[#allocation7 + $0x60]]
        %v2567 = vstv %s2566
        %v2568 = vmul.f32 %v2567, %v2530
        %2570 = vrot.lane.b32.xlu0 %v2568, 123
        %v2571 = vpop.permute.xlu0 %2570
        %v2573 = vadd.f32 %v2565, %v2571
        %s2574 = sld [smem:[#allocation7 + $0x61]]
        %v2575 = vstv %s2574
        %v2576 = vmul.f32 %v2575, %v2530
        %2578 = vrot.lane.b32.xlu0 %v2576, 122
        %v2579 = vpop.permute.xlu0 %2578
        %v2581 = vadd.f32 %v2573, %v2579
        %s2582 = sld [smem:[#allocation7 + $0x62]]
        %v2583 = vstv %s2582
        %v2584 = vadd.f32 %v2581, %v2583
        %v2585 = vsub.f32 0.0, %v2584
        %v2586 = vmul.f32 %v2585, 1.442695
        %v2587 = vpow.pop %v2586
        %v2588 = vadd.f32 %v2587, 1.0
        %v2589 = vrcp.pop %v2588
        %v2590 = vmul.f32 1.0, %v2589
        %v2591 = vmul.f32 %v2584, %v2590
        %v2592 = vsub.f32 0.0, %v2591
        %v2593 = vmul.f32 %v2592, 1.442695
        %v2594 = vpow.pop %v2593
        %v2595 = vadd.f32 %v2594, 1.0
        %v2596 = vrcp.pop %v2595
        %v2597 = vmul.f32 1.0, %v2596
        %2599 = vset.pattern.permute.xlu0 0
        %2600 = vperm.xlu0 %2599, %v2597
        %v2601 = vpop.permute.xlu0 %2600
        %2603 = vst.msk [vmem:[#allocation4] sm:$0xf] %vm1515, %v2601
        %2604 = vset.pattern.permute.xlu0 1
        %2605 = vperm.xlu0 %2604, %v2597
        %v2606 = vpop.permute.xlu0 %2605
        %2608 = vst.msk [vmem:[#allocation4] sm:$0xf] %vm1521, %v2606
        %2609 = vset.pattern.permute.xlu0 2
        %2610 = vperm.xlu0 %2609, %v2597
        %v2611 = vpop.permute.xlu0 %2610
        %2613 = vst.msk [vmem:[#allocation4] sm:$0xf] %vm1526, %v2611
        %2614 = vset.pattern.permute.xlu0 3
        %2615 = vperm.xlu0 %2614, %v2597
        %v2616 = vpop.permute.xlu0 %2615
        %2618 = vst.msk [vmem:[#allocation4] sm:$0xf] %vm1531, %v2616
        %2619 = vset.pattern.permute.xlu0 4
        %2620 = vperm.xlu0 %2619, %v2597
        %v2621 = vpop.permute.xlu0 %2620
        %2623 = vst.msk [vmem:[#allocation4] sm:$0xf] %vm1536, %v2621
        %2624 = vset.pattern.permute.xlu0 5
        %2625 = vperm.xlu0 %2624, %v2597
        %v2626 = vpop.permute.xlu0 %2625
        %2628 = vst.msk [vmem:[#allocation4] sm:$0xf] %vm1541, %v2626
        %2629 = vset.pattern.permute.xlu0 6
        %2630 = vperm.xlu0 %2629, %v2597
        %v2631 = vpop.permute.xlu0 %2630
        %2633 = vst.msk [vmem:[#allocation4] sm:$0xf] %vm1546, %v2631
        %2634 = vset.pattern.permute.xlu0 7
        %2635 = vperm.xlu0 %2634, %v2597
        %v2636 = vpop.permute.xlu0 %2635
        %2638 = vst.msk [vmem:[#allocation4] sm:$0xf] %vm1551, %v2636
        %2639 = vset.pattern.permute.xlu0 8
        %2640 = vperm.xlu0 %2639, %v2597
        %v2641 = vpop.permute.xlu0 %2640
        %2643 = vst.msk [vmem:[#allocation4 + $0x4] sm:$0xf] %vm1515, %v2641
        %2644 = vset.pattern.permute.xlu0 9
        %2645 = vperm.xlu0 %2644, %v2597
        %v2646 = vpop.permute.xlu0 %2645
        %2648 = vst.msk [vmem:[#allocation4 + $0x4] sm:$0xf] %vm1521, %v2646
        %2649 = vset.pattern.permute.xlu0 10
        %2650 = vperm.xlu0 %2649, %v2597
        %v2651 = vpop.permute.xlu0 %2650
        %2653 = vst.msk [vmem:[#allocation4 + $0x4] sm:$0xf] %vm1526, %v2651
        %2654 = vset.pattern.permute.xlu0 11
        %2655 = vperm.xlu0 %2654, %v2597
        %v2656 = vpop.permute.xlu0 %2655
        %2658 = vst.msk [vmem:[#allocation4 + $0x4] sm:$0xf] %vm1531, %v2656
        %2659 = vset.pattern.permute.xlu0 12
        %2660 = vperm.xlu0 %2659, %v2597
        %v2661 = vpop.permute.xlu0 %2660
        %2663 = vst.msk [vmem:[#allocation4 + $0x4] sm:$0xf] %vm1536, %v2661
        %2664 = vset.pattern.permute.xlu0 13
        %2665 = vperm.xlu0 %2664, %v2597
        %v2666 = vpop.permute.xlu0 %2665
        %2668 = vst.msk [vmem:[#allocation4 + $0x4] sm:$0xf] %vm1541, %v2666
        %2669 = vset.pattern.permute.xlu0 14
        %2670 = vperm.xlu0 %2669, %v2597
        %v2671 = vpop.permute.xlu0 %2670
        %2673 = vst.msk [vmem:[#allocation4 + $0x4] sm:$0xf] %vm1546, %v2671
        %2674 = vset.pattern.permute.xlu0 15
        %2675 = vperm.xlu0 %2674, %v2597
        %v2676 = vpop.permute.xlu0 %2675
        %2678 = vst.msk [vmem:[#allocation4 + $0x4] sm:$0xf] %vm1551, %v2676
        %v2679 = vld [vmem:[#allocation4] sm:$0xff]
        %v2680 = vmul.f32 %v440, %v2679
        %v2681 = vld [vmem:[%s4] sm:$0xff]
        %2683 = vset.pattern.permute.xlu0 0
        %2684 = vperm.xlu0 %2683, %v2681
        %v2685 = vpop.permute.xlu0 %2684
        %v2688 = vlaneseq
        %v2689 = vshrl.u32 %v2688, 7
        %v2690 = vsub.s32 0, %v2689
        %v2691 = vrot.slane %v2680, %v2690
        %v2692 = vlaneseq
        %v2693 = vshrl.u32 %v2692, 7
        %v2694 = vsub.s32 4, %v2693
        %v2695 = vrot.slane %v2680, %v2694
        %v2698 = vlaneseq
        %v2699 = vshrl.u32 %v2698, 7
        %v2700 = vsub.s32 0, %v2699
        %v2701 = vrot.slane %v2691, %v2700
        %v2702 = vlaneseq
        %v2703 = vshrl.u32 %v2702, 7
        %v2704 = vsub.s32 0, %v2703
        %v2705 = vrot.slane %v2695, %v2704
        %v2706 = vmul.f32 %v2685, %v2701
        %v2707 = vmul.f32 %v2685, %v2705
        %v2708 = vadd.f32 %v2706, 0.0
        %v2709 = vadd.f32 %v2707, 0.0
        %2710 = vset.pattern.permute.xlu0 1
        %2711 = vperm.xlu0 %2710, %v2681
        %v2712 = vpop.permute.xlu0 %2711
        %v2714 = vlaneseq
        %v2715 = vshrl.u32 %v2714, 7
        %v2716 = vsub.s32 1, %v2715
        %v2717 = vrot.slane %v2680, %v2716
        %v2718 = vlaneseq
        %v2719 = vshrl.u32 %v2718, 7
        %v2720 = vsub.s32 5, %v2719
        %v2721 = vrot.slane %v2680, %v2720
        %v2724 = vlaneseq
        %v2725 = vshrl.u32 %v2724, 7
        %v2726 = vsub.s32 1, %v2725
        %v2727 = vrot.slane %v2717, %v2726
        %v2728 = vlaneseq
        %v2729 = vshrl.u32 %v2728, 7
        %v2730 = vsub.s32 1, %v2729
        %v2731 = vrot.slane %v2721, %v2730
        %v2732 = vmul.f32 %v2712, %v2727
        %v2733 = vmul.f32 %v2712, %v2731
        %v2734 = vadd.f32 %v2708, %v2732
        %v2735 = vadd.f32 %v2709, %v2733
        %2736 = vset.pattern.permute.xlu0 2
        %2737 = vperm.xlu0 %2736, %v2681
        %v2738 = vpop.permute.xlu0 %2737
        %v2740 = vlaneseq
        %v2741 = vshrl.u32 %v2740, 7
        %v2742 = vsub.s32 2, %v2741
        %v2743 = vrot.slane %v2680, %v2742
        %v2744 = vlaneseq
        %v2745 = vshrl.u32 %v2744, 7
        %v2746 = vsub.s32 6, %v2745
        %v2747 = vrot.slane %v2680, %v2746
        %v2750 = vlaneseq
        %v2751 = vshrl.u32 %v2750, 7
        %v2752 = vsub.s32 2, %v2751
        %v2753 = vrot.slane %v2743, %v2752
        %v2754 = vlaneseq
        %v2755 = vshrl.u32 %v2754, 7
        %v2756 = vsub.s32 2, %v2755
        %v2757 = vrot.slane %v2747, %v2756
        %v2758 = vmul.f32 %v2738, %v2753
        %v2759 = vmul.f32 %v2738, %v2757
        %v2760 = vadd.f32 %v2734, %v2758
        %v2761 = vadd.f32 %v2735, %v2759
        %2762 = vset.pattern.permute.xlu0 3
        %2763 = vperm.xlu0 %2762, %v2681
        %v2764 = vpop.permute.xlu0 %2763
        %v2766 = vlaneseq
        %v2767 = vshrl.u32 %v2766, 7
        %v2768 = vsub.s32 3, %v2767
        %v2769 = vrot.slane %v2680, %v2768
        %v2770 = vlaneseq
        %v2771 = vshrl.u32 %v2770, 7
        %v2772 = vsub.s32 7, %v2771
        %v2773 = vrot.slane %v2680, %v2772
        %v2776 = vlaneseq
        %v2777 = vshrl.u32 %v2776, 7
        %v2778 = vsub.s32 3, %v2777
        %v2779 = vrot.slane %v2769, %v2778
        %v2780 = vlaneseq
        %v2781 = vshrl.u32 %v2780, 7
        %v2782 = vsub.s32 3, %v2781
        %v2783 = vrot.slane %v2773, %v2782
        %v2784 = vmul.f32 %v2764, %v2779
        %v2785 = vmul.f32 %v2764, %v2783
        %v2786 = vadd.f32 %v2760, %v2784
        %v2787 = vadd.f32 %v2761, %v2785
        %v2788 = vld [vmem:[%s5] sm:$0xff]
        %2790 = vset.pattern.permute.xlu0 0
        %2791 = vperm.xlu0 %2790, %v2788
        %v2792 = vpop.permute.xlu0 %2791
        %v2794 = vadd.f32 %v2786, %v2792
        %v2795 = vadd.f32 %v2787, %v2792
        %v2796 = vsub.f32 0.0, %v2794
        %v2797 = vsub.f32 0.0, %v2795
        %v2798 = vmul.f32 %v2796, 1.442695
        %v2799 = vpow.pop %v2798
        %v2800 = vmul.f32 %v2797, 1.442695
        %v2801 = vpow.pop %v2800
        %v2802 = vadd.f32 %v2799, 1.0
        %v2803 = vadd.f32 %v2801, 1.0
        %v2804 = vrcp.pop %v2802
        %v2805 = vmul.f32 1.0, %v2804
        %v2806 = vrcp.pop %v2803
        %v2807 = vmul.f32 1.0, %v2806
        %v2808 = vmul.f32 %v2794, %v2805
        %v2809 = vmul.f32 %v2795, %v2807
        %s2810 = sld [smem:[#allocation10]]
        %v2811 = vstv %s2810
        %v2812 = vmul.f32 %v2811, %v644
        %v2813 = vmul.f32 %v2811, %v645
        %s2814 = sld [smem:[#allocation10 + $0x1]]
        %v2815 = vstv %s2814
        %v2816 = vmul.f32 %v2815, %v1690
        %v2817 = vmul.f32 %v2815, %v1691
        %v2818 = vadd.f32 %v2812, %v2816
        %v2819 = vadd.f32 %v2813, %v2817
        %s2820 = sld [smem:[#allocation10 + $0x2]]
        %v2821 = vstv %s2820
        %v2822 = vmul.f32 %v2821, %v2808
        %v2823 = vmul.f32 %v2821, %v2809
        %v2824 = vadd.f32 %v2818, %v2822
        %v2825 = vadd.f32 %v2819, %v2823
        %2826 = vst [vmem:[%s431] sm:$0xff] %v2824
        %2827 = vst [vmem:[%s431 + $0x8] sm:$0xff] %v2825
        %p2828 = scmp.lt.s32.totalorder %s24, 1
        %s2829 = scalar_select %p2828, %s24, 1
        %s2830 = smul.addr %s2829, 2
        %s2831 = smul.addr %s2830, 8
        %s2832 = scalar_lea.vmem %s10, %s2831
        // Predicated region
        $region77: #{triplet_attention_conv_w.1} parent=59 // pred_check
          %p2833 = pneg %p262
        $region78: #{triplet_attention_conv_w.1} parent=59 // pred_check_branch
          %2835 = sbr.rel (%p2833) target = $region80
        $region79: #{triplet_attention_conv_w.1} parent=59 // pred_region
          _
        $region80: #{triplet_attention_conv_w.1} parent=59 // pred_fallthru
          _
      $region60: #{triplet_attention_conv_w.1} parent=5 // pred_fallthru
        _
      %p2836 = scmp.le.s32.totalorder 2, %s19
      // Predicated region
      $region81: #{triplet_attention_conv_w.1} parent=5 // pred_check
        %p2837 = pneg %p2836
      $region82: #{triplet_attention_conv_w.1} parent=5 // pred_check_branch
        %2839 = sbr.rel (%p2837) target = $region84
      $region83: #{triplet_attention_conv_w.1} parent=5 // pred_region
        %s2840 = ssub.s32 %s19, 2
        // Predicated region
        $region85: #{triplet_attention_conv_w.1} parent=83 // pred_check
          %p2841 = pneg %p268
        $region86: #{triplet_attention_conv_w.1} parent=83 // pred_check_branch
          %2843 = sbr.rel (%p2841) target = $region88
        $region87: #{triplet_attention_conv_w.1} parent=83 // pred_region
          %p2844 = scmp.lt.s32.totalorder %s25, 1
          %s2845 = scalar_select %p2844, %s25, 1
          %s2846 = smul.addr %s2845, 2
          %s2847 = smul.addr %s2846, 8
          %s2848 = scalar_lea.vmem %s10, %s2847
        $region88: #{triplet_attention_conv_w.1} parent=83 // pred_fallthru
          _
      $region84: #{triplet_attention_conv_w.1} parent=5 // pred_fallthru
        _
    $region6: #{triplet_attention_conv_w.1} parent=1 // loop_footer
      %s23 = sadd.s32 1, %s19
    $region7: #{triplet_attention_conv_w.1} parent=1 // loop_footer_branch
      %18 = sbr.rel target = $region3
    $region8: #{triplet_attention_conv_w.1} parent=1 // loop_exit
      _
    %2849 = vsyncpa [#allocation6], 1
    %s2850 = scalar_lea.sflag [#allocation6], 1
    %2851 = vsyncpa %s2850, 1
    %2852 = vsyncpa [#allocation8], 1
    %2853 = vsyncpa [#allocation11], 1

</llo_original>
